<compile_context>
chip_gen: v7x
topology: tpu7x:2x2x1
jax: 0.10.0
libtpu: 0.0.40
codegen_flags: <defaults>
</compile_context>

<pallas_src>
import math
import functools

import jax
import jax.numpy as jnp
from jax.experimental import pallas as pl
from jax.experimental.pallas import tpu as pltpu


_HEAD_ORDER = ("cls", "wh", "reg")


def _fused_heads_kernel(mid_ref, lo1_ref, lo2_ref, w3_ref, b3_ref, w1t_ref, b1t_ref,
                        out_ref, xt_ref, *, TH, W, C, CF):
    # mid_ref : (1, TH, W+2, C)  padded rows [t*TH, t*TH+TH)  (body of the halo window)
    # lo1_ref : (1, 1,  W+2, C)  padded row  t*TH+TH          (bottom halo row 1)
    # lo2_ref : (1, 1,  W+2, C)  padded row  t*TH+TH+1        (bottom halo row 2)
    # w3_ref  : (9, C, CF)       fused 3x3 weights, tap-major (ky*3 + kx), bf16
    # b3_ref  : (1, CF)          f32
    # w1t_ref : (OCP, CF)        block-diagonal fused 1x1 weights, pre-transposed, bf16
    # b1t_ref : (OCP, 1)         f32
    # out_ref : (1, OCP, TH*W)   channel-first, lane-dense output tile
    # xt_ref  : (TH+2, W+2, C)   VMEM scratch: assembled halo tile

    # Assemble the haloed row tile (aligned VMEM copies; the HBM fetch was pipelined
    # by the BlockSpec double-buffering).
    xt_ref[0:TH] = mid_ref[0]
    xt_ref[TH] = lo1_ref[0, 0]
    xt_ref[TH + 1] = lo2_ref[0, 0]

    # 3x3 conv for all three heads: nine accumulated bf16 MXU matmuls, f32 accumulation.
    feat = jnp.zeros((TH * W, CF), jnp.float32)
    for ky in range(3):
        for kx in range(3):
            win = xt_ref[ky:ky + TH, kx:kx + W, :].reshape(TH * W, C)
            feat = feat + jnp.dot(win, w3_ref[3 * ky + kx],
                                  preferred_element_type=jnp.float32)
    feat = jnp.maximum(feat + b3_ref[...], 0.0)                      # (TH*W, CF) f32

    # Fused block-diagonal 1x1 conv; pre-transposed w1 puts channels on sublanes so the
    # output tile comes out channel-first with no activation transpose.
    out_t = jax.lax.dot_general(
        w1t_ref[...], feat.astype(w1t_ref.dtype),
        dimension_numbers=(((1,), (1,)), ((), ())),
        preferred_element_type=jnp.float32)                          # (OCP, TH*W)
    out_ref[0] = (out_t + b1t_ref[...]).astype(out_ref.dtype)


def _build_fused_params(params, C, compute_dtype):
    """Fuse the three heads: one 3x3 conv + one block-diagonal, pre-transposed 1x1."""
    w3 = jnp.concatenate([params[h]["w3"] for h in _HEAD_ORDER], axis=-1)   # (3,3,C,3C)
    CF = w3.shape[-1]
    w3_taps = w3.reshape(9, C, CF).astype(compute_dtype)                    # tap-major
    b3 = jnp.concatenate([params[h]["b3"] for h in _HEAD_ORDER],
                         axis=-1).astype(jnp.float32)                       # (1, CF)

    ocs = [params[h]["w1"].shape[1] for h in _HEAD_ORDER]
    OC = sum(ocs)
    OCP = ((OC + 7) // 8) * 8        # pad out-channels to a sublane multiple (12 -> 16)

    w1 = jnp.zeros((CF, OCP), jnp.float32)
    b1 = jnp.zeros((OCP,), jnp.float32)
    r = c = 0
    for h, oc in zip(_HEAD_ORDER, ocs):
        w1 = w1.at[r:r + C, c:c + oc].set(params[h]["w1"])
        b1 = b1.at[c:c + oc].set(params[h]["b1"][0])
        r += C
        c += oc
    w1t = jnp.transpose(w1).astype(compute_dtype)        # (OCP, CF) — host-side, free
    b1t = b1.reshape(OCP, 1)                             # f32
    return w3_taps, b3, w1t, b1t, ocs, OC, OCP, CF


def _choose_tile_rows(H, W):
    """Largest TH dividing H with TH*W a multiple of 128 and <= 2048 (VMEM-friendly)."""
    best = None
    for th in range(1, H + 1):
        if H % th == 0 and (th * W) % 128 == 0 and th * W <= 2048:
            best = th
    return best if best is not None else H


def centernet_head_forward(x_nchw, params, *, tile_rows=None,
                           compute_dtype=jnp.bfloat16):
    """CenternetHead.forward.  x_nchw: (N, 64, H, W) -> dict of NCHW outputs."""
    N, C, H, W = x_nchw.shape
    w3_taps, b3, w1t, b1t, ocs, OC, OCP, CF = _build_fused_params(params, C,
                                                                  compute_dtype)

    TH = tile_rows if tile_rows is not None else _choose_tile_rows(H, W)
    assert H % TH == 0, "tile_rows must divide H"
    n_th = H // TH

    # One NCHW->NHWC transpose + bf16 cast + zero halo pad per forward, shared by all
    # three heads.
    # TODO(synk): fold the transpose+pad into the kernel (fetch unpadded rows and zero
    # the halo in VMEM) to save one HBM round trip of x.
    x_nhwc = jnp.transpose(x_nchw, (0, 2, 3, 1)).astype(compute_dtype)
    xpad = jnp.pad(x_nhwc, ((0, 0), (1, 1), (1, 1), (0, 0)))         # (N, H+2, W+2, C)

    kernel = functools.partial(_fused_heads_kernel, TH=TH, W=W, C=C, CF=CF)

    in_item = jnp.dtype(compute_dtype).itemsize
    out_item = jnp.dtype(x_nchw.dtype).itemsize
    flops = 2 * N * H * W * (9 * C * CF + CF * OCP)
    bytes_accessed = (N * (H + 2 + 2 * n_th) * (W + 2) * C * in_item
                      + (w3_taps.size + w1t.size) * in_item
                      + (b3.size + b1t.size) * 4
                      + N * OCP * H * W * out_item)

    out = pl.pallas_call(
        kernel,
        out_shape=jax.ShapeDtypeStruct((N, OCP, H * W), x_nchw.dtype),
        grid=(N, n_th),
        in_specs=[
            # TH-row body of the halo window (padded rows [t*TH, t*TH+TH)).
            pl.BlockSpec((1, TH, W + 2, C), lambda n, t: (n, t, 0, 0)),
            # Two single-row bottom-halo fetches (block size 1 => block index == row).
            pl.BlockSpec((1, 1, W + 2, C), lambda n, t: (n, (t + 1) * TH, 0, 0)),
            pl.BlockSpec((1, 1, W + 2, C), lambda n, t: (n, (t + 1) * TH + 1, 0, 0)),
            # Fused weights / biases: constant index maps -> stay resident in VMEM.
            pl.BlockSpec((9, C, CF), lambda n, t: (0, 0, 0)),
            pl.BlockSpec((1, CF), lambda n, t: (0, 0)),
            pl.BlockSpec((OCP, CF), lambda n, t: (0, 0)),
            pl.BlockSpec((OCP, 1), lambda n, t: (0, 0)),
        ],
        out_specs=pl.BlockSpec((1, OCP, TH * W), lambda n, t: (n, 0, t)),
        scratch_shapes=[pltpu.VMEM((TH + 2, W + 2, C), compute_dtype)],
        compiler_params=pltpu.CompilerParams(
            dimension_semantics=("parallel", "parallel"),
            vmem_limit_bytes=48 * 1024 * 1024),
        cost_estimate=pl.CostEstimate(flops=flops, transcendentals=0,
                                      bytes_accessed=bytes_accessed),
    )(xpad, xpad, xpad, w3_taps, b3, w1t, b1t)

    out = out.reshape(N, OCP, H, W)          # already channel-first: no transpose
    o0, o1 = ocs[0], ocs[0] + ocs[1]
    return {"cls": out[:, :o0], "wh": out[:, o0:o1], "reg": out[:, o1:OC]}


def init_single_head_params(key, in_channel, out_channel, bias_fill=False):
    """Deterministic synthetic init matching the PyTorch module's __init__."""
    k3, k1 = jax.random.split(key)
    w3 = 0.001 * jax.random.normal(k3, (3, 3, in_channel, in_channel), jnp.float32)
    b3 = jnp.zeros((1, in_channel), jnp.float32)
    w1 = 0.001 * jax.random.normal(k1, (in_channel, out_channel), jnp.float32)
    if bias_fill:
        prior_prob = 0.1
        bias_value = -math.log((1 - prior_prob) / prior_prob)
        b1 = jnp.full((1, out_channel), bias_value, jnp.float32)
    else:
        b1 = jnp.zeros((1, out_channel), jnp.float32)
    return dict(w3=w3, b3=b3, w1=w1, b1=b1)


def _reference_single_head(x_nhwc, p, compute_dtype):
    """Pure-JAX reference with the same bf16-in / f32-accumulate recipe as the kernel."""
    xc = x_nhwc.astype(compute_dtype)
    y = jax.lax.conv_general_dilated(
        xc, p["w3"].astype(compute_dtype), window_strides=(1, 1), padding="SAME",
        dimension_numbers=("NHWC", "HWIO", "NHWC"),
        preferred_element_type=jnp.float32)
    y = jnp.maximum(y + p["b3"].reshape(1, 1, 1, -1), 0.0)
    y = jnp.einsum("nhwc,co->nhwo", y.astype(compute_dtype),
                   p["w1"].astype(compute_dtype),
                   preferred_element_type=jnp.float32)
    return y + p["b1"].reshape(1, 1, 1, -1)


if __name__ == "__main__":
    key = jax.random.PRNGKey(0)
    k_x, k_cls, k_wh, k_reg = jax.random.split(key, 4)

    N, C, H, W = 2, 64, 16, 16          # in_channel is fixed to 64 by the module
    NUM_CLASSES = 8
    x = jax.random.normal(k_x, (N, C, H, W), jnp.float32)

    params = {
        "cls": init_single_head_params(k_cls, C, NUM_CLASSES, bias_fill=True),
        "wh":  init_single_head_params(k_wh, C, 2),
        "reg": init_single_head_params(k_reg, C, 2),
    }

    # tile_rows=8 -> two row tiles per image, exercising the halo'd, tiled grid.
    fwd = jax.jit(functools.partial(centernet_head_forward, tile_rows=8))
    pred = fwd(x, params)
    jax.block_until_ready(pred)

    assert pred["cls"].shape == (N, NUM_CLASSES, H, W)
    assert pred["wh"].shape == (N, 2, H, W)
    assert pred["reg"].shape == (N, 2, H, W)

    # Correctness check against a pure-JAX reference using the same precision recipe.
    x_nhwc = jnp.transpose(x, (0, 2, 3, 1))
    for name in _HEAD_ORDER:
        ref = jnp.transpose(
            _reference_single_head(x_nhwc, params[name], jnp.bfloat16), (0, 3, 1, 2))
        assert jnp.allclose(pred[name], ref, atol=2e-3, rtol=2e-3), name

    print("KERNEL_OK")
</pallas_src>

<mosaic_0001>
module attributes {stable_mosaic.version = 11 : i64} {
  func.func @_fused_heads_kernel(%arg0: i32, %arg1: i32, %arg2: memref<1x8x18x64xbf16, #tpu.memory_space<vmem>>, %arg3: memref<1x1x18x64xbf16, #tpu.memory_space<vmem>>, %arg4: memref<1x1x18x64xbf16, #tpu.memory_space<vmem>>, %arg5: memref<9x64x192xbf16, #tpu.memory_space<vmem>>, %arg6: memref<1x192xf32, #tpu.memory_space<vmem>>, %arg7: memref<16x192xbf16, #tpu.memory_space<vmem>>, %arg8: memref<16x1xf32, #tpu.memory_space<vmem>>, %arg9: memref<1x16x128xf32, #tpu.memory_space<vmem>>, %arg10: memref<10x18x64xbf16, #tpu.memory_space<vmem>>) attributes {dimension_semantics = [#tpu.dimension_semantics<parallel>, #tpu.dimension_semantics<parallel>], iteration_bounds = array<i64: 2, 2>, scalar_prefetch = 0 : i64, scratch_operands = 1 : i64, tpu.core_type = #tpu.core_type<tc>, window_params = [{transform_indices = @transform_0, window_bounds = array<i64: 1, 8, 18, 64>}, {transform_indices = @transform_1, window_bounds = array<i64: 1, 1, 18, 64>}, {transform_indices = @transform_2, window_bounds = array<i64: 1, 1, 18, 64>}, {pipeline_mode = #tpu.pipeline_mode<synchronous>, transform_indices = @transform_3, window_bounds = array<i64: 9, 64, 192>}, {pipeline_mode = #tpu.pipeline_mode<synchronous>, transform_indices = @transform_4, window_bounds = array<i64: 1, 192>}, {pipeline_mode = #tpu.pipeline_mode<synchronous>, transform_indices = @transform_5, window_bounds = array<i64: 16, 192>}, {pipeline_mode = #tpu.pipeline_mode<synchronous>, transform_indices = @transform_6, window_bounds = array<i64: 16, 1>}, {transform_indices = @transform_7, window_bounds = array<i64: 1, 16, 128>}]} {
    %c0 = arith.constant 0 : index
    %c0_0 = arith.constant 0 : index
    %c0_1 = arith.constant 0 : index
    %c0_2 = arith.constant 0 : index
    %0 = vector.load %arg2[%c0, %c0_0, %c0_1, %c0_2] : memref<1x8x18x64xbf16, #tpu.memory_space<vmem>>, vector<1x8x18x64xbf16>
    %1 = vector.shape_cast %0 : vector<1x8x18x64xbf16> to vector<8x18x64xbf16>
    %c0_3 = arith.constant 0 : index
    %c0_4 = arith.constant 0 : index
    %c0_5 = arith.constant 0 : index
    %2 = vector.load %arg10[%c0_3, %c0_4, %c0_5] : memref<10x18x64xbf16, #tpu.memory_space<vmem>>, vector<8x18x64xbf16>
    tpu.vector_store %arg10[%c0_3, %c0_4, %c0_5], %1 {strides = array<i32>} : memref<10x18x64xbf16, #tpu.memory_space<vmem>>, vector<8x18x64xbf16>,
    %c0_6 = arith.constant 0 : index
    %c0_7 = arith.constant 0 : index
    %c0_8 = arith.constant 0 : index
    %c0_9 = arith.constant 0 : index
    %3 = vector.load %arg3[%c0_6, %c0_7, %c0_8, %c0_9] : memref<1x1x18x64xbf16, #tpu.memory_space<vmem>>, vector<1x1x18x64xbf16>
    %4 = vector.shape_cast %3 : vector<1x1x18x64xbf16> to vector<18x64xbf16>
    %c8 = arith.constant 8 : index
    %c0_10 = arith.constant 0 : index
    %c0_11 = arith.constant 0 : index
    %5 = vector.load %arg10[%c8, %c0_10, %c0_11] : memref<10x18x64xbf16, #tpu.memory_space<vmem>>, vector<1x18x64xbf16>
    %6 = vector.shape_cast %5 : vector<1x18x64xbf16> to vector<18x64xbf16>
    %7 = vector.shape_cast %4 : vector<18x64xbf16> to vector<1x18x64xbf16>
    tpu.vector_store %arg10[%c8, %c0_10, %c0_11], %7 {strides = array<i32>} : memref<10x18x64xbf16, #tpu.memory_space<vmem>>, vector<1x18x64xbf16>,
    %c0_12 = arith.constant 0 : index
    %c0_13 = arith.constant 0 : index
    %c0_14 = arith.constant 0 : index
    %c0_15 = arith.constant 0 : index
    %8 = vector.load %arg4[%c0_12, %c0_13, %c0_14, %c0_15] : memref<1x1x18x64xbf16, #tpu.memory_space<vmem>>, vector<1x1x18x64xbf16>
    %9 = vector.shape_cast %8 : vector<1x1x18x64xbf16> to vector<18x64xbf16>
    %c9 = arith.constant 9 : index
    %c0_16 = arith.constant 0 : index
    %c0_17 = arith.constant 0 : index
    %10 = vector.load %arg10[%c9, %c0_16, %c0_17] : memref<10x18x64xbf16, #tpu.memory_space<vmem>>, vector<1x18x64xbf16>
    %11 = vector.shape_cast %10 : vector<1x18x64xbf16> to vector<18x64xbf16>
    %12 = vector.shape_cast %9 : vector<18x64xbf16> to vector<1x18x64xbf16>
    tpu.vector_store %arg10[%c9, %c0_16, %c0_17], %12 {strides = array<i32>} : memref<10x18x64xbf16, #tpu.memory_space<vmem>>, vector<1x18x64xbf16>,
    %cst = arith.constant 0.000000e+00 : f32
    %13 = vector.broadcast %cst : f32 to vector<128x192xf32>
    %c0_18 = arith.constant 0 : index
    %c0_19 = arith.constant 0 : index
    %c0_20 = arith.constant 0 : index
    %14 = vector.load %arg10[%c0_18, %c0_19, %c0_20] : memref<10x18x64xbf16, #tpu.memory_space<vmem>>, vector<8x16x64xbf16>
    %15 = vector.shape_cast %14 : vector<8x16x64xbf16> to vector<128x64xbf16>
    %c0_21 = arith.constant 0 : index
    %c0_22 = arith.constant 0 : index
    %c0_23 = arith.constant 0 : index
    %16 = vector.load %arg5[%c0_21, %c0_22, %c0_23] : memref<9x64x192xbf16, #tpu.memory_space<vmem>>, vector<1x64x192xbf16>
    %17 = vector.shape_cast %16 : vector<1x64x192xbf16> to vector<64x192xbf16>
    %cst_24 = arith.constant dense<0.000000e+00> : vector<128x192xf32>
    %18 = tpu.matmul %15, %17, %cst_24 {dimension_numbers = #tpu.dot_dimension_numbers<[1], [0], [0], [1], [0, 0, 1, 1], [], []>} : vector<128x64xbf16>, vector<64x192xbf16>, vector<128x192xf32> -> vector<128x192xf32>
    %19 = arith.addf %13, %18 : vector<128x192xf32>
    %c0_25 = arith.constant 0 : index
    %c1 = arith.constant 1 : index
    %c0_26 = arith.constant 0 : index
    %20 = vector.load %arg10[%c0_25, %c1, %c0_26] : memref<10x18x64xbf16, #tpu.memory_space<vmem>>, vector<8x16x64xbf16>
    %21 = vector.shape_cast %20 : vector<8x16x64xbf16> to vector<128x64xbf16>
    %c1_27 = arith.constant 1 : index
    %c0_28 = arith.constant 0 : index
    %c0_29 = arith.constant 0 : index
    %22 = vector.load %arg5[%c1_27, %c0_28, %c0_29] : memref<9x64x192xbf16, #tpu.memory_space<vmem>>, vector<1x64x192xbf16>
    %23 = vector.shape_cast %22 : vector<1x64x192xbf16> to vector<64x192xbf16>
    %cst_30 = arith.constant dense<0.000000e+00> : vector<128x192xf32>
    %24 = tpu.matmul %21, %23, %cst_30 {dimension_numbers = #tpu.dot_dimension_numbers<[1], [0], [0], [1], [0, 0, 1, 1], [], []>} : vector<128x64xbf16>, vector<64x192xbf16>, vector<128x192xf32> -> vector<128x192xf32>
    %25 = arith.addf %19, %24 : vector<128x192xf32>
    %c0_31 = arith.constant 0 : index
    %c2 = arith.constant 2 : index
    %c0_32 = arith.constant 0 : index
    %26 = vector.load %arg10[%c0_31, %c2, %c0_32] : memref<10x18x64xbf16, #tpu.memory_space<vmem>>, vector<8x16x64xbf16>
    %27 = vector.shape_cast %26 : vector<8x16x64xbf16> to vector<128x64xbf16>
    %c2_33 = arith.constant 2 : index
    %c0_34 = arith.constant 0 : index
    %c0_35 = arith.constant 0 : index
    %28 = vector.load %arg5[%c2_33, %c0_34, %c0_35] : memref<9x64x192xbf16, #tpu.memory_space<vmem>>, vector<1x64x192xbf16>
    %29 = vector.shape_cast %28 : vector<1x64x192xbf16> to vector<64x192xbf16>
    %cst_36 = arith.constant dense<0.000000e+00> : vector<128x192xf32>
    %30 = tpu.matmul %27, %29, %cst_36 {dimension_numbers = #tpu.dot_dimension_numbers<[1], [0], [0], [1], [0, 0, 1, 1], [], []>} : vector<128x64xbf16>, vector<64x192xbf16>, vector<128x192xf32> -> vector<128x192xf32>
    %31 = arith.addf %25, %30 : vector<128x192xf32>
    %c1_37 = arith.constant 1 : index
    %c0_38 = arith.constant 0 : index
    %c0_39 = arith.constant 0 : index
    %32 = vector.load %arg10[%c1_37, %c0_38, %c0_39] : memref<10x18x64xbf16, #tpu.memory_space<vmem>>, vector<8x16x64xbf16>
    %33 = vector.shape_cast %32 : vector<8x16x64xbf16> to vector<128x64xbf16>
    %c3 = arith.constant 3 : index
    %c0_40 = arith.constant 0 : index
    %c0_41 = arith.constant 0 : index
    %34 = vector.load %arg5[%c3, %c0_40, %c0_41] : memref<9x64x192xbf16, #tpu.memory_space<vmem>>, vector<1x64x192xbf16>
    %35 = vector.shape_cast %34 : vector<1x64x192xbf16> to vector<64x192xbf16>
    %cst_42 = arith.constant dense<0.000000e+00> : vector<128x192xf32>
    %36 = tpu.matmul %33, %35, %cst_42 {dimension_numbers = #tpu.dot_dimension_numbers<[1], [0], [0], [1], [0, 0, 1, 1], [], []>} : vector<128x64xbf16>, vector<64x192xbf16>, vector<128x192xf32> -> vector<128x192xf32>
    %37 = arith.addf %31, %36 : vector<128x192xf32>
    %c1_43 = arith.constant 1 : index
    %c1_44 = arith.constant 1 : index
    %c0_45 = arith.constant 0 : index
    %38 = vector.load %arg10[%c1_43, %c1_44, %c0_45] : memref<10x18x64xbf16, #tpu.memory_space<vmem>>, vector<8x16x64xbf16>
    %39 = vector.shape_cast %38 : vector<8x16x64xbf16> to vector<128x64xbf16>
    %c4 = arith.constant 4 : index
    %c0_46 = arith.constant 0 : index
    %c0_47 = arith.constant 0 : index
    %40 = vector.load %arg5[%c4, %c0_46, %c0_47] : memref<9x64x192xbf16, #tpu.memory_space<vmem>>, vector<1x64x192xbf16>
    %41 = vector.shape_cast %40 : vector<1x64x192xbf16> to vector<64x192xbf16>
    %cst_48 = arith.constant dense<0.000000e+00> : vector<128x192xf32>
    %42 = tpu.matmul %39, %41, %cst_48 {dimension_numbers = #tpu.dot_dimension_numbers<[1], [0], [0], [1], [0, 0, 1, 1], [], []>} : vector<128x64xbf16>, vector<64x192xbf16>, vector<128x192xf32> -> vector<128x192xf32>
    %43 = arith.addf %37, %42 : vector<128x192xf32>
    %c1_49 = arith.constant 1 : index
    %c2_50 = arith.constant 2 : index
    %c0_51 = arith.constant 0 : index
    %44 = vector.load %arg10[%c1_49, %c2_50, %c0_51] : memref<10x18x64xbf16, #tpu.memory_space<vmem>>, vector<8x16x64xbf16>
    %45 = vector.shape_cast %44 : vector<8x16x64xbf16> to vector<128x64xbf16>
    %c5 = arith.constant 5 : index
    %c0_52 = arith.constant 0 : index
    %c0_53 = arith.constant 0 : index
    %46 = vector.load %arg5[%c5, %c0_52, %c0_53] : memref<9x64x192xbf16, #tpu.memory_space<vmem>>, vector<1x64x192xbf16>
    %47 = vector.shape_cast %46 : vector<1x64x192xbf16> to vector<64x192xbf16>
    %cst_54 = arith.constant dense<0.000000e+00> : vector<128x192xf32>
    %48 = tpu.matmul %45, %47, %cst_54 {dimension_numbers = #tpu.dot_dimension_numbers<[1], [0], [0], [1], [0, 0, 1, 1], [], []>} : vector<128x64xbf16>, vector<64x192xbf16>, vector<128x192xf32> -> vector<128x192xf32>
    %49 = arith.addf %43, %48 : vector<128x192xf32>
    %c2_55 = arith.constant 2 : index
    %c0_56 = arith.constant 0 : index
    %c0_57 = arith.constant 0 : index
    %50 = vector.load %arg10[%c2_55, %c0_56, %c0_57] : memref<10x18x64xbf16, #tpu.memory_space<vmem>>, vector<8x16x64xbf16>
    %51 = vector.shape_cast %50 : vector<8x16x64xbf16> to vector<128x64xbf16>
    %c6 = arith.constant 6 : index
    %c0_58 = arith.constant 0 : index
    %c0_59 = arith.constant 0 : index
    %52 = vector.load %arg5[%c6, %c0_58, %c0_59] : memref<9x64x192xbf16, #tpu.memory_space<vmem>>, vector<1x64x192xbf16>
    %53 = vector.shape_cast %52 : vector<1x64x192xbf16> to vector<64x192xbf16>
    %cst_60 = arith.constant dense<0.000000e+00> : vector<128x192xf32>
    %54 = tpu.matmul %51, %53, %cst_60 {dimension_numbers = #tpu.dot_dimension_numbers<[1], [0], [0], [1], [0, 0, 1, 1], [], []>} : vector<128x64xbf16>, vector<64x192xbf16>, vector<128x192xf32> -> vector<128x192xf32>
    %55 = arith.addf %49, %54 : vector<128x192xf32>
    %c2_61 = arith.constant 2 : index
    %c1_62 = arith.constant 1 : index
    %c0_63 = arith.constant 0 : index
    %56 = vector.load %arg10[%c2_61, %c1_62, %c0_63] : memref<10x18x64xbf16, #tpu.memory_space<vmem>>, vector<8x16x64xbf16>
    %57 = vector.shape_cast %56 : vector<8x16x64xbf16> to vector<128x64xbf16>
    %c7 = arith.constant 7 : index
    %c0_64 = arith.constant 0 : index
    %c0_65 = arith.constant 0 : index
    %58 = vector.load %arg5[%c7, %c0_64, %c0_65] : memref<9x64x192xbf16, #tpu.memory_space<vmem>>, vector<1x64x192xbf16>
    %59 = vector.shape_cast %58 : vector<1x64x192xbf16> to vector<64x192xbf16>
    %cst_66 = arith.constant dense<0.000000e+00> : vector<128x192xf32>
    %60 = tpu.matmul %57, %59, %cst_66 {dimension_numbers = #tpu.dot_dimension_numbers<[1], [0], [0], [1], [0, 0, 1, 1], [], []>} : vector<128x64xbf16>, vector<64x192xbf16>, vector<128x192xf32> -> vector<128x192xf32>
    %61 = arith.addf %55, %60 : vector<128x192xf32>
    %c2_67 = arith.constant 2 : index
    %c2_68 = arith.constant 2 : index
    %c0_69 = arith.constant 0 : index
    %62 = vector.load %arg10[%c2_67, %c2_68, %c0_69] : memref<10x18x64xbf16, #tpu.memory_space<vmem>>, vector<8x16x64xbf16>
    %63 = vector.shape_cast %62 : vector<8x16x64xbf16> to vector<128x64xbf16>
    %c8_70 = arith.constant 8 : index
    %c0_71 = arith.constant 0 : index
    %c0_72 = arith.constant 0 : index
    %64 = vector.load %arg5[%c8_70, %c0_71, %c0_72] : memref<9x64x192xbf16, #tpu.memory_space<vmem>>, vector<1x64x192xbf16>
    %65 = vector.shape_cast %64 : vector<1x64x192xbf16> to vector<64x192xbf16>
    %cst_73 = arith.constant dense<0.000000e+00> : vector<128x192xf32>
    %66 = tpu.matmul %63, %65, %cst_73 {dimension_numbers = #tpu.dot_dimension_numbers<[1], [0], [0], [1], [0, 0, 1, 1], [], []>} : vector<128x64xbf16>, vector<64x192xbf16>, vector<128x192xf32> -> vector<128x192xf32>
    %67 = arith.addf %61, %66 : vector<128x192xf32>
    %c0_74 = arith.constant 0 : index
    %c0_75 = arith.constant 0 : index
    %68 = vector.load %arg6[%c0_74, %c0_75] : memref<1x192xf32, #tpu.memory_space<vmem>>, vector<1x192xf32>
    %69 = vector.broadcast %68 : vector<1x192xf32> to vector<128x192xf32>
    %70 = arith.addf %67, %69 : vector<128x192xf32>
    %cst_76 = arith.constant 0.000000e+00 : f32
    %71 = vector.broadcast %cst_76 : f32 to vector<128x192xf32>
    %72 = arith.maximumf %70, %71 : vector<128x192xf32>
    %c0_77 = arith.constant 0 : index
    %c0_78 = arith.constant 0 : index
    %73 = vector.load %arg7[%c0_77, %c0_78] : memref<16x192xbf16, #tpu.memory_space<vmem>>, vector<16x192xbf16>
    %74 = arith.truncf %72 : vector<128x192xf32> to vector<128x192xbf16>
    %cst_79 = arith.constant dense<0.000000e+00> : vector<16x128xf32>
    %75 = tpu.matmul %73, %74, %cst_79 {dimension_numbers = #tpu.dot_dimension_numbers<[1], [1], [0], [0], [0, 0, 1, 0], [], []>} : vector<16x192xbf16>, vector<128x192xbf16>, vector<16x128xf32> -> vector<16x128xf32>
    %c0_80 = arith.constant 0 : index
    %c0_81 = arith.constant 0 : index
    %76 = vector.load %arg8[%c0_80, %c0_81] : memref<16x1xf32, #tpu.memory_space<vmem>>, vector<16x1xf32>
    %77 = vector.broadcast %76 : vector<16x1xf32> to vector<16x128xf32>
    %78 = arith.addf %75, %77 : vector<16x128xf32>
    %c0_82 = arith.constant 0 : index
    %c0_83 = arith.constant 0 : index
    %c0_84 = arith.constant 0 : index
    %79 = vector.load %arg9[%c0_82, %c0_83, %c0_84] : memref<1x16x128xf32, #tpu.memory_space<vmem>>, vector<1x16x128xf32>
    %80 = vector.shape_cast %79 : vector<1x16x128xf32> to vector<16x128xf32>
    %81 = vector.shape_cast %78 : vector<16x128xf32> to vector<1x16x128xf32>
    tpu.vector_store %arg9[%c0_82, %c0_83, %c0_84], %81 {strides = array<i32>} : memref<1x16x128xf32, #tpu.memory_space<vmem>>, vector<1x16x128xf32>,
    return
  }
  func.func @transform_0(%arg0: i32, %arg1: i32) -> (i32, i32, i32, i32) {
    %c0_i32 = arith.constant 0 : i32
    %c0_i32_0 = arith.constant 0 : i32
    %c0_i32_1 = arith.constant 0 : i32
    return %arg0, %arg1, %c0_i32, %c0_i32_0 : i32, i32, i32, i32
  }
  func.func @transform_1(%arg0: i32, %arg1: i32) -> (i32, i32, i32, i32) {
    %c1_i32 = arith.constant 1 : i32
    %0 = arith.addi %arg1, %c1_i32 : i32
    %c8_i32 = arith.constant 8 : i32
    %1 = arith.muli %0, %c8_i32 : i32
    %c0_i32 = arith.constant 0 : i32
    %c0_i32_0 = arith.constant 0 : i32
    %c0_i32_1 = arith.constant 0 : i32
    return %arg0, %1, %c0_i32, %c0_i32_0 : i32, i32, i32, i32
  }
  func.func @transform_2(%arg0: i32, %arg1: i32) -> (i32, i32, i32, i32) {
    %c1_i32 = arith.constant 1 : i32
    %0 = arith.addi %arg1, %c1_i32 : i32
    %c8_i32 = arith.constant 8 : i32
    %1 = arith.muli %0, %c8_i32 : i32
    %c1_i32_0 = arith.constant 1 : i32
    %2 = arith.addi %1, %c1_i32_0 : i32
    %c0_i32 = arith.constant 0 : i32
    %c0_i32_1 = arith.constant 0 : i32
    %c0_i32_2 = arith.constant 0 : i32
    return %arg0, %2, %c0_i32, %c0_i32_1 : i32, i32, i32, i32
  }
  func.func @transform_3(%arg0: i32, %arg1: i32) -> (i32, i32, i32) {
    %c0_i32 = arith.constant 0 : i32
    %c0_i32_0 = arith.constant 0 : i32
    %c0_i32_1 = arith.constant 0 : i32
    %c0_i32_2 = arith.constant 0 : i32
    return %c0_i32, %c0_i32_0, %c0_i32_1 : i32, i32, i32
  }
  func.func @transform_4(%arg0: i32, %arg1: i32) -> (i32, i32) {
    %c0_i32 = arith.constant 0 : i32
    %c0_i32_0 = arith.constant 0 : i32
    %c0_i32_1 = arith.constant 0 : i32
    return %c0_i32, %c0_i32_0 : i32, i32
  }
  func.func @transform_5(%arg0: i32, %arg1: i32) -> (i32, i32) {
    %c0_i32 = arith.constant 0 : i32
    %c0_i32_0 = arith.constant 0 : i32
    %c0_i32_1 = arith.constant 0 : i32
    return %c0_i32, %c0_i32_0 : i32, i32
  }
  func.func @transform_6(%arg0: i32, %arg1: i32) -> (i32, i32) {
    %c0_i32 = arith.constant 0 : i32
    %c0_i32_0 = arith.constant 0 : i32
    %c0_i32_1 = arith.constant 0 : i32
    return %c0_i32, %c0_i32_0 : i32, i32
  }
  func.func @transform_7(%arg0: i32, %arg1: i32) -> (i32, i32, i32) {
    %c0_i32 = arith.constant 0 : i32
    %c0_i32_0 = arith.constant 0 : i32
    return %arg0, %c0_i32, %arg1 : i32, i32, i32
  }
}

</mosaic_0001>

<llo_original>
// kernel: centernet_head_forward.1
$region0: #{centernet_head_forward.1}
  #allocation0 [shape = 'u32[]', space=smem, size = 0x4, offset = 0x4, fixed_abs, tag = 'smem constant byte address 0x4 - core index']
  #allocation1 [shape = 'u32[144,128]{1,0:T(1,128)}', space=vmem, size = 0x12000, scoped, tag = 'internal scratch']
  #allocation2 [shape = 'bf16[10,18,64]{2,1,0:T(8,128)(2,1)}', space=vmem, size = 0xf000, scoped, tag = 'scratch operand']
  %s0 = inlined_call_operand.vmem [shape: bf16[2,18,18,64], index: 0, kind: input, shape index: {}, may-alias: {0,1,2}]
  %s1 = inlined_call_operand.vmem [shape: bf16[2,18,18,64], index: 1, kind: input, shape index: {}, may-alias: {0,1,2}]
  %s2 = inlined_call_operand.vmem [shape: bf16[2,18,18,64], index: 2, kind: input, shape index: {}, may-alias: {0,1,2}]
  %s3 = inlined_call_operand.vmem [shape: bf16[9,64,192], index: 3, kind: input, shape index: {}]
  %s4 = inlined_call_operand.vmem [shape: f32[1,192], index: 4, kind: input, shape index: {}]
  %s5 = inlined_call_operand.vmem [shape: bf16[16,192], index: 5, kind: input, shape index: {}]
  %s6 = inlined_call_operand.vmem [shape: f32[16,1], index: 6, kind: input, shape index: {}]
  %s7 = inlined_call_operand.vmem [shape: f32[2,16,256], index: 7, kind: output, shape index: {}]
  %s8 = sld [smem:[#allocation0]]
  $region95: #{centernet_head_forward.1} parent=0
    _
  %s10 = ssub.s32 1, %s8
  %s11 = scalar_select 0, %s10, %s8
  $region1: #{centernet_head_forward.1} parent=0
    #allocation3 [shape = 'u8[16384]{0}', space=vmem, size = 0x4000, scoped, tag = 'output window, operand 0']
    loop: start=0, step=1, limit=6
    $region2: #{centernet_head_forward.1} parent=1 // loop_pre_header
      _
    $region3: #{centernet_head_forward.1} parent=1 // loop_header
      %s13 = sphi 0, %s17
      %p14 = scmp.ge.s32.totalorder %s13, 6
      %s20 = sphi 0, %s32
      %s21 = sphi 0, %s28
      %s22 = sphi 0, %s20
      %s23 = sphi 0, %s21
      %s24 = sphi 0, %s22
      %s25 = sphi 0, %s23
      %s37 = sphi 0, %s39
      %s40 = sphi 0, %s37
      %s41 = sphi 0, %s40
      %s57 = sphi 0, %s41
      %s69 = sphi 0, %s71
      %s72 = sphi 0, %s69
      %s73 = sphi 0, %s72
      %s89 = sphi 0, %s73
      %s103 = sphi 0, %s105
      %s106 = sphi 0, %s103
      %s107 = sphi 0, %s106
      %s123 = sphi 0, %s107
      %s127 = sphi 0, %s127
      %s129 = sphi 0, %s127
      %s130 = sphi 0, %s129
      %s144 = sphi 0, %s130
      %s148 = sphi 0, %s148
      %s150 = sphi 0, %s148
      %s151 = sphi 0, %s150
      %s165 = sphi 0, %s151
      %s169 = sphi 0, %s169
      %s171 = sphi 0, %s169
      %s172 = sphi 0, %s171
      %s186 = sphi 0, %s172
      %s190 = sphi 0, %s190
      %s192 = sphi 0, %s190
      %s193 = sphi 0, %s192
      %s207 = sphi 0, %s193
      %s215 = sphi 0, %s217
      %s218 = sphi 0, %s215
      %s219 = sphi 0, %s218
      %s235 = sphi 0, %s219
    $region4: #{centernet_head_forward.1} parent=1 // loop_header_branch
      %16 = sbr.rel (%p14) target = $region8
    $region5: #{centernet_head_forward.1} parent=1 // loop_body
      %s18 = ssub.s32 %s13, 1
      %s19 = ssub.s32 %s13, 2
      %s26 = sadd.s32 1, %s21
      %p27 = scmp.ge.s32.totalorder %s26, 2
      %s28 = scalar_select %p27, 0, %s26
      %s29 = sadd.s32 1, %s20
      %s30 = scalar_select %p27, %s29, %s20
      %p31 = scmp.ge.s32.totalorder %s30, 2
      %s32 = scalar_select %p31, 0, %s30
      %s33 = ssub.s32 %s20, %s32
      %s34 = ssub.s32 %s21, %s28
      %s35 = sor.u32 %s33, %s34
      %p36 = scmp.eq.s32.totalorder %s35, 0
      %s38 = sadd.s32 %s37, 1
      %s39 = scalar_select %p36, %s37, %s38
      %p42 = pneg %p36
      %p43 = scmp.eq.s32.totalorder %s13, 3
      %p44 = por %p42, %p43
      %p45 = scmp.ne.s32.totalorder %s37, %s40
      %p46 = scmp.eq.s32.totalorder %s13, 0
      %p47 = por %p45, %p46
      %p48 = scmp.ne.s32.totalorder %s37, %s40
      %p49 = scmp.eq.s32.totalorder %s18, 3
      %p50 = por %p48, %p49
      %p51 = scmp.ne.s32.totalorder %s40, %s41
      %p52 = scmp.eq.s32.totalorder %s18, 0
      %p53 = por %p51, %p52
      %p54 = scmp.ne.s32.totalorder %s40, %s41
      %p55 = scmp.eq.s32.totalorder %s19, 3
      %p56 = por %p54, %p55
      %p58 = scmp.ne.s32.totalorder %s41, %s57
      %p59 = scmp.eq.s32.totalorder %s19, 0
      %p60 = por %p58, %p59
      %s61 = sadd.s32 %s21, 1
      %s62 = smul.u32 %s61, 8
      %s63 = sadd.s32 %s28, 1
      %s64 = smul.u32 %s63, 8
      %s65 = ssub.s32 %s20, %s32
      %s66 = ssub.s32 %s62, %s64
      %s67 = sor.u32 %s65, %s66
      %p68 = scmp.eq.s32.totalorder %s67, 0
      %s70 = sadd.s32 %s69, 1
      %s71 = scalar_select %p68, %s69, %s70
      %p74 = pneg %p68
      %p75 = scmp.eq.s32.totalorder %s13, 3
      %p76 = por %p74, %p75
      %p77 = scmp.ne.s32.totalorder %s69, %s72
      %p78 = scmp.eq.s32.totalorder %s13, 0
      %p79 = por %p77, %p78
      %p80 = scmp.ne.s32.totalorder %s69, %s72
      %p81 = scmp.eq.s32.totalorder %s18, 3
      %p82 = por %p80, %p81
      %p83 = scmp.ne.s32.totalorder %s72, %s73
      %p84 = scmp.eq.s32.totalorder %s18, 0
      %p85 = por %p83, %p84
      %p86 = scmp.ne.s32.totalorder %s72, %s73
      %p87 = scmp.eq.s32.totalorder %s19, 3
      %p88 = por %p86, %p87
      %p90 = scmp.ne.s32.totalorder %s73, %s89
      %p91 = scmp.eq.s32.totalorder %s19, 0
      %p92 = por %p90, %p91
      %s93 = sadd.s32 %s21, 1
      %s94 = smul.u32 %s93, 8
      %s95 = sadd.s32 %s94, 1
      %s96 = sadd.s32 %s28, 1
      %s97 = smul.u32 %s96, 8
      %s98 = sadd.s32 %s97, 1
      %s99 = ssub.s32 %s20, %s32
      %s100 = ssub.s32 %s95, %s98
      %s101 = sor.u32 %s99, %s100
      %p102 = scmp.eq.s32.totalorder %s101, 0
      %s104 = sadd.s32 %s103, 1
      %s105 = scalar_select %p102, %s103, %s104
      %p108 = pneg %p102
      %p109 = scmp.eq.s32.totalorder %s13, 3
      %p110 = por %p108, %p109
      %p111 = scmp.ne.s32.totalorder %s103, %s106
      %p112 = scmp.eq.s32.totalorder %s13, 0
      %p113 = por %p111, %p112
      %p114 = scmp.ne.s32.totalorder %s103, %s106
      %p115 = scmp.eq.s32.totalorder %s18, 3
      %p116 = por %p114, %p115
      %p117 = scmp.ne.s32.totalorder %s106, %s107
      %p118 = scmp.eq.s32.totalorder %s18, 0
      %p119 = por %p117, %p118
      %p120 = scmp.ne.s32.totalorder %s106, %s107
      %p121 = scmp.eq.s32.totalorder %s19, 3
      %p122 = por %p120, %p121
      %p124 = scmp.ne.s32.totalorder %s107, %s123
      %p125 = scmp.eq.s32.totalorder %s19, 0
      %p126 = por %p124, %p125
      %s128 = sadd.s32 %s127, 1
      %p131 = scmp.eq.s32.totalorder %s13, 3
      %p132 = scmp.ne.s32.totalorder %s127, %s129
      %p133 = scmp.eq.s32.totalorder %s13, 0
      %p134 = por %p132, %p133
      %p135 = scmp.ne.s32.totalorder %s127, %s129
      %p136 = scmp.eq.s32.totalorder %s18, 3
      %p137 = por %p135, %p136
      %p138 = scmp.ne.s32.totalorder %s129, %s130
      %p139 = scmp.eq.s32.totalorder %s18, 0
      %p140 = por %p138, %p139
      %p141 = scmp.ne.s32.totalorder %s129, %s130
      %p142 = scmp.eq.s32.totalorder %s19, 3
      %p143 = por %p141, %p142
      %p145 = scmp.ne.s32.totalorder %s130, %s144
      %p146 = scmp.eq.s32.totalorder %s19, 0
      %p147 = por %p145, %p146
      %s149 = sadd.s32 %s148, 1
      %p152 = scmp.eq.s32.totalorder %s13, 3
      %p153 = scmp.ne.s32.totalorder %s148, %s150
      %p154 = scmp.eq.s32.totalorder %s13, 0
      %p155 = por %p153, %p154
      %p156 = scmp.ne.s32.totalorder %s148, %s150
      %p157 = scmp.eq.s32.totalorder %s18, 3
      %p158 = por %p156, %p157
      %p159 = scmp.ne.s32.totalorder %s150, %s151
      %p160 = scmp.eq.s32.totalorder %s18, 0
      %p161 = por %p159, %p160
      %p162 = scmp.ne.s32.totalorder %s150, %s151
      %p163 = scmp.eq.s32.totalorder %s19, 3
      %p164 = por %p162, %p163
      %p166 = scmp.ne.s32.totalorder %s151, %s165
      %p167 = scmp.eq.s32.totalorder %s19, 0
      %p168 = por %p166, %p167
      %s170 = sadd.s32 %s169, 1
      %p173 = scmp.eq.s32.totalorder %s13, 3
      %p174 = scmp.ne.s32.totalorder %s169, %s171
      %p175 = scmp.eq.s32.totalorder %s13, 0
      %p176 = por %p174, %p175
      %p177 = scmp.ne.s32.totalorder %s169, %s171
      %p178 = scmp.eq.s32.totalorder %s18, 3
      %p179 = por %p177, %p178
      %p180 = scmp.ne.s32.totalorder %s171, %s172
      %p181 = scmp.eq.s32.totalorder %s18, 0
      %p182 = por %p180, %p181
      %p183 = scmp.ne.s32.totalorder %s171, %s172
      %p184 = scmp.eq.s32.totalorder %s19, 3
      %p185 = por %p183, %p184
      %p187 = scmp.ne.s32.totalorder %s172, %s186
      %p188 = scmp.eq.s32.totalorder %s19, 0
      %p189 = por %p187, %p188
      %s191 = sadd.s32 %s190, 1
      %p194 = scmp.eq.s32.totalorder %s13, 3
      %p195 = scmp.ne.s32.totalorder %s190, %s192
      %p196 = scmp.eq.s32.totalorder %s13, 0
      %p197 = por %p195, %p196
      %p198 = scmp.ne.s32.totalorder %s190, %s192
      %p199 = scmp.eq.s32.totalorder %s18, 3
      %p200 = por %p198, %p199
      %p201 = scmp.ne.s32.totalorder %s192, %s193
      %p202 = scmp.eq.s32.totalorder %s18, 0
      %p203 = por %p201, %p202
      %p204 = scmp.ne.s32.totalorder %s192, %s193
      %p205 = scmp.eq.s32.totalorder %s19, 3
      %p206 = por %p204, %p205
      %p208 = scmp.ne.s32.totalorder %s193, %s207
      %p209 = scmp.eq.s32.totalorder %s19, 0
      %p210 = por %p208, %p209
      %s211 = ssub.s32 %s20, %s32
      %s212 = ssub.s32 %s21, %s28
      %s213 = sor.u32 %s211, %s212
      %p214 = scmp.eq.s32.totalorder %s213, 0
      %s216 = sadd.s32 %s215, 1
      %s217 = scalar_select %p214, %s215, %s216
      %p220 = pneg %p214
      %p221 = scmp.eq.s32.totalorder %s13, 3
      %p222 = por %p220, %p221
      %p223 = scmp.ne.s32.totalorder %s215, %s218
      %p224 = scmp.eq.s32.totalorder %s13, 0
      %p225 = por %p223, %p224
      %p226 = scmp.ne.s32.totalorder %s215, %s218
      %p227 = scmp.eq.s32.totalorder %s18, 3
      %p228 = por %p226, %p227
      %p229 = scmp.ne.s32.totalorder %s218, %s219
      %p230 = scmp.eq.s32.totalorder %s18, 0
      %p231 = por %p229, %p230
      %p232 = scmp.ne.s32.totalorder %s218, %s219
      %p233 = scmp.eq.s32.totalorder %s19, 3
      %p234 = por %p232, %p233
      %p236 = scmp.ne.s32.totalorder %s219, %s235
      %p237 = scmp.eq.s32.totalorder %s19, 0
      %p238 = por %p236, %p237
      %p239 = scmp.le.s32.totalorder 1, %s13
      %p240 = scmp.lt.s32.totalorder %s13, 5
      %p241 = pnand %p239, %p240
      %p242 = pneg %p241
      // Predicated region
      $region9: #{centernet_head_forward.1} parent=5 // pred_check
        _
      $region10: #{centernet_head_forward.1} parent=5 // pred_check_branch
        %244 = sbr.rel (%p241) target = $region12
      $region11: #{centernet_head_forward.1} parent=5 // pred_region
        %s245 = ssub.s32 %s13, 1
        // Predicated region
        $region13: #{centernet_head_forward.1} parent=11 // pred_check
          %p246 = pneg %p140
        $region14: #{centernet_head_forward.1} parent=11 // pred_check_branch
          %248 = sbr.rel (%p246) target = $region16
        $region15: #{centernet_head_forward.1} parent=11 // pred_region
          _
        $region16: #{centernet_head_forward.1} parent=11 // pred_fallthru
          _
        // Predicated region
        $region17: #{centernet_head_forward.1} parent=11 // pred_check
          %p249 = pneg %p161
        $region18: #{centernet_head_forward.1} parent=11 // pred_check_branch
          %251 = sbr.rel (%p249) target = $region20
        $region19: #{centernet_head_forward.1} parent=11 // pred_region
          _
        $region20: #{centernet_head_forward.1} parent=11 // pred_fallthru
          _
        // Predicated region
        $region21: #{centernet_head_forward.1} parent=11 // pred_check
          %p252 = pneg %p182
        $region22: #{centernet_head_forward.1} parent=11 // pred_check_branch
          %254 = sbr.rel (%p252) target = $region24
        $region23: #{centernet_head_forward.1} parent=11 // pred_region
          _
        $region24: #{centernet_head_forward.1} parent=11 // pred_fallthru
          _
        // Predicated region
        $region25: #{centernet_head_forward.1} parent=11 // pred_check
          %p255 = pneg %p203
        $region26: #{centernet_head_forward.1} parent=11 // pred_check_branch
          %257 = sbr.rel (%p255) target = $region28
        $region27: #{centernet_head_forward.1} parent=11 // pred_region
          _
        $region28: #{centernet_head_forward.1} parent=11 // pred_fallthru
          _
      $region12: #{centernet_head_forward.1} parent=5 // pred_fallthru
        _
      %p258 = scmp.lt.s32.totalorder %s13, 4
      // Predicated region
      $region29: #{centernet_head_forward.1} parent=5 // pred_check
        %p259 = pneg %p258
      $region30: #{centernet_head_forward.1} parent=5 // pred_check_branch
        %261 = sbr.rel (%p259) target = $region32
      $region31: #{centernet_head_forward.1} parent=5 // pred_region
        // Predicated region
        $region33: #{centernet_head_forward.1} parent=31 // pred_check
          %p262 = pneg %p47
        $region34: #{centernet_head_forward.1} parent=31 // pred_check_branch
          %264 = sbr.rel (%p262) target = $region36
        $region35: #{centernet_head_forward.1} parent=31 // pred_region
          %s265 = smul.u32 8, %s21
          %s266 = ssub.s32 18, %s265
          %p267 = scmp.lt.s32.totalorder %s266, 8
          %s268 = scalar_select %p267, %s266, 8
          %s269 = smul.u32 64, %s268
          %s270 = smul.u32 %s269, 3
          %p271 = scmp.lt.s32.totalorder %s20, 1
          %s272 = scalar_select %p271, %s20, 1
          %p273 = scmp.lt.s32.totalorder %s265, 17
          %s274 = scalar_select %p273, %s265, 17
          %s275 = smul.addr %s274, 3
          %s276 = smul.addr %s272, 54
          %s277 = sadd.s32 %s275, %s276
          %s278 = smul.addr %s277, 4
          %s279 = scalar_lea.vmem %s0, %s278
          %s280 = smul.u32 8, %s21
          %s281 = ssub.s32 18, %s280
          %p282 = scmp.lt.s32.totalorder %s281, 8
          %s283 = scalar_select %p282, %s281, 8
          %s284 = smul.u32 64, %s283
          %s285 = smul.u32 %s284, 3
        $region36: #{centernet_head_forward.1} parent=31 // pred_fallthru
          _
        // Predicated region
        $region37: #{centernet_head_forward.1} parent=31 // pred_check
          %p286 = pneg %p79
        $region38: #{centernet_head_forward.1} parent=31 // pred_check_branch
          %288 = sbr.rel (%p286) target = $region40
        $region39: #{centernet_head_forward.1} parent=31 // pred_region
          %s289 = sadd.s32 %s21, 1
          %s290 = smul.u32 %s289, 8
          %p291 = scmp.lt.s32.totalorder %s20, 1
          %s292 = scalar_select %p291, %s20, 1
          %p293 = scmp.lt.s32.totalorder %s290, 17
          %s294 = scalar_select %p293, %s290, 17
          %s295 = smul.addr %s294, 3
          %s296 = smul.addr %s292, 54
          %s297 = sadd.s32 %s295, %s296
          %s298 = smul.addr %s297, 4
          %s299 = scalar_lea.vmem %s1, %s298
          %s300 = sadd.s32 %s21, 1
          %s301 = smul.u32 %s300, 8
        $region40: #{centernet_head_forward.1} parent=31 // pred_fallthru
          _
        // Predicated region
        $region41: #{centernet_head_forward.1} parent=31 // pred_check
          %p302 = pneg %p113
        $region42: #{centernet_head_forward.1} parent=31 // pred_check_branch
          %304 = sbr.rel (%p302) target = $region44
        $region43: #{centernet_head_forward.1} parent=31 // pred_region
          %s305 = sadd.s32 %s21, 1
          %s306 = smul.u32 %s305, 8
          %s307 = sadd.s32 %s306, 1
          %p308 = scmp.lt.s32.totalorder %s20, 1
          %s309 = scalar_select %p308, %s20, 1
          %p310 = scmp.lt.s32.totalorder %s307, 17
          %s311 = scalar_select %p310, %s307, 17
          %s312 = smul.addr %s311, 3
          %s313 = smul.addr %s309, 54
          %s314 = sadd.s32 %s312, %s313
          %s315 = smul.addr %s314, 4
          %s316 = scalar_lea.vmem %s2, %s315
          %s317 = sadd.s32 %s21, 1
          %s318 = smul.u32 %s317, 8
          %s319 = sadd.s32 %s318, 1
        $region44: #{centernet_head_forward.1} parent=31 // pred_fallthru
          _
      $region32: #{centernet_head_forward.1} parent=5 // pred_fallthru
        _
      %p320 = scmp.le.s32.totalorder 1, %s13
      %p321 = scmp.lt.s32.totalorder %s13, 5
      %p322 = pnand %p320, %p321
      %p323 = pneg %p322
      // Predicated region
      $region45: #{centernet_head_forward.1} parent=5 // pred_check
        _
      $region46: #{centernet_head_forward.1} parent=5 // pred_check_branch
        %325 = sbr.rel (%p322) target = $region48
      $region47: #{centernet_head_forward.1} parent=5 // pred_region
        %s326 = ssub.s32 %s13, 1
        %s327 = smul.u32 8, %s23
        %s328 = ssub.s32 18, %s327
        %p329 = scmp.lt.s32.totalorder %s328, 8
        %s330 = scalar_select %p329, %s328, 8
        %s331 = smul.u32 64, %s330
        %s332 = smul.u32 %s331, 3
        %p333 = scmp.lt.s32.totalorder %s22, 1
        %s334 = scalar_select %p333, %s22, 1
        %p335 = scmp.lt.s32.totalorder %s327, 17
        %s336 = scalar_select %p335, %s327, 17
        %s337 = smul.addr %s336, 3
        %s338 = smul.addr %s334, 54
        %s339 = sadd.s32 %s337, %s338
        %s340 = smul.addr %s339, 4
        %s341 = scalar_lea.vmem %s0, %s340
        %p342 = pneg %p53
        %p343 = pneg %p50
        %s344 = sadd.s32 %s23, 1
        %s345 = smul.u32 %s344, 8
        %p346 = scmp.lt.s32.totalorder %s22, 1
        %s347 = scalar_select %p346, %s22, 1
        %p348 = scmp.lt.s32.totalorder %s345, 17
        %s349 = scalar_select %p348, %s345, 17
        %s350 = smul.addr %s349, 3
        %s351 = smul.addr %s347, 54
        %s352 = sadd.s32 %s350, %s351
        %s353 = smul.addr %s352, 4
        %s354 = scalar_lea.vmem %s1, %s353
        %p355 = pneg %p85
        %p356 = pneg %p82
        %s357 = sadd.s32 %s23, 1
        %s358 = smul.u32 %s357, 8
        %s359 = sadd.s32 %s358, 1
        %p360 = scmp.lt.s32.totalorder %s22, 1
        %s361 = scalar_select %p360, %s22, 1
        %p362 = scmp.lt.s32.totalorder %s359, 17
        %s363 = scalar_select %p362, %s359, 17
        %s364 = smul.addr %s363, 3
        %s365 = smul.addr %s361, 54
        %s366 = sadd.s32 %s364, %s365
        %s367 = smul.addr %s366, 4
        %s368 = scalar_lea.vmem %s2, %s367
        %p369 = pneg %p119
        %p370 = pneg %p116
        %p371 = pneg %p140
        %p372 = pneg %p137
        %p373 = pneg %p161
        %p374 = pneg %p158
        %p375 = pneg %p182
        %p376 = pneg %p179
        %p377 = pneg %p203
        %p378 = pneg %p200
        %p379 = pneg %p231
        %p380 = pneg %p228
        %s381 = sand.u32 %s218, 1
        %s382 = sand.u32 %s218, 1
        %s383 = smul.addr %s382, 16
        %s384 = scalar_lea.vmem [#allocation3], %s383
        %s385 = smul.u32 8, %s23
        %s386 = ssub.s32 18, %s385
        %p387 = scmp.lt.s32.totalorder %s386, 8
        %s388 = scalar_select %p387, %s386, 8
        %s389 = smul.u32 64, %s388
        %s390 = smul.u32 %s389, 3
        %p391 = scmp.lt.s32.totalorder %s22, 1
        %s392 = scalar_select %p391, %s22, 1
        %p393 = scmp.lt.s32.totalorder %s385, 17
        %s394 = scalar_select %p393, %s385, 17
        %s395 = smul.addr %s394, 3
        %s396 = smul.addr %s392, 54
        %s397 = sadd.s32 %s395, %s396
        %s398 = smul.addr %s397, 4
        %s399 = scalar_lea.vmem %s0, %s398
        %s400 = smul.u32 8, %s23
        %s401 = ssub.s32 18, %s400
        %p402 = scmp.lt.s32.totalorder %s401, 8
        %s403 = scalar_select %p402, %s401, 8
        %s404 = smul.u32 64, %s403
        %s405 = smul.u32 %s404, 3
        %s406 = sadd.s32 %s23, 1
        %s407 = smul.u32 %s406, 8
        %p408 = scmp.lt.s32.totalorder %s22, 1
        %s409 = scalar_select %p408, %s22, 1
        %p410 = scmp.lt.s32.totalorder %s407, 17
        %s411 = scalar_select %p410, %s407, 17
        %s412 = smul.addr %s411, 3
        %s413 = smul.addr %s409, 54
        %s414 = sadd.s32 %s412, %s413
        %s415 = smul.addr %s414, 4
        %s416 = scalar_lea.vmem %s1, %s415
        %s417 = sadd.s32 %s23, 1
        %s418 = smul.u32 %s417, 8
        %s419 = sadd.s32 %s23, 1
        %s420 = smul.u32 %s419, 8
        %s421 = sadd.s32 %s420, 1
        %p422 = scmp.lt.s32.totalorder %s22, 1
        %s423 = scalar_select %p422, %s22, 1
        %p424 = scmp.lt.s32.totalorder %s421, 17
        %s425 = scalar_select %p424, %s421, 17
        %s426 = smul.addr %s425, 3
        %s427 = smul.addr %s423, 54
        %s428 = sadd.s32 %s426, %s427
        %s429 = smul.addr %s428, 4
        %s430 = scalar_lea.vmem %s2, %s429
        %s431 = sadd.s32 %s23, 1
        %s432 = smul.u32 %s431, 8
        %s433 = sadd.s32 %s432, 1
        %v435 = vld [vmem:[%s399] sm:$0xf]
        %v436 = vld [vmem:[%s399 + $0x4] sm:$0xf]
        %v437 = vld [vmem:[%s399 + $0x8] sm:$0x1]
        %v438 = vld [vmem:[%s399 + $0xc] sm:$0xf]
        %v439 = vld [vmem:[%s399 + $0x10] sm:$0xf]
        %v440 = vld [vmem:[%s399 + $0x14] sm:$0x1]
        %v441 = vld [vmem:[%s399 + $0x18] sm:$0xf]
        %v442 = vld [vmem:[%s399 + $0x1c] sm:$0xf]
        %v443 = vld [vmem:[%s399 + $0x20] sm:$0x1]
        %v444 = vld [vmem:[%s399 + $0x24] sm:$0xf]
        %v445 = vld [vmem:[%s399 + $0x28] sm:$0xf]
        %v446 = vld [vmem:[%s399 + $0x2c] sm:$0x1]
        %v447 = vld [vmem:[%s399 + $0x30] sm:$0xf]
        %v448 = vld [vmem:[%s399 + $0x34] sm:$0xf]
        %v449 = vld [vmem:[%s399 + $0x38] sm:$0x1]
        %v450 = vld [vmem:[%s399 + $0x3c] sm:$0xf]
        %v451 = vld [vmem:[%s399 + $0x40] sm:$0xf]
        %v452 = vld [vmem:[%s399 + $0x44] sm:$0x1]
        %v453 = vld [vmem:[%s399 + $0x48] sm:$0xf]
        %v454 = vld [vmem:[%s399 + $0x4c] sm:$0xf]
        %v455 = vld [vmem:[%s399 + $0x50] sm:$0x1]
        %v456 = vld [vmem:[%s399 + $0x54] sm:$0xf]
        %v457 = vld [vmem:[%s399 + $0x58] sm:$0xf]
        %v458 = vld [vmem:[%s399 + $0x5c] sm:$0x1]
        %vm459 = vcmask 519168
        %460 = vst.msk [vmem:[#allocation2] sm:$0xf] %vm459, %v435
        %461 = vst.msk [vmem:[#allocation2 + $0x4] sm:$0xf] %vm459, %v436
        %vm462 = vcmask 516096
        %463 = vst.msk [vmem:[#allocation2 + $0x8] sm:$0x1] %vm462, %v437
        %464 = vst.msk [vmem:[#allocation2 + $0xc] sm:$0xf] %vm459, %v438
        %465 = vst.msk [vmem:[#allocation2 + $0x10] sm:$0xf] %vm459, %v439
        %466 = vst.msk [vmem:[#allocation2 + $0x14] sm:$0x1] %vm462, %v440
        %467 = vst.msk [vmem:[#allocation2 + $0x18] sm:$0xf] %vm459, %v441
        %468 = vst.msk [vmem:[#allocation2 + $0x1c] sm:$0xf] %vm459, %v442
        %469 = vst.msk [vmem:[#allocation2 + $0x20] sm:$0x1] %vm462, %v443
        %470 = vst.msk [vmem:[#allocation2 + $0x24] sm:$0xf] %vm459, %v444
        %471 = vst.msk [vmem:[#allocation2 + $0x28] sm:$0xf] %vm459, %v445
        %472 = vst.msk [vmem:[#allocation2 + $0x2c] sm:$0x1] %vm462, %v446
        %473 = vst.msk [vmem:[#allocation2 + $0x30] sm:$0xf] %vm459, %v447
        %474 = vst.msk [vmem:[#allocation2 + $0x34] sm:$0xf] %vm459, %v448
        %475 = vst.msk [vmem:[#allocation2 + $0x38] sm:$0x1] %vm462, %v449
        %476 = vst.msk [vmem:[#allocation2 + $0x3c] sm:$0xf] %vm459, %v450
        %477 = vst.msk [vmem:[#allocation2 + $0x40] sm:$0xf] %vm459, %v451
        %478 = vst.msk [vmem:[#allocation2 + $0x44] sm:$0x1] %vm462, %v452
        %479 = vst.msk [vmem:[#allocation2 + $0x48] sm:$0xf] %vm459, %v453
        %480 = vst.msk [vmem:[#allocation2 + $0x4c] sm:$0xf] %vm459, %v454
        %481 = vst.msk [vmem:[#allocation2 + $0x50] sm:$0x1] %vm462, %v455
        %482 = vst.msk [vmem:[#allocation2 + $0x54] sm:$0xf] %vm459, %v456
        %483 = vst.msk [vmem:[#allocation2 + $0x58] sm:$0xf] %vm459, %v457
        %484 = vst.msk [vmem:[#allocation2 + $0x5c] sm:$0x1] %vm462, %v458
        %v485 = vld [vmem:[%s416] sm:$0xf]
        %v486 = vld [vmem:[%s416 + $0x4] sm:$0xf]
        %v487 = vld [vmem:[%s416 + $0x8] sm:$0x1]
        %s488 = scalar_lea.vmem [#allocation2], 96
        %489 = vst.msk [vmem:[%s488] sm:$0xf] %vm459, %v485
        %490 = vst.msk [vmem:[%s488 + $0x4] sm:$0xf] %vm459, %v486
        %491 = vst.msk [vmem:[%s488 + $0x8] sm:$0x1] %vm462, %v487
        %v492 = vld [vmem:[%s430] sm:$0xf]
        %v493 = vld [vmem:[%s430 + $0x4] sm:$0xf]
        %v494 = vld [vmem:[%s430 + $0x8] sm:$0x1]
        %s495 = scalar_lea.vmem [#allocation2], 108
        %496 = vst.msk [vmem:[%s495] sm:$0xf] %vm459, %v492
        %497 = vst.msk [vmem:[%s495 + $0x4] sm:$0xf] %vm459, %v493
        %498 = vst.msk [vmem:[%s495 + $0x8] sm:$0x1] %vm462, %v494
        %v499 = vld [vmem:[#allocation2] sm:$0xf]
        %v500 = vld [vmem:[#allocation2 + $0x4] sm:$0xf]
        %v501 = vld [vmem:[#allocation2 + $0xc] sm:$0xf]
        %v502 = vld [vmem:[#allocation2 + $0x10] sm:$0xf]
        %v503 = vld [vmem:[#allocation2 + $0x18] sm:$0xf]
        %v504 = vld [vmem:[#allocation2 + $0x1c] sm:$0xf]
        %v505 = vld [vmem:[#allocation2 + $0x24] sm:$0xf]
        %v506 = vld [vmem:[#allocation2 + $0x28] sm:$0xf]
        %v507 = vld [vmem:[#allocation2 + $0x30] sm:$0xf]
        %v508 = vld [vmem:[#allocation2 + $0x34] sm:$0xf]
        %v509 = vld [vmem:[#allocation2 + $0x3c] sm:$0xf]
        %v510 = vld [vmem:[#allocation2 + $0x40] sm:$0xf]
        %v511 = vld [vmem:[#allocation2 + $0x48] sm:$0xf]
        %v512 = vld [vmem:[#allocation2 + $0x4c] sm:$0xf]
        %v513 = vld [vmem:[#allocation2 + $0x54] sm:$0xf]
        %v514 = vld [vmem:[#allocation2 + $0x58] sm:$0xf]
        %v515 = vld [vmem:[%s3] sm:$0xff]
        %v516 = vld [vmem:[%s3 + $0x8] sm:$0xff]
        %v517 = vld [vmem:[%s3 + $0x10] sm:$0xff]
        %v518 = vld [vmem:[%s3 + $0x18] sm:$0xff]
        %v519 = vld [vmem:[%s3 + $0x20] sm:$0xff]
        %v520 = vld [vmem:[%s3 + $0x28] sm:$0xff]
        %v521 = vld [vmem:[%s3 + $0x30] sm:$0xff]
        %v522 = vld [vmem:[%s3 + $0x38] sm:$0xff]
        %v523 = vld [vmem:[#allocation2 + $0x8] sm:$0x1]
        %v524 = vld [vmem:[#allocation2 + $0x14] sm:$0x1]
        %v525 = vld [vmem:[#allocation2 + $0x20] sm:$0x1]
        %v526 = vld [vmem:[#allocation2 + $0x2c] sm:$0x1]
        %v527 = vld [vmem:[#allocation2 + $0x38] sm:$0x1]
        %v528 = vld [vmem:[#allocation2 + $0x44] sm:$0x1]
        %v529 = vld [vmem:[#allocation2 + $0x50] sm:$0x1]
        %v530 = vld [vmem:[#allocation2 + $0x5c] sm:$0x1]
        %vm531 = vsmask.f32 3328
        %vm532 = vsmask.f32 7440
        %vm533 = vmor %vm531, %vm532
        %v535 = vshrl.u32 %v499, 16
        %v537 = vrot.slane %v535, 4
        %v538 = vshll.u32 %v499, 16
        %v540 = vrot.slane %v538, 5
        %v541 = vor.u32 %v537, %v540
        %v542 = vrot.slane %v541, 4
        %v544 = vshll.u32 %v500, 16
        %v546 = vrot.slane %v544, 5
        %v547 = vsel %vm533, %v542, %v546
        %v548 = vshrl.u32 %v500, 16
        %v550 = vrot.slane %v548, 4
        %v551 = vor.u32 %v550, %v546
        %v552 = vrot.slane %v551, 4
        %v554 = vshll.u32 %v523, 16
        %v556 = vrot.slane %v554, 5
        %v557 = vsel %vm533, %v552, %v556
        %v559 = vshrl.u32 %v501, 16
        %v561 = vrot.slane %v559, 4
        %v562 = vshll.u32 %v501, 16
        %v564 = vrot.slane %v562, 5
        %v565 = vor.u32 %v561, %v564
        %v566 = vrot.slane %v565, 4
        %v568 = vshll.u32 %v502, 16
        %v570 = vrot.slane %v568, 5
        %v571 = vsel %vm533, %v566, %v570
        %v572 = vshrl.u32 %v502, 16
        %v574 = vrot.slane %v572, 4
        %v575 = vor.u32 %v574, %v570
        %v576 = vrot.slane %v575, 4
        %v578 = vshll.u32 %v524, 16
        %v580 = vrot.slane %v578, 5
        %v581 = vsel %vm533, %v576, %v580
        %v583 = vshrl.u32 %v503, 16
        %v585 = vrot.slane %v583, 4
        %v586 = vshll.u32 %v503, 16
        %v588 = vrot.slane %v586, 5
        %v589 = vor.u32 %v585, %v588
        %v590 = vrot.slane %v589, 4
        %v592 = vshll.u32 %v504, 16
        %v594 = vrot.slane %v592, 5
        %v595 = vsel %vm533, %v590, %v594
        %v596 = vshrl.u32 %v504, 16
        %v598 = vrot.slane %v596, 4
        %v599 = vor.u32 %v598, %v594
        %v600 = vrot.slane %v599, 4
        %v602 = vshll.u32 %v525, 16
        %v604 = vrot.slane %v602, 5
        %v605 = vsel %vm533, %v600, %v604
        %v607 = vshrl.u32 %v505, 16
        %v609 = vrot.slane %v607, 4
        %v610 = vshll.u32 %v505, 16
        %v612 = vrot.slane %v610, 5
        %v613 = vor.u32 %v609, %v612
        %v614 = vrot.slane %v613, 4
        %v616 = vshll.u32 %v506, 16
        %v618 = vrot.slane %v616, 5
        %v619 = vsel %vm533, %v614, %v618
        %v620 = vshrl.u32 %v506, 16
        %v622 = vrot.slane %v620, 4
        %v623 = vor.u32 %v622, %v618
        %v624 = vrot.slane %v623, 4
        %v626 = vshll.u32 %v526, 16
        %v628 = vrot.slane %v626, 5
        %v629 = vsel %vm533, %v624, %v628
        %v631 = vshrl.u32 %v507, 16
        %v633 = vrot.slane %v631, 4
        %v634 = vshll.u32 %v507, 16
        %v636 = vrot.slane %v634, 5
        %v637 = vor.u32 %v633, %v636
        %v638 = vrot.slane %v637, 4
        %v640 = vshll.u32 %v508, 16
        %v642 = vrot.slane %v640, 5
        %v643 = vsel %vm533, %v638, %v642
        %v644 = vshrl.u32 %v508, 16
        %v646 = vrot.slane %v644, 4
        %v647 = vor.u32 %v646, %v642
        %v648 = vrot.slane %v647, 4
        %v650 = vshll.u32 %v527, 16
        %v652 = vrot.slane %v650, 5
        %v653 = vsel %vm533, %v648, %v652
        %v655 = vshrl.u32 %v509, 16
        %v657 = vrot.slane %v655, 4
        %v658 = vshll.u32 %v509, 16
        %v660 = vrot.slane %v658, 5
        %v661 = vor.u32 %v657, %v660
        %v662 = vrot.slane %v661, 4
        %v664 = vshll.u32 %v510, 16
        %v666 = vrot.slane %v664, 5
        %v667 = vsel %vm533, %v662, %v666
        %v668 = vshrl.u32 %v510, 16
        %v670 = vrot.slane %v668, 4
        %v671 = vor.u32 %v670, %v666
        %v672 = vrot.slane %v671, 4
        %v674 = vshll.u32 %v528, 16
        %v676 = vrot.slane %v674, 5
        %v677 = vsel %vm533, %v672, %v676
        %v679 = vshrl.u32 %v511, 16
        %v681 = vrot.slane %v679, 4
        %v682 = vshll.u32 %v511, 16
        %v684 = vrot.slane %v682, 5
        %v685 = vor.u32 %v681, %v684
        %v686 = vrot.slane %v685, 4
        %v688 = vshll.u32 %v512, 16
        %v690 = vrot.slane %v688, 5
        %v691 = vsel %vm533, %v686, %v690
        %v692 = vshrl.u32 %v512, 16
        %v694 = vrot.slane %v692, 4
        %v695 = vor.u32 %v694, %v690
        %v696 = vrot.slane %v695, 4
        %v698 = vshll.u32 %v529, 16
        %v700 = vrot.slane %v698, 5
        %v701 = vsel %vm533, %v696, %v700
        %v703 = vshrl.u32 %v513, 16
        %v705 = vrot.slane %v703, 4
        %v706 = vshll.u32 %v513, 16
        %v708 = vrot.slane %v706, 5
        %v709 = vor.u32 %v705, %v708
        %v710 = vrot.slane %v709, 4
        %v712 = vshll.u32 %v514, 16
        %v714 = vrot.slane %v712, 5
        %v715 = vsel %vm533, %v710, %v714
        %v716 = vshrl.u32 %v514, 16
        %v718 = vrot.slane %v716, 4
        %v719 = vor.u32 %v718, %v714
        %v720 = vrot.slane %v719, 4
        %v722 = vshll.u32 %v530, 16
        %v724 = vrot.slane %v722, 5
        %v725 = vsel %vm533, %v720, %v724
        %s726 = scalar_lea.vmem %s3, 64
        %v727 = vld [vmem:[%s726] sm:$0xff]
        %v728 = vld [vmem:[%s726 + $0x8] sm:$0xff]
        %v729 = vld [vmem:[%s726 + $0x10] sm:$0xff]
        %v730 = vld [vmem:[%s726 + $0x18] sm:$0xff]
        %v731 = vld [vmem:[%s726 + $0x20] sm:$0xff]
        %v732 = vld [vmem:[%s726 + $0x28] sm:$0xff]
        %v733 = vld [vmem:[%s726 + $0x30] sm:$0xff]
        %v734 = vld [vmem:[%s726 + $0x38] sm:$0xff]
        %v735 = vunpack.c.l.b16 %v547
        %v736 = vunpack.c.l.b16 %v557
        %v737 = vunpack.c.l.b16 %v571
        %v738 = vunpack.c.l.b16 %v581
        %v739 = vunpack.c.l.b16 %v595
        %v740 = vunpack.c.l.b16 %v605
        %v741 = vunpack.c.l.b16 %v619
        %v742 = vunpack.c.l.b16 %v629
        %v743 = vunpack.c.l.b16 %v643
        %v744 = vunpack.c.l.b16 %v653
        %v745 = vunpack.c.l.b16 %v667
        %v746 = vunpack.c.l.b16 %v677
        %v747 = vunpack.c.l.b16 %v691
        %v748 = vunpack.c.l.b16 %v701
        %v749 = vunpack.c.l.b16 %v715
        %v750 = vunpack.c.l.b16 %v725
        %v751 = vpack.c.b16 %v736, %v735
        %v752 = vpack.c.b16 %v738, %v737
        %v753 = vpack.c.b16 %v740, %v739
        %v754 = vpack.c.b16 %v742, %v741
        %v755 = vpack.c.b16 %v744, %v743
        %v756 = vpack.c.b16 %v746, %v745
        %v757 = vpack.c.b16 %v748, %v747
        %v758 = vpack.c.b16 %v750, %v749
        %v767 = vunpack.c.l.b16 %v727
        %v768 = vunpack.c.h.b16 %v727
        %v769 = vunpack.c.l.b16 %v728
        %v770 = vunpack.c.h.b16 %v728
        %v771 = vunpack.c.l.b16 %v729
        %v772 = vunpack.c.h.b16 %v729
        %v773 = vunpack.c.l.b16 %v730
        %v774 = vunpack.c.h.b16 %v730
        %v775 = vunpack.c.l.b16 %v731
        %v776 = vunpack.c.h.b16 %v731
        %v777 = vunpack.c.l.b16 %v732
        %v778 = vunpack.c.h.b16 %v732
        %v779 = vunpack.c.l.b16 %v733
        %v780 = vunpack.c.h.b16 %v733
        %v781 = vunpack.c.l.b16 %v734
        %v782 = vunpack.c.h.b16 %v734
        %v783 = vpack.c.b16 %v769, %v767
        %v784 = vpack.c.b16 %v770, %v768
        %v785 = vpack.c.b16 %v773, %v771
        %v786 = vpack.c.b16 %v774, %v772
        %v787 = vpack.c.b16 %v777, %v775
        %v788 = vpack.c.b16 %v778, %v776
        %v789 = vpack.c.b16 %v781, %v779
        %v790 = vpack.c.b16 %v782, %v780
        %vm799 = vcmask 523264
        %v801 = vsel %vm799, %v751, 0
        %v804 = vsel %vm799, %v752, 0
        %v807 = vsel %vm799, %v753, 0
        %v810 = vsel %vm799, %v754, 0
        %v813 = vsel %vm799, %v755, 0
        %v816 = vsel %vm799, %v756, 0
        %v819 = vsel %vm799, %v757, 0
        %v822 = vsel %vm799, %v758, 0
        %824 = vmatprep.subr.bf16.mxu0 %v784
        %825 = vmatpush1.bf16.msra.mxu0 %v783
        %826 = vmatprep.subr.bf16.mxu0 %v786
        %827 = vmatpush1.bf16.msra.mxu0 %v785
        %828 = vmatprep.subr.bf16.mxu0 %v788
        %829 = vmatpush1.bf16.msra.mxu0 %v787
        %830 = vmatprep.subr.bf16.mxu0 %v790
        %831 = vmatpush1.bf16.msra.mxu0 %v789
        %832 = vmatprep.subr.bf16.mxu0 0
        %833 = vmatpush1.bf16.msra.mxu0 0
        %834 = vmatprep.subr.bf16.mxu0 0
        %835 = vmatpush1.bf16.msra.mxu0 0
        %836 = vmatprep.subr.bf16.mxu0 0
        %837 = vmatpush1.bf16.msra.mxu0 0
        %838 = vmatprep.subr.bf16.mxu0 0
        %839 = vmatpush1.bf16.msra.mxu0 0
        %840 = vmatprep.subr.bf16.mxu0 0
        %841 = vmatpush1.bf16.msra.mxu0 0
        %842 = vmatprep.subr.bf16.mxu0 0
        %843 = vmatpush1.bf16.msra.mxu0 0
        %844 = vmatprep.subr.bf16.mxu0 0
        %845 = vmatpush1.bf16.msra.mxu0 0
        %846 = vmatprep.subr.bf16.mxu0 0
        %847 = vmatpush1.bf16.msra.mxu0 0
        %848 = vmatprep.subr.bf16.mxu0 0
        %849 = vmatpush1.bf16.msra.mxu0 0
        %850 = vmatprep.subr.bf16.mxu0 0
        %851 = vmatpush1.bf16.msra.mxu0 0
        %852 = vmatprep.subr.bf16.mxu0 0
        %853 = vmatpush1.bf16.msra.mxu0 0
        %854 = vmatprep.subr.bf16.mxu0 0
        %855 = vmatpush1.bf16.msra.mxu0 0
        %856 = vmatprep.mubr.bf16.mxu0 0
        %857 = vmatmul.mubr.bf16.gmra.mrb[0].mxu0 %v801
        %v858 = vpop.f32.mrb[0].mxu0
        %v859 = vadd.f32 0.0, %v858
        %v860 = vpop.f32.mrb[0].mxu0
        %v861 = vadd.f32 0.0, %v860
        %v862 = vpop.f32.mrb[0].mxu0
        %v863 = vadd.f32 0.0, %v862
        %v864 = vpop.f32.mrb[0].mxu0
        %v865 = vadd.f32 0.0, %v864
        %866 = vmatprep.mubr.bf16.mxu0 0
        %867 = vmatmul.mubr.bf16.gmra.mrb[0].mxu0 %v804
        %v868 = vpop.f32.mrb[0].mxu0
        %v869 = vadd.f32 0.0, %v868
        %v870 = vpop.f32.mrb[0].mxu0
        %v871 = vadd.f32 0.0, %v870
        %v872 = vpop.f32.mrb[0].mxu0
        %v873 = vadd.f32 0.0, %v872
        %v874 = vpop.f32.mrb[0].mxu0
        %v875 = vadd.f32 0.0, %v874
        %876 = vmatprep.mubr.bf16.mxu0 0
        %877 = vmatmul.mubr.bf16.gmra.mrb[0].mxu0 %v807
        %v878 = vpop.f32.mrb[0].mxu0
        %v879 = vadd.f32 0.0, %v878
        %v880 = vpop.f32.mrb[0].mxu0
        %v881 = vadd.f32 0.0, %v880
        %v882 = vpop.f32.mrb[0].mxu0
        %v883 = vadd.f32 0.0, %v882
        %v884 = vpop.f32.mrb[0].mxu0
        %v885 = vadd.f32 0.0, %v884
        %886 = vmatprep.mubr.bf16.mxu0 0
        %887 = vmatmul.mubr.bf16.gmra.mrb[0].mxu0 %v810
        %v888 = vpop.f32.mrb[0].mxu0
        %v889 = vadd.f32 0.0, %v888
        %v890 = vpop.f32.mrb[0].mxu0
        %v891 = vadd.f32 0.0, %v890
        %v892 = vpop.f32.mrb[0].mxu0
        %v893 = vadd.f32 0.0, %v892
        %v894 = vpop.f32.mrb[0].mxu0
        %v895 = vadd.f32 0.0, %v894
        %896 = vmatprep.mubr.bf16.mxu0 0
        %897 = vmatmul.mubr.bf16.gmra.mrb[0].mxu0 %v813
        %v898 = vpop.f32.mrb[0].mxu0
        %v899 = vadd.f32 0.0, %v898
        %v900 = vpop.f32.mrb[0].mxu0
        %v901 = vadd.f32 0.0, %v900
        %v902 = vpop.f32.mrb[0].mxu0
        %v903 = vadd.f32 0.0, %v902
        %v904 = vpop.f32.mrb[0].mxu0
        %v905 = vadd.f32 0.0, %v904
        %906 = vmatprep.mubr.bf16.mxu0 0
        %907 = vmatmul.mubr.bf16.gmra.mrb[0].mxu0 %v816
        %v908 = vpop.f32.mrb[0].mxu0
        %v909 = vadd.f32 0.0, %v908
        %v910 = vpop.f32.mrb[0].mxu0
        %v911 = vadd.f32 0.0, %v910
        %v912 = vpop.f32.mrb[0].mxu0
        %v913 = vadd.f32 0.0, %v912
        %v914 = vpop.f32.mrb[0].mxu0
        %v915 = vadd.f32 0.0, %v914
        %916 = vmatprep.mubr.bf16.mxu0 0
        %917 = vmatmul.mubr.bf16.gmra.mrb[0].mxu0 %v819
        %v918 = vpop.f32.mrb[0].mxu0
        %v919 = vadd.f32 0.0, %v918
        %v920 = vpop.f32.mrb[0].mxu0
        %v921 = vadd.f32 0.0, %v920
        %v922 = vpop.f32.mrb[0].mxu0
        %v923 = vadd.f32 0.0, %v922
        %v924 = vpop.f32.mrb[0].mxu0
        %v925 = vadd.f32 0.0, %v924
        %926 = vmatprep.mubr.bf16.mxu0 0
        %927 = vmatmul.mubr.bf16.gmra.mrb[0].mxu0 %v822
        %v928 = vpop.f32.mrb[0].mxu0
        %v929 = vadd.f32 0.0, %v928
        %v930 = vpop.f32.mrb[0].mxu0
        %v931 = vadd.f32 0.0, %v930
        %v932 = vpop.f32.mrb[0].mxu0
        %v933 = vadd.f32 0.0, %v932
        %v934 = vpop.f32.mrb[0].mxu0
        %v935 = vadd.f32 0.0, %v934
        %936 = vdwg.mxu0
        %v953 = vunpack.c.l.b16 %v499
        %v954 = vunpack.c.l.b16 %v500
        %v955 = vunpack.c.l.b16 %v501
        %v956 = vunpack.c.l.b16 %v502
        %v957 = vunpack.c.l.b16 %v503
        %v958 = vunpack.c.l.b16 %v504
        %v959 = vunpack.c.l.b16 %v505
        %v960 = vunpack.c.l.b16 %v506
        %v961 = vunpack.c.l.b16 %v507
        %v962 = vunpack.c.l.b16 %v508
        %v963 = vunpack.c.l.b16 %v509
        %v964 = vunpack.c.l.b16 %v510
        %v965 = vunpack.c.l.b16 %v511
        %v966 = vunpack.c.l.b16 %v512
        %v967 = vunpack.c.l.b16 %v513
        %v968 = vunpack.c.l.b16 %v514
        %v969 = vpack.c.b16 %v954, %v953
        %v970 = vpack.c.b16 %v956, %v955
        %v971 = vpack.c.b16 %v958, %v957
        %v972 = vpack.c.b16 %v960, %v959
        %v973 = vpack.c.b16 %v962, %v961
        %v974 = vpack.c.b16 %v964, %v963
        %v975 = vpack.c.b16 %v966, %v965
        %v976 = vpack.c.b16 %v968, %v967
        %v985 = vunpack.c.l.b16 %v515
        %v986 = vunpack.c.h.b16 %v515
        %v987 = vunpack.c.l.b16 %v516
        %v988 = vunpack.c.h.b16 %v516
        %v989 = vunpack.c.l.b16 %v517
        %v990 = vunpack.c.h.b16 %v517
        %v991 = vunpack.c.l.b16 %v518
        %v992 = vunpack.c.h.b16 %v518
        %v993 = vunpack.c.l.b16 %v519
        %v994 = vunpack.c.h.b16 %v519
        %v995 = vunpack.c.l.b16 %v520
        %v996 = vunpack.c.h.b16 %v520
        %v997 = vunpack.c.l.b16 %v521
        %v998 = vunpack.c.h.b16 %v521
        %v999 = vunpack.c.l.b16 %v522
        %v1000 = vunpack.c.h.b16 %v522
        %v1001 = vpack.c.b16 %v987, %v985
        %v1002 = vpack.c.b16 %v988, %v986
        %v1003 = vpack.c.b16 %v991, %v989
        %v1004 = vpack.c.b16 %v992, %v990
        %v1005 = vpack.c.b16 %v995, %v993
        %v1006 = vpack.c.b16 %v996, %v994
        %v1007 = vpack.c.b16 %v999, %v997
        %v1008 = vpack.c.b16 %v1000, %v998
        %v1018 = vsel %vm799, %v969, 0
        %v1021 = vsel %vm799, %v970, 0
        %v1024 = vsel %vm799, %v971, 0
        %v1027 = vsel %vm799, %v972, 0
        %v1030 = vsel %vm799, %v973, 0
        %v1033 = vsel %vm799, %v974, 0
        %v1036 = vsel %vm799, %v975, 0
        %v1039 = vsel %vm799, %v976, 0
        %1041 = vmatprep.subr.bf16.mxu0 %v1002
        %1042 = vmatpush1.bf16.msra.mxu0 %v1001
        %1043 = vmatprep.subr.bf16.mxu0 %v1004
        %1044 = vmatpush1.bf16.msra.mxu0 %v1003
        %1045 = vmatprep.subr.bf16.mxu0 %v1006
        %1046 = vmatpush1.bf16.msra.mxu0 %v1005
        %1047 = vmatprep.subr.bf16.mxu0 %v1008
        %1048 = vmatpush1.bf16.msra.mxu0 %v1007
        %1049 = vmatprep.subr.bf16.mxu0 0
        %1050 = vmatpush1.bf16.msra.mxu0 0
        %1051 = vmatprep.subr.bf16.mxu0 0
        %1052 = vmatpush1.bf16.msra.mxu0 0
        %1053 = vmatprep.subr.bf16.mxu0 0
        %1054 = vmatpush1.bf16.msra.mxu0 0
        %1055 = vmatprep.subr.bf16.mxu0 0
        %1056 = vmatpush1.bf16.msra.mxu0 0
        %1057 = vmatprep.subr.bf16.mxu0 0
        %1058 = vmatpush1.bf16.msra.mxu0 0
        %1059 = vmatprep.subr.bf16.mxu0 0
        %1060 = vmatpush1.bf16.msra.mxu0 0
        %1061 = vmatprep.subr.bf16.mxu0 0
        %1062 = vmatpush1.bf16.msra.mxu0 0
        %1063 = vmatprep.subr.bf16.mxu0 0
        %1064 = vmatpush1.bf16.msra.mxu0 0
        %1065 = vmatprep.subr.bf16.mxu0 0
        %1066 = vmatpush1.bf16.msra.mxu0 0
        %1067 = vmatprep.subr.bf16.mxu0 0
        %1068 = vmatpush1.bf16.msra.mxu0 0
        %1069 = vmatprep.subr.bf16.mxu0 0
        %1070 = vmatpush1.bf16.msra.mxu0 0
        %1071 = vmatprep.subr.bf16.mxu0 0
        %1072 = vmatpush1.bf16.msra.mxu0 0
        %1073 = vmatprep.mubr.bf16.mxu0 0
        %1074 = vmatmul.mubr.bf16.gmra.mrb[0].mxu0 %v1018
        %v1075 = vpop.f32.mrb[0].mxu0
        %v1076 = vadd.f32 %v859, %v1075
        %v1077 = vpop.f32.mrb[0].mxu0
        %v1078 = vadd.f32 %v861, %v1077
        %v1079 = vpop.f32.mrb[0].mxu0
        %v1080 = vadd.f32 %v863, %v1079
        %v1081 = vpop.f32.mrb[0].mxu0
        %v1082 = vadd.f32 %v865, %v1081
        %1083 = vmatprep.mubr.bf16.mxu0 0
        %1084 = vmatmul.mubr.bf16.gmra.mrb[0].mxu0 %v1021
        %v1085 = vpop.f32.mrb[0].mxu0
        %v1086 = vadd.f32 %v869, %v1085
        %v1087 = vpop.f32.mrb[0].mxu0
        %v1088 = vadd.f32 %v871, %v1087
        %v1089 = vpop.f32.mrb[0].mxu0
        %v1090 = vadd.f32 %v873, %v1089
        %v1091 = vpop.f32.mrb[0].mxu0
        %v1092 = vadd.f32 %v875, %v1091
        %1093 = vmatprep.mubr.bf16.mxu0 0
        %1094 = vmatmul.mubr.bf16.gmra.mrb[0].mxu0 %v1024
        %v1095 = vpop.f32.mrb[0].mxu0
        %v1096 = vadd.f32 %v879, %v1095
        %v1097 = vpop.f32.mrb[0].mxu0
        %v1098 = vadd.f32 %v881, %v1097
        %v1099 = vpop.f32.mrb[0].mxu0
        %v1100 = vadd.f32 %v883, %v1099
        %v1101 = vpop.f32.mrb[0].mxu0
        %v1102 = vadd.f32 %v885, %v1101
        %1103 = vmatprep.mubr.bf16.mxu0 0
        %1104 = vmatmul.mubr.bf16.gmra.mrb[0].mxu0 %v1027
        %v1105 = vpop.f32.mrb[0].mxu0
        %v1106 = vadd.f32 %v889, %v1105
        %v1107 = vpop.f32.mrb[0].mxu0
        %v1108 = vadd.f32 %v891, %v1107
        %v1109 = vpop.f32.mrb[0].mxu0
        %v1110 = vadd.f32 %v893, %v1109
        %v1111 = vpop.f32.mrb[0].mxu0
        %v1112 = vadd.f32 %v895, %v1111
        %1113 = vmatprep.mubr.bf16.mxu0 0
        %1114 = vmatmul.mubr.bf16.gmra.mrb[0].mxu0 %v1030
        %v1115 = vpop.f32.mrb[0].mxu0
        %v1116 = vadd.f32 %v899, %v1115
        %v1117 = vpop.f32.mrb[0].mxu0
        %v1118 = vadd.f32 %v901, %v1117
        %v1119 = vpop.f32.mrb[0].mxu0
        %v1120 = vadd.f32 %v903, %v1119
        %v1121 = vpop.f32.mrb[0].mxu0
        %v1122 = vadd.f32 %v905, %v1121
        %1123 = vmatprep.mubr.bf16.mxu0 0
        %1124 = vmatmul.mubr.bf16.gmra.mrb[0].mxu0 %v1033
        %v1125 = vpop.f32.mrb[0].mxu0
        %v1126 = vadd.f32 %v909, %v1125
        %v1127 = vpop.f32.mrb[0].mxu0
        %v1128 = vadd.f32 %v911, %v1127
        %v1129 = vpop.f32.mrb[0].mxu0
        %v1130 = vadd.f32 %v913, %v1129
        %v1131 = vpop.f32.mrb[0].mxu0
        %v1132 = vadd.f32 %v915, %v1131
        %1133 = vmatprep.mubr.bf16.mxu0 0
        %1134 = vmatmul.mubr.bf16.gmra.mrb[0].mxu0 %v1036
        %v1135 = vpop.f32.mrb[0].mxu0
        %v1136 = vadd.f32 %v919, %v1135
        %v1137 = vpop.f32.mrb[0].mxu0
        %v1138 = vadd.f32 %v921, %v1137
        %v1139 = vpop.f32.mrb[0].mxu0
        %v1140 = vadd.f32 %v923, %v1139
        %v1141 = vpop.f32.mrb[0].mxu0
        %v1142 = vadd.f32 %v925, %v1141
        %1143 = vmatprep.mubr.bf16.mxu0 0
        %1144 = vmatmul.mubr.bf16.gmra.mrb[0].mxu0 %v1039
        %v1145 = vpop.f32.mrb[0].mxu0
        %v1146 = vadd.f32 %v929, %v1145
        %v1147 = vpop.f32.mrb[0].mxu0
        %v1148 = vadd.f32 %v931, %v1147
        %v1149 = vpop.f32.mrb[0].mxu0
        %v1150 = vadd.f32 %v933, %v1149
        %v1151 = vpop.f32.mrb[0].mxu0
        %v1152 = vadd.f32 %v935, %v1151
        %1153 = vdwg.mxu0
        %v1154 = vld [vmem:[#allocation2] sm:$0xe]
        %v1155 = vld [vmem:[#allocation2 + $0xc] sm:$0xe]
        %v1156 = vld [vmem:[#allocation2 + $0x18] sm:$0xe]
        %v1157 = vld [vmem:[#allocation2 + $0x24] sm:$0xe]
        %v1158 = vld [vmem:[#allocation2 + $0x30] sm:$0xe]
        %v1159 = vld [vmem:[#allocation2 + $0x3c] sm:$0xe]
        %v1160 = vld [vmem:[#allocation2 + $0x48] sm:$0xe]
        %v1161 = vld [vmem:[#allocation2 + $0x54] sm:$0xe]
        %vm1178 = vcmask 1042432
        %vm1179 = vcmask 1046532
        %vm1180 = vmor %vm1178, %vm1179
        %v1181 = vrot.slane %v1154, 5
        %v1182 = vrot.slane %v1181, 4
        %v1183 = vrot.slane %v500, 5
        %v1184 = vsel %vm1180, %v1182, %v1183
        %v1185 = vrot.slane %v1183, 4
        %v1186 = vrot.slane %v523, 5
        %v1187 = vsel %vm1180, %v1185, %v1186
        %v1188 = vrot.slane %v1155, 5
        %v1189 = vrot.slane %v1188, 4
        %v1190 = vrot.slane %v502, 5
        %v1191 = vsel %vm1180, %v1189, %v1190
        %v1192 = vrot.slane %v1190, 4
        %v1193 = vrot.slane %v524, 5
        %v1194 = vsel %vm1180, %v1192, %v1193
        %v1195 = vrot.slane %v1156, 5
        %v1196 = vrot.slane %v1195, 4
        %v1197 = vrot.slane %v504, 5
        %v1198 = vsel %vm1180, %v1196, %v1197
        %v1199 = vrot.slane %v1197, 4
        %v1200 = vrot.slane %v525, 5
        %v1201 = vsel %vm1180, %v1199, %v1200
        %v1202 = vrot.slane %v1157, 5
        %v1203 = vrot.slane %v1202, 4
        %v1204 = vrot.slane %v506, 5
        %v1205 = vsel %vm1180, %v1203, %v1204
        %v1206 = vrot.slane %v1204, 4
        %v1207 = vrot.slane %v526, 5
        %v1208 = vsel %vm1180, %v1206, %v1207
        %v1209 = vrot.slane %v1158, 5
        %v1210 = vrot.slane %v1209, 4
        %v1211 = vrot.slane %v508, 5
        %v1212 = vsel %vm1180, %v1210, %v1211
        %v1213 = vrot.slane %v1211, 4
        %v1214 = vrot.slane %v527, 5
        %v1215 = vsel %vm1180, %v1213, %v1214
        %v1216 = vrot.slane %v1159, 5
        %v1217 = vrot.slane %v1216, 4
        %v1218 = vrot.slane %v510, 5
        %v1219 = vsel %vm1180, %v1217, %v1218
        %v1220 = vrot.slane %v1218, 4
        %v1221 = vrot.slane %v528, 5
        %v1222 = vsel %vm1180, %v1220, %v1221
        %v1223 = vrot.slane %v1160, 5
        %v1224 = vrot.slane %v1223, 4
        %v1225 = vrot.slane %v512, 5
        %v1226 = vsel %vm1180, %v1224, %v1225
        %v1227 = vrot.slane %v1225, 4
        %v1228 = vrot.slane %v529, 5
        %v1229 = vsel %vm1180, %v1227, %v1228
        %v1230 = vrot.slane %v1161, 5
        %v1231 = vrot.slane %v1230, 4
        %v1232 = vrot.slane %v514, 5
        %v1233 = vsel %vm1180, %v1231, %v1232
        %v1234 = vrot.slane %v1232, 4
        %v1235 = vrot.slane %v530, 5
        %v1236 = vsel %vm1180, %v1234, %v1235
        %s1237 = scalar_lea.vmem %s3, 128
        %v1238 = vld [vmem:[%s1237] sm:$0xff]
        %v1239 = vld [vmem:[%s1237 + $0x8] sm:$0xff]
        %v1240 = vld [vmem:[%s1237 + $0x10] sm:$0xff]
        %v1241 = vld [vmem:[%s1237 + $0x18] sm:$0xff]
        %v1242 = vld [vmem:[%s1237 + $0x20] sm:$0xff]
        %v1243 = vld [vmem:[%s1237 + $0x28] sm:$0xff]
        %v1244 = vld [vmem:[%s1237 + $0x30] sm:$0xff]
        %v1245 = vld [vmem:[%s1237 + $0x38] sm:$0xff]
        %v1246 = vunpack.c.l.b16 %v1184
        %v1247 = vunpack.c.l.b16 %v1187
        %v1248 = vunpack.c.l.b16 %v1191
        %v1249 = vunpack.c.l.b16 %v1194
        %v1250 = vunpack.c.l.b16 %v1198
        %v1251 = vunpack.c.l.b16 %v1201
        %v1252 = vunpack.c.l.b16 %v1205
        %v1253 = vunpack.c.l.b16 %v1208
        %v1254 = vunpack.c.l.b16 %v1212
        %v1255 = vunpack.c.l.b16 %v1215
        %v1256 = vunpack.c.l.b16 %v1219
        %v1257 = vunpack.c.l.b16 %v1222
        %v1258 = vunpack.c.l.b16 %v1226
        %v1259 = vunpack.c.l.b16 %v1229
        %v1260 = vunpack.c.l.b16 %v1233
        %v1261 = vunpack.c.l.b16 %v1236
        %v1262 = vpack.c.b16 %v1247, %v1246
        %v1263 = vpack.c.b16 %v1249, %v1248
        %v1264 = vpack.c.b16 %v1251, %v1250
        %v1265 = vpack.c.b16 %v1253, %v1252
        %v1266 = vpack.c.b16 %v1255, %v1254
        %v1267 = vpack.c.b16 %v1257, %v1256
        %v1268 = vpack.c.b16 %v1259, %v1258
        %v1269 = vpack.c.b16 %v1261, %v1260
        %v1278 = vunpack.c.l.b16 %v1238
        %v1279 = vunpack.c.h.b16 %v1238
        %v1280 = vunpack.c.l.b16 %v1239
        %v1281 = vunpack.c.h.b16 %v1239
        %v1282 = vunpack.c.l.b16 %v1240
        %v1283 = vunpack.c.h.b16 %v1240
        %v1284 = vunpack.c.l.b16 %v1241
        %v1285 = vunpack.c.h.b16 %v1241
        %v1286 = vunpack.c.l.b16 %v1242
        %v1287 = vunpack.c.h.b16 %v1242
        %v1288 = vunpack.c.l.b16 %v1243
        %v1289 = vunpack.c.h.b16 %v1243
        %v1290 = vunpack.c.l.b16 %v1244
        %v1291 = vunpack.c.h.b16 %v1244
        %v1292 = vunpack.c.l.b16 %v1245
        %v1293 = vunpack.c.h.b16 %v1245
        %v1294 = vpack.c.b16 %v1280, %v1278
        %v1295 = vpack.c.b16 %v1281, %v1279
        %v1296 = vpack.c.b16 %v1284, %v1282
        %v1297 = vpack.c.b16 %v1285, %v1283
        %v1298 = vpack.c.b16 %v1288, %v1286
        %v1299 = vpack.c.b16 %v1289, %v1287
        %v1300 = vpack.c.b16 %v1292, %v1290
        %v1301 = vpack.c.b16 %v1293, %v1291
        %v1311 = vsel %vm799, %v1262, 0
        %v1314 = vsel %vm799, %v1263, 0
        %v1317 = vsel %vm799, %v1264, 0
        %v1320 = vsel %vm799, %v1265, 0
        %v1323 = vsel %vm799, %v1266, 0
        %v1326 = vsel %vm799, %v1267, 0
        %v1329 = vsel %vm799, %v1268, 0
        %v1332 = vsel %vm799, %v1269, 0
        %1334 = vmatprep.subr.bf16.mxu0 %v1295
        %1335 = vmatpush1.bf16.msra.mxu0 %v1294
        %1336 = vmatprep.subr.bf16.mxu0 %v1297
        %1337 = vmatpush1.bf16.msra.mxu0 %v1296
        %1338 = vmatprep.subr.bf16.mxu0 %v1299
        %1339 = vmatpush1.bf16.msra.mxu0 %v1298
        %1340 = vmatprep.subr.bf16.mxu0 %v1301
        %1341 = vmatpush1.bf16.msra.mxu0 %v1300
        %1342 = vmatprep.subr.bf16.mxu0 0
        %1343 = vmatpush1.bf16.msra.mxu0 0
        %1344 = vmatprep.subr.bf16.mxu0 0
        %1345 = vmatpush1.bf16.msra.mxu0 0
        %1346 = vmatprep.subr.bf16.mxu0 0
        %1347 = vmatpush1.bf16.msra.mxu0 0
        %1348 = vmatprep.subr.bf16.mxu0 0
        %1349 = vmatpush1.bf16.msra.mxu0 0
        %1350 = vmatprep.subr.bf16.mxu0 0
        %1351 = vmatpush1.bf16.msra.mxu0 0
        %1352 = vmatprep.subr.bf16.mxu0 0
        %1353 = vmatpush1.bf16.msra.mxu0 0
        %1354 = vmatprep.subr.bf16.mxu0 0
        %1355 = vmatpush1.bf16.msra.mxu0 0
        %1356 = vmatprep.subr.bf16.mxu0 0
        %1357 = vmatpush1.bf16.msra.mxu0 0
        %1358 = vmatprep.subr.bf16.mxu0 0
        %1359 = vmatpush1.bf16.msra.mxu0 0
        %1360 = vmatprep.subr.bf16.mxu0 0
        %1361 = vmatpush1.bf16.msra.mxu0 0
        %1362 = vmatprep.subr.bf16.mxu0 0
        %1363 = vmatpush1.bf16.msra.mxu0 0
        %1364 = vmatprep.subr.bf16.mxu0 0
        %1365 = vmatpush1.bf16.msra.mxu0 0
        %1366 = vmatprep.mubr.bf16.mxu0 0
        %1367 = vmatmul.mubr.bf16.gmra.mrb[0].mxu0 %v1311
        %v1368 = vpop.f32.mrb[0].mxu0
        %v1369 = vadd.f32 0.0, %v1368
        %v1370 = vpop.f32.mrb[0].mxu0
        %v1371 = vadd.f32 0.0, %v1370
        %v1372 = vpop.f32.mrb[0].mxu0
        %v1373 = vadd.f32 0.0, %v1372
        %v1374 = vpop.f32.mrb[0].mxu0
        %v1375 = vadd.f32 0.0, %v1374
        %1376 = vmatprep.mubr.bf16.mxu0 0
        %1377 = vmatmul.mubr.bf16.gmra.mrb[0].mxu0 %v1314
        %v1378 = vpop.f32.mrb[0].mxu0
        %v1379 = vadd.f32 0.0, %v1378
        %v1380 = vpop.f32.mrb[0].mxu0
        %v1381 = vadd.f32 0.0, %v1380
        %v1382 = vpop.f32.mrb[0].mxu0
        %v1383 = vadd.f32 0.0, %v1382
        %v1384 = vpop.f32.mrb[0].mxu0
        %v1385 = vadd.f32 0.0, %v1384
        %1386 = vmatprep.mubr.bf16.mxu0 0
        %1387 = vmatmul.mubr.bf16.gmra.mrb[0].mxu0 %v1317
        %v1388 = vpop.f32.mrb[0].mxu0
        %v1389 = vadd.f32 0.0, %v1388
        %v1390 = vpop.f32.mrb[0].mxu0
        %v1391 = vadd.f32 0.0, %v1390
        %v1392 = vpop.f32.mrb[0].mxu0
        %v1393 = vadd.f32 0.0, %v1392
        %v1394 = vpop.f32.mrb[0].mxu0
        %v1395 = vadd.f32 0.0, %v1394
        %1396 = vmatprep.mubr.bf16.mxu0 0
        %1397 = vmatmul.mubr.bf16.gmra.mrb[0].mxu0 %v1320
        %v1398 = vpop.f32.mrb[0].mxu0
        %v1399 = vadd.f32 0.0, %v1398
        %v1400 = vpop.f32.mrb[0].mxu0
        %v1401 = vadd.f32 0.0, %v1400
        %v1402 = vpop.f32.mrb[0].mxu0
        %v1403 = vadd.f32 0.0, %v1402
        %v1404 = vpop.f32.mrb[0].mxu0
        %v1405 = vadd.f32 0.0, %v1404
        %1406 = vmatprep.mubr.bf16.mxu0 0
        %1407 = vmatmul.mubr.bf16.gmra.mrb[0].mxu0 %v1323
        %v1408 = vpop.f32.mrb[0].mxu0
        %v1409 = vadd.f32 0.0, %v1408
        %v1410 = vpop.f32.mrb[0].mxu0
        %v1411 = vadd.f32 0.0, %v1410
        %v1412 = vpop.f32.mrb[0].mxu0
        %v1413 = vadd.f32 0.0, %v1412
        %v1414 = vpop.f32.mrb[0].mxu0
        %v1415 = vadd.f32 0.0, %v1414
        %1416 = vmatprep.mubr.bf16.mxu0 0
        %1417 = vmatmul.mubr.bf16.gmra.mrb[0].mxu0 %v1326
        %v1418 = vpop.f32.mrb[0].mxu0
        %v1419 = vadd.f32 0.0, %v1418
        %v1420 = vpop.f32.mrb[0].mxu0
        %v1421 = vadd.f32 0.0, %v1420
        %v1422 = vpop.f32.mrb[0].mxu0
        %v1423 = vadd.f32 0.0, %v1422
        %v1424 = vpop.f32.mrb[0].mxu0
        %v1425 = vadd.f32 0.0, %v1424
        %1426 = vmatprep.mubr.bf16.mxu0 0
        %1427 = vmatmul.mubr.bf16.gmra.mrb[0].mxu0 %v1329
        %v1428 = vpop.f32.mrb[0].mxu0
        %v1429 = vadd.f32 0.0, %v1428
        %v1430 = vpop.f32.mrb[0].mxu0
        %v1431 = vadd.f32 0.0, %v1430
        %v1432 = vpop.f32.mrb[0].mxu0
        %v1433 = vadd.f32 0.0, %v1432
        %v1434 = vpop.f32.mrb[0].mxu0
        %v1435 = vadd.f32 0.0, %v1434
        %1436 = vmatprep.mubr.bf16.mxu0 0
        %1437 = vmatmul.mubr.bf16.gmra.mrb[0].mxu0 %v1332
        %v1438 = vpop.f32.mrb[0].mxu0
        %v1439 = vadd.f32 0.0, %v1438
        %v1440 = vpop.f32.mrb[0].mxu0
        %v1441 = vadd.f32 0.0, %v1440
        %v1442 = vpop.f32.mrb[0].mxu0
        %v1443 = vadd.f32 0.0, %v1442
        %v1444 = vpop.f32.mrb[0].mxu0
        %v1445 = vadd.f32 0.0, %v1444
        %1446 = vdwg.mxu0
        %v1447 = vadd.f32 %v1076, %v1369
        %v1448 = vadd.f32 %v1078, %v1371
        %v1449 = vadd.f32 %v1080, %v1373
        %v1450 = vadd.f32 %v1082, %v1375
        %v1451 = vadd.f32 %v1086, %v1379
        %v1452 = vadd.f32 %v1088, %v1381
        %v1453 = vadd.f32 %v1090, %v1383
        %v1454 = vadd.f32 %v1092, %v1385
        %v1455 = vadd.f32 %v1096, %v1389
        %v1456 = vadd.f32 %v1098, %v1391
        %v1457 = vadd.f32 %v1100, %v1393
        %v1458 = vadd.f32 %v1102, %v1395
        %v1459 = vadd.f32 %v1106, %v1399
        %v1460 = vadd.f32 %v1108, %v1401
        %v1461 = vadd.f32 %v1110, %v1403
        %v1462 = vadd.f32 %v1112, %v1405
        %v1463 = vadd.f32 %v1116, %v1409
        %v1464 = vadd.f32 %v1118, %v1411
        %v1465 = vadd.f32 %v1120, %v1413
        %v1466 = vadd.f32 %v1122, %v1415
        %v1467 = vadd.f32 %v1126, %v1419
        %v1468 = vadd.f32 %v1128, %v1421
        %v1469 = vadd.f32 %v1130, %v1423
        %v1470 = vadd.f32 %v1132, %v1425
        %v1471 = vadd.f32 %v1136, %v1429
        %v1472 = vadd.f32 %v1138, %v1431
        %v1473 = vadd.f32 %v1140, %v1433
        %v1474 = vadd.f32 %v1142, %v1435
        %v1475 = vadd.f32 %v1146, %v1439
        %v1476 = vadd.f32 %v1148, %v1441
        %v1477 = vadd.f32 %v1150, %v1443
        %v1478 = vadd.f32 %v1152, %v1445
        %s1479 = scalar_lea.vmem [#allocation2], 12
        %v1480 = vld [vmem:[%s1479] sm:$0xf]
        %v1481 = vld [vmem:[%s1479 + $0x4] sm:$0xf]
        %v1482 = vld [vmem:[%s1479 + $0xc] sm:$0xf]
        %v1483 = vld [vmem:[%s1479 + $0x10] sm:$0xf]
        %v1484 = vld [vmem:[%s1479 + $0x18] sm:$0xf]
        %v1485 = vld [vmem:[%s1479 + $0x1c] sm:$0xf]
        %v1486 = vld [vmem:[%s1479 + $0x24] sm:$0xf]
        %v1487 = vld [vmem:[%s1479 + $0x28] sm:$0xf]
        %v1488 = vld [vmem:[%s1479 + $0x30] sm:$0xf]
        %v1489 = vld [vmem:[%s1479 + $0x34] sm:$0xf]
        %v1490 = vld [vmem:[%s1479 + $0x3c] sm:$0xf]
        %v1491 = vld [vmem:[%s1479 + $0x40] sm:$0xf]
        %v1492 = vld [vmem:[%s1479 + $0x48] sm:$0xf]
        %v1493 = vld [vmem:[%s1479 + $0x4c] sm:$0xf]
        %v1494 = vld [vmem:[%s1479 + $0x54] sm:$0xf]
        %v1495 = vld [vmem:[%s1479 + $0x58] sm:$0xf]
        %s1496 = scalar_lea.vmem %s3, 192
        %v1497 = vld [vmem:[%s1496] sm:$0xff]
        %v1498 = vld [vmem:[%s1496 + $0x8] sm:$0xff]
        %v1499 = vld [vmem:[%s1496 + $0x10] sm:$0xff]
        %v1500 = vld [vmem:[%s1496 + $0x18] sm:$0xff]
        %v1501 = vld [vmem:[%s1496 + $0x20] sm:$0xff]
        %v1502 = vld [vmem:[%s1496 + $0x28] sm:$0xff]
        %v1503 = vld [vmem:[%s1496 + $0x30] sm:$0xff]
        %v1504 = vld [vmem:[%s1496 + $0x38] sm:$0xff]
        %v1521 = vunpack.c.l.b16 %v1480
        %v1522 = vunpack.c.l.b16 %v1481
        %v1523 = vunpack.c.l.b16 %v1482
        %v1524 = vunpack.c.l.b16 %v1483
        %v1525 = vunpack.c.l.b16 %v1484
        %v1526 = vunpack.c.l.b16 %v1485
        %v1527 = vunpack.c.l.b16 %v1486
        %v1528 = vunpack.c.l.b16 %v1487
        %v1529 = vunpack.c.l.b16 %v1488
        %v1530 = vunpack.c.l.b16 %v1489
        %v1531 = vunpack.c.l.b16 %v1490
        %v1532 = vunpack.c.l.b16 %v1491
        %v1533 = vunpack.c.l.b16 %v1492
        %v1534 = vunpack.c.l.b16 %v1493
        %v1535 = vunpack.c.l.b16 %v1494
        %v1536 = vunpack.c.l.b16 %v1495
        %v1537 = vpack.c.b16 %v1522, %v1521
        %v1538 = vpack.c.b16 %v1524, %v1523
        %v1539 = vpack.c.b16 %v1526, %v1525
        %v1540 = vpack.c.b16 %v1528, %v1527
        %v1541 = vpack.c.b16 %v1530, %v1529
        %v1542 = vpack.c.b16 %v1532, %v1531
        %v1543 = vpack.c.b16 %v1534, %v1533
        %v1544 = vpack.c.b16 %v1536, %v1535
        %v1553 = vunpack.c.l.b16 %v1497
        %v1554 = vunpack.c.h.b16 %v1497
        %v1555 = vunpack.c.l.b16 %v1498
        %v1556 = vunpack.c.h.b16 %v1498
        %v1557 = vunpack.c.l.b16 %v1499
        %v1558 = vunpack.c.h.b16 %v1499
        %v1559 = vunpack.c.l.b16 %v1500
        %v1560 = vunpack.c.h.b16 %v1500
        %v1561 = vunpack.c.l.b16 %v1501
        %v1562 = vunpack.c.h.b16 %v1501
        %v1563 = vunpack.c.l.b16 %v1502
        %v1564 = vunpack.c.h.b16 %v1502
        %v1565 = vunpack.c.l.b16 %v1503
        %v1566 = vunpack.c.h.b16 %v1503
        %v1567 = vunpack.c.l.b16 %v1504
        %v1568 = vunpack.c.h.b16 %v1504
        %v1569 = vpack.c.b16 %v1555, %v1553
        %v1570 = vpack.c.b16 %v1556, %v1554
        %v1571 = vpack.c.b16 %v1559, %v1557
        %v1572 = vpack.c.b16 %v1560, %v1558
        %v1573 = vpack.c.b16 %v1563, %v1561
        %v1574 = vpack.c.b16 %v1564, %v1562
        %v1575 = vpack.c.b16 %v1567, %v1565
        %v1576 = vpack.c.b16 %v1568, %v1566
        %v1586 = vsel %vm799, %v1537, 0
        %v1589 = vsel %vm799, %v1538, 0
        %v1592 = vsel %vm799, %v1539, 0
        %v1595 = vsel %vm799, %v1540, 0
        %v1598 = vsel %vm799, %v1541, 0
        %v1601 = vsel %vm799, %v1542, 0
        %v1604 = vsel %vm799, %v1543, 0
        %v1607 = vsel %vm799, %v1544, 0
        %1609 = vmatprep.subr.bf16.mxu0 %v1570
        %1610 = vmatpush1.bf16.msra.mxu0 %v1569
        %1611 = vmatprep.subr.bf16.mxu0 %v1572
        %1612 = vmatpush1.bf16.msra.mxu0 %v1571
        %1613 = vmatprep.subr.bf16.mxu0 %v1574
        %1614 = vmatpush1.bf16.msra.mxu0 %v1573
        %1615 = vmatprep.subr.bf16.mxu0 %v1576
        %1616 = vmatpush1.bf16.msra.mxu0 %v1575
        %1617 = vmatprep.subr.bf16.mxu0 0
        %1618 = vmatpush1.bf16.msra.mxu0 0
        %1619 = vmatprep.subr.bf16.mxu0 0
        %1620 = vmatpush1.bf16.msra.mxu0 0
        %1621 = vmatprep.subr.bf16.mxu0 0
        %1622 = vmatpush1.bf16.msra.mxu0 0
        %1623 = vmatprep.subr.bf16.mxu0 0
        %1624 = vmatpush1.bf16.msra.mxu0 0
        %1625 = vmatprep.subr.bf16.mxu0 0
        %1626 = vmatpush1.bf16.msra.mxu0 0
        %1627 = vmatprep.subr.bf16.mxu0 0
        %1628 = vmatpush1.bf16.msra.mxu0 0
        %1629 = vmatprep.subr.bf16.mxu0 0
        %1630 = vmatpush1.bf16.msra.mxu0 0
        %1631 = vmatprep.subr.bf16.mxu0 0
        %1632 = vmatpush1.bf16.msra.mxu0 0
        %1633 = vmatprep.subr.bf16.mxu0 0
        %1634 = vmatpush1.bf16.msra.mxu0 0
        %1635 = vmatprep.subr.bf16.mxu0 0
        %1636 = vmatpush1.bf16.msra.mxu0 0
        %1637 = vmatprep.subr.bf16.mxu0 0
        %1638 = vmatpush1.bf16.msra.mxu0 0
        %1639 = vmatprep.subr.bf16.mxu0 0
        %1640 = vmatpush1.bf16.msra.mxu0 0
        %1641 = vmatprep.mubr.bf16.mxu0 0
        %1642 = vmatmul.mubr.bf16.gmra.mrb[0].mxu0 %v1586
        %v1643 = vpop.f32.mrb[0].mxu0
        %v1644 = vadd.f32 0.0, %v1643
        %v1645 = vpop.f32.mrb[0].mxu0
        %v1646 = vadd.f32 0.0, %v1645
        %v1647 = vpop.f32.mrb[0].mxu0
        %v1648 = vadd.f32 0.0, %v1647
        %v1649 = vpop.f32.mrb[0].mxu0
        %v1650 = vadd.f32 0.0, %v1649
        %1651 = vmatprep.mubr.bf16.mxu0 0
        %1652 = vmatmul.mubr.bf16.gmra.mrb[0].mxu0 %v1589
        %v1653 = vpop.f32.mrb[0].mxu0
        %v1654 = vadd.f32 0.0, %v1653
        %v1655 = vpop.f32.mrb[0].mxu0
        %v1656 = vadd.f32 0.0, %v1655
        %v1657 = vpop.f32.mrb[0].mxu0
        %v1658 = vadd.f32 0.0, %v1657
        %v1659 = vpop.f32.mrb[0].mxu0
        %v1660 = vadd.f32 0.0, %v1659
        %1661 = vmatprep.mubr.bf16.mxu0 0
        %1662 = vmatmul.mubr.bf16.gmra.mrb[0].mxu0 %v1592
        %v1663 = vpop.f32.mrb[0].mxu0
        %v1664 = vadd.f32 0.0, %v1663
        %v1665 = vpop.f32.mrb[0].mxu0
        %v1666 = vadd.f32 0.0, %v1665
        %v1667 = vpop.f32.mrb[0].mxu0
        %v1668 = vadd.f32 0.0, %v1667
        %v1669 = vpop.f32.mrb[0].mxu0
        %v1670 = vadd.f32 0.0, %v1669
        %1671 = vmatprep.mubr.bf16.mxu0 0
        %1672 = vmatmul.mubr.bf16.gmra.mrb[0].mxu0 %v1595
        %v1673 = vpop.f32.mrb[0].mxu0
        %v1674 = vadd.f32 0.0, %v1673
        %v1675 = vpop.f32.mrb[0].mxu0
        %v1676 = vadd.f32 0.0, %v1675
        %v1677 = vpop.f32.mrb[0].mxu0
        %v1678 = vadd.f32 0.0, %v1677
        %v1679 = vpop.f32.mrb[0].mxu0
        %v1680 = vadd.f32 0.0, %v1679
        %1681 = vmatprep.mubr.bf16.mxu0 0
        %1682 = vmatmul.mubr.bf16.gmra.mrb[0].mxu0 %v1598
        %v1683 = vpop.f32.mrb[0].mxu0
        %v1684 = vadd.f32 0.0, %v1683
        %v1685 = vpop.f32.mrb[0].mxu0
        %v1686 = vadd.f32 0.0, %v1685
        %v1687 = vpop.f32.mrb[0].mxu0
        %v1688 = vadd.f32 0.0, %v1687
        %v1689 = vpop.f32.mrb[0].mxu0
        %v1690 = vadd.f32 0.0, %v1689
        %1691 = vmatprep.mubr.bf16.mxu0 0
        %1692 = vmatmul.mubr.bf16.gmra.mrb[0].mxu0 %v1601
        %v1693 = vpop.f32.mrb[0].mxu0
        %v1694 = vadd.f32 0.0, %v1693
        %v1695 = vpop.f32.mrb[0].mxu0
        %v1696 = vadd.f32 0.0, %v1695
        %v1697 = vpop.f32.mrb[0].mxu0
        %v1698 = vadd.f32 0.0, %v1697
        %v1699 = vpop.f32.mrb[0].mxu0
        %v1700 = vadd.f32 0.0, %v1699
        %1701 = vmatprep.mubr.bf16.mxu0 0
        %1702 = vmatmul.mubr.bf16.gmra.mrb[0].mxu0 %v1604
        %v1703 = vpop.f32.mrb[0].mxu0
        %v1704 = vadd.f32 0.0, %v1703
        %v1705 = vpop.f32.mrb[0].mxu0
        %v1706 = vadd.f32 0.0, %v1705
        %v1707 = vpop.f32.mrb[0].mxu0
        %v1708 = vadd.f32 0.0, %v1707
        %v1709 = vpop.f32.mrb[0].mxu0
        %v1710 = vadd.f32 0.0, %v1709
        %1711 = vmatprep.mubr.bf16.mxu0 0
        %1712 = vmatmul.mubr.bf16.gmra.mrb[0].mxu0 %v1607
        %v1713 = vpop.f32.mrb[0].mxu0
        %v1714 = vadd.f32 0.0, %v1713
        %v1715 = vpop.f32.mrb[0].mxu0
        %v1716 = vadd.f32 0.0, %v1715
        %v1717 = vpop.f32.mrb[0].mxu0
        %v1718 = vadd.f32 0.0, %v1717
        %v1719 = vpop.f32.mrb[0].mxu0
        %v1720 = vadd.f32 0.0, %v1719
        %1721 = vdwg.mxu0
        %v1722 = vadd.f32 %v1447, %v1644
        %v1723 = vadd.f32 %v1448, %v1646
        %v1724 = vadd.f32 %v1449, %v1648
        %v1725 = vadd.f32 %v1450, %v1650
        %v1726 = vadd.f32 %v1451, %v1654
        %v1727 = vadd.f32 %v1452, %v1656
        %v1728 = vadd.f32 %v1453, %v1658
        %v1729 = vadd.f32 %v1454, %v1660
        %v1730 = vadd.f32 %v1455, %v1664
        %v1731 = vadd.f32 %v1456, %v1666
        %v1732 = vadd.f32 %v1457, %v1668
        %v1733 = vadd.f32 %v1458, %v1670
        %v1734 = vadd.f32 %v1459, %v1674
        %v1735 = vadd.f32 %v1460, %v1676
        %v1736 = vadd.f32 %v1461, %v1678
        %v1737 = vadd.f32 %v1462, %v1680
        %v1738 = vadd.f32 %v1463, %v1684
        %v1739 = vadd.f32 %v1464, %v1686
        %v1740 = vadd.f32 %v1465, %v1688
        %v1741 = vadd.f32 %v1466, %v1690
        %v1742 = vadd.f32 %v1467, %v1694
        %v1743 = vadd.f32 %v1468, %v1696
        %v1744 = vadd.f32 %v1469, %v1698
        %v1745 = vadd.f32 %v1470, %v1700
        %v1746 = vadd.f32 %v1471, %v1704
        %v1747 = vadd.f32 %v1472, %v1706
        %v1748 = vadd.f32 %v1473, %v1708
        %v1749 = vadd.f32 %v1474, %v1710
        %v1750 = vadd.f32 %v1475, %v1714
        %v1751 = vadd.f32 %v1476, %v1716
        %v1752 = vadd.f32 %v1477, %v1718
        %v1753 = vadd.f32 %v1478, %v1720
        %v1754 = vld [vmem:[%s1479] sm:$0xf]
        %v1755 = vld [vmem:[%s1479 + $0x4] sm:$0xf]
        %v1756 = vld [vmem:[%s1479 + $0x8] sm:$0x1]
        %v1757 = vld [vmem:[%s1479 + $0xc] sm:$0xf]
        %v1758 = vld [vmem:[%s1479 + $0x10] sm:$0xf]
        %v1759 = vld [vmem:[%s1479 + $0x14] sm:$0x1]
        %v1760 = vld [vmem:[%s1479 + $0x18] sm:$0xf]
        %v1761 = vld [vmem:[%s1479 + $0x1c] sm:$0xf]
        %v1762 = vld [vmem:[%s1479 + $0x20] sm:$0x1]
        %v1763 = vld [vmem:[%s1479 + $0x24] sm:$0xf]
        %v1764 = vld [vmem:[%s1479 + $0x28] sm:$0xf]
        %v1765 = vld [vmem:[%s1479 + $0x2c] sm:$0x1]
        %v1766 = vld [vmem:[%s1479 + $0x30] sm:$0xf]
        %v1767 = vld [vmem:[%s1479 + $0x34] sm:$0xf]
        %v1768 = vld [vmem:[%s1479 + $0x38] sm:$0x1]
        %v1769 = vld [vmem:[%s1479 + $0x3c] sm:$0xf]
        %v1770 = vld [vmem:[%s1479 + $0x40] sm:$0xf]
        %v1771 = vld [vmem:[%s1479 + $0x44] sm:$0x1]
        %v1772 = vld [vmem:[%s1479 + $0x48] sm:$0xf]
        %v1773 = vld [vmem:[%s1479 + $0x4c] sm:$0xf]
        %v1774 = vld [vmem:[%s1479 + $0x50] sm:$0x1]
        %v1775 = vld [vmem:[%s1479 + $0x54] sm:$0xf]
        %v1776 = vld [vmem:[%s1479 + $0x58] sm:$0xf]
        %v1777 = vld [vmem:[%s1479 + $0x5c] sm:$0x1]
        %v1779 = vshrl.u32 %v1754, 16
        %v1781 = vrot.slane %v1779, 4
        %v1782 = vshll.u32 %v1754, 16
        %v1784 = vrot.slane %v1782, 5
        %v1785 = vor.u32 %v1781, %v1784
        %v1786 = vrot.slane %v1785, 4
        %v1788 = vshll.u32 %v1755, 16
        %v1790 = vrot.slane %v1788, 5
        %v1791 = vsel %vm533, %v1786, %v1790
        %v1792 = vshrl.u32 %v1755, 16
        %v1794 = vrot.slane %v1792, 4
        %v1795 = vor.u32 %v1794, %v1790
        %v1796 = vrot.slane %v1795, 4
        %v1798 = vshll.u32 %v1756, 16
        %v1800 = vrot.slane %v1798, 5
        %v1801 = vsel %vm533, %v1796, %v1800
        %v1803 = vshrl.u32 %v1757, 16
        %v1805 = vrot.slane %v1803, 4
        %v1806 = vshll.u32 %v1757, 16
        %v1808 = vrot.slane %v1806, 5
        %v1809 = vor.u32 %v1805, %v1808
        %v1810 = vrot.slane %v1809, 4
        %v1812 = vshll.u32 %v1758, 16
        %v1814 = vrot.slane %v1812, 5
        %v1815 = vsel %vm533, %v1810, %v1814
        %v1816 = vshrl.u32 %v1758, 16
        %v1818 = vrot.slane %v1816, 4
        %v1819 = vor.u32 %v1818, %v1814
        %v1820 = vrot.slane %v1819, 4
        %v1822 = vshll.u32 %v1759, 16
        %v1824 = vrot.slane %v1822, 5
        %v1825 = vsel %vm533, %v1820, %v1824
        %v1827 = vshrl.u32 %v1760, 16
        %v1829 = vrot.slane %v1827, 4
        %v1830 = vshll.u32 %v1760, 16
        %v1832 = vrot.slane %v1830, 5
        %v1833 = vor.u32 %v1829, %v1832
        %v1834 = vrot.slane %v1833, 4
        %v1836 = vshll.u32 %v1761, 16
        %v1838 = vrot.slane %v1836, 5
        %v1839 = vsel %vm533, %v1834, %v1838
        %v1840 = vshrl.u32 %v1761, 16
        %v1842 = vrot.slane %v1840, 4
        %v1843 = vor.u32 %v1842, %v1838
        %v1844 = vrot.slane %v1843, 4
        %v1846 = vshll.u32 %v1762, 16
        %v1848 = vrot.slane %v1846, 5
        %v1849 = vsel %vm533, %v1844, %v1848
        %v1851 = vshrl.u32 %v1763, 16
        %v1853 = vrot.slane %v1851, 4
        %v1854 = vshll.u32 %v1763, 16
        %v1856 = vrot.slane %v1854, 5
        %v1857 = vor.u32 %v1853, %v1856
        %v1858 = vrot.slane %v1857, 4
        %v1860 = vshll.u32 %v1764, 16
        %v1862 = vrot.slane %v1860, 5
        %v1863 = vsel %vm533, %v1858, %v1862
        %v1864 = vshrl.u32 %v1764, 16
        %v1866 = vrot.slane %v1864, 4
        %v1867 = vor.u32 %v1866, %v1862
        %v1868 = vrot.slane %v1867, 4
        %v1870 = vshll.u32 %v1765, 16
        %v1872 = vrot.slane %v1870, 5
        %v1873 = vsel %vm533, %v1868, %v1872
        %v1875 = vshrl.u32 %v1766, 16
        %v1877 = vrot.slane %v1875, 4
        %v1878 = vshll.u32 %v1766, 16
        %v1880 = vrot.slane %v1878, 5
        %v1881 = vor.u32 %v1877, %v1880
        %v1882 = vrot.slane %v1881, 4
        %v1884 = vshll.u32 %v1767, 16
        %v1886 = vrot.slane %v1884, 5
        %v1887 = vsel %vm533, %v1882, %v1886
        %v1888 = vshrl.u32 %v1767, 16
        %v1890 = vrot.slane %v1888, 4
        %v1891 = vor.u32 %v1890, %v1886
        %v1892 = vrot.slane %v1891, 4
        %v1894 = vshll.u32 %v1768, 16
        %v1896 = vrot.slane %v1894, 5
        %v1897 = vsel %vm533, %v1892, %v1896
        %v1899 = vshrl.u32 %v1769, 16
        %v1901 = vrot.slane %v1899, 4
        %v1902 = vshll.u32 %v1769, 16
        %v1904 = vrot.slane %v1902, 5
        %v1905 = vor.u32 %v1901, %v1904
        %v1906 = vrot.slane %v1905, 4
        %v1908 = vshll.u32 %v1770, 16
        %v1910 = vrot.slane %v1908, 5
        %v1911 = vsel %vm533, %v1906, %v1910
        %v1912 = vshrl.u32 %v1770, 16
        %v1914 = vrot.slane %v1912, 4
        %v1915 = vor.u32 %v1914, %v1910
        %v1916 = vrot.slane %v1915, 4
        %v1918 = vshll.u32 %v1771, 16
        %v1920 = vrot.slane %v1918, 5
        %v1921 = vsel %vm533, %v1916, %v1920
        %v1923 = vshrl.u32 %v1772, 16
        %v1925 = vrot.slane %v1923, 4
        %v1926 = vshll.u32 %v1772, 16
        %v1928 = vrot.slane %v1926, 5
        %v1929 = vor.u32 %v1925, %v1928
        %v1930 = vrot.slane %v1929, 4
        %v1932 = vshll.u32 %v1773, 16
        %v1934 = vrot.slane %v1932, 5
        %v1935 = vsel %vm533, %v1930, %v1934
        %v1936 = vshrl.u32 %v1773, 16
        %v1938 = vrot.slane %v1936, 4
        %v1939 = vor.u32 %v1938, %v1934
        %v1940 = vrot.slane %v1939, 4
        %v1942 = vshll.u32 %v1774, 16
        %v1944 = vrot.slane %v1942, 5
        %v1945 = vsel %vm533, %v1940, %v1944
        %v1947 = vshrl.u32 %v1775, 16
        %v1949 = vrot.slane %v1947, 4
        %v1950 = vshll.u32 %v1775, 16
        %v1952 = vrot.slane %v1950, 5
        %v1953 = vor.u32 %v1949, %v1952
        %v1954 = vrot.slane %v1953, 4
        %v1956 = vshll.u32 %v1776, 16
        %v1958 = vrot.slane %v1956, 5
        %v1959 = vsel %vm533, %v1954, %v1958
        %v1960 = vshrl.u32 %v1776, 16
        %v1962 = vrot.slane %v1960, 4
        %v1963 = vor.u32 %v1962, %v1958
        %v1964 = vrot.slane %v1963, 4
        %v1966 = vshll.u32 %v1777, 16
        %v1968 = vrot.slane %v1966, 5
        %v1969 = vsel %vm533, %v1964, %v1968
        %s1970 = scalar_lea.vmem %s3, 256
        %v1971 = vld [vmem:[%s1970] sm:$0xff]
        %v1972 = vld [vmem:[%s1970 + $0x8] sm:$0xff]
        %v1973 = vld [vmem:[%s1970 + $0x10] sm:$0xff]
        %v1974 = vld [vmem:[%s1970 + $0x18] sm:$0xff]
        %v1975 = vld [vmem:[%s1970 + $0x20] sm:$0xff]
        %v1976 = vld [vmem:[%s1970 + $0x28] sm:$0xff]
        %v1977 = vld [vmem:[%s1970 + $0x30] sm:$0xff]
        %v1978 = vld [vmem:[%s1970 + $0x38] sm:$0xff]
        %v1979 = vunpack.c.l.b16 %v1791
        %v1980 = vunpack.c.l.b16 %v1801
        %v1981 = vunpack.c.l.b16 %v1815
        %v1982 = vunpack.c.l.b16 %v1825
        %v1983 = vunpack.c.l.b16 %v1839
        %v1984 = vunpack.c.l.b16 %v1849
        %v1985 = vunpack.c.l.b16 %v1863
        %v1986 = vunpack.c.l.b16 %v1873
        %v1987 = vunpack.c.l.b16 %v1887
        %v1988 = vunpack.c.l.b16 %v1897
        %v1989 = vunpack.c.l.b16 %v1911
        %v1990 = vunpack.c.l.b16 %v1921
        %v1991 = vunpack.c.l.b16 %v1935
        %v1992 = vunpack.c.l.b16 %v1945
        %v1993 = vunpack.c.l.b16 %v1959
        %v1994 = vunpack.c.l.b16 %v1969
        %v1995 = vpack.c.b16 %v1980, %v1979
        %v1996 = vpack.c.b16 %v1982, %v1981
        %v1997 = vpack.c.b16 %v1984, %v1983
        %v1998 = vpack.c.b16 %v1986, %v1985
        %v1999 = vpack.c.b16 %v1988, %v1987
        %v2000 = vpack.c.b16 %v1990, %v1989
        %v2001 = vpack.c.b16 %v1992, %v1991
        %v2002 = vpack.c.b16 %v1994, %v1993
        %v2011 = vunpack.c.l.b16 %v1971
        %v2012 = vunpack.c.h.b16 %v1971
        %v2013 = vunpack.c.l.b16 %v1972
        %v2014 = vunpack.c.h.b16 %v1972
        %v2015 = vunpack.c.l.b16 %v1973
        %v2016 = vunpack.c.h.b16 %v1973
        %v2017 = vunpack.c.l.b16 %v1974
        %v2018 = vunpack.c.h.b16 %v1974
        %v2019 = vunpack.c.l.b16 %v1975
        %v2020 = vunpack.c.h.b16 %v1975
        %v2021 = vunpack.c.l.b16 %v1976
        %v2022 = vunpack.c.h.b16 %v1976
        %v2023 = vunpack.c.l.b16 %v1977
        %v2024 = vunpack.c.h.b16 %v1977
        %v2025 = vunpack.c.l.b16 %v1978
        %v2026 = vunpack.c.h.b16 %v1978
        %v2027 = vpack.c.b16 %v2013, %v2011
        %v2028 = vpack.c.b16 %v2014, %v2012
        %v2029 = vpack.c.b16 %v2017, %v2015
        %v2030 = vpack.c.b16 %v2018, %v2016
        %v2031 = vpack.c.b16 %v2021, %v2019
        %v2032 = vpack.c.b16 %v2022, %v2020
        %v2033 = vpack.c.b16 %v2025, %v2023
        %v2034 = vpack.c.b16 %v2026, %v2024
        %v2044 = vsel %vm799, %v1995, 0
        %v2047 = vsel %vm799, %v1996, 0
        %v2050 = vsel %vm799, %v1997, 0
        %v2053 = vsel %vm799, %v1998, 0
        %v2056 = vsel %vm799, %v1999, 0
        %v2059 = vsel %vm799, %v2000, 0
        %v2062 = vsel %vm799, %v2001, 0
        %v2065 = vsel %vm799, %v2002, 0
        %2067 = vmatprep.subr.bf16.mxu0 %v2028
        %2068 = vmatpush1.bf16.msra.mxu0 %v2027
        %2069 = vmatprep.subr.bf16.mxu0 %v2030
        %2070 = vmatpush1.bf16.msra.mxu0 %v2029
        %2071 = vmatprep.subr.bf16.mxu0 %v2032
        %2072 = vmatpush1.bf16.msra.mxu0 %v2031
        %2073 = vmatprep.subr.bf16.mxu0 %v2034
        %2074 = vmatpush1.bf16.msra.mxu0 %v2033
        %2075 = vmatprep.subr.bf16.mxu0 0
        %2076 = vmatpush1.bf16.msra.mxu0 0
        %2077 = vmatprep.subr.bf16.mxu0 0
        %2078 = vmatpush1.bf16.msra.mxu0 0
        %2079 = vmatprep.subr.bf16.mxu0 0
        %2080 = vmatpush1.bf16.msra.mxu0 0
        %2081 = vmatprep.subr.bf16.mxu0 0
        %2082 = vmatpush1.bf16.msra.mxu0 0
        %2083 = vmatprep.subr.bf16.mxu0 0
        %2084 = vmatpush1.bf16.msra.mxu0 0
        %2085 = vmatprep.subr.bf16.mxu0 0
        %2086 = vmatpush1.bf16.msra.mxu0 0
        %2087 = vmatprep.subr.bf16.mxu0 0
        %2088 = vmatpush1.bf16.msra.mxu0 0
        %2089 = vmatprep.subr.bf16.mxu0 0
        %2090 = vmatpush1.bf16.msra.mxu0 0
        %2091 = vmatprep.subr.bf16.mxu0 0
        %2092 = vmatpush1.bf16.msra.mxu0 0
        %2093 = vmatprep.subr.bf16.mxu0 0
        %2094 = vmatpush1.bf16.msra.mxu0 0
        %2095 = vmatprep.subr.bf16.mxu0 0
        %2096 = vmatpush1.bf16.msra.mxu0 0
        %2097 = vmatprep.subr.bf16.mxu0 0
        %2098 = vmatpush1.bf16.msra.mxu0 0
        %2099 = vmatprep.mubr.bf16.mxu0 0
        %2100 = vmatmul.mubr.bf16.gmra.mrb[0].mxu0 %v2044
        %v2101 = vpop.f32.mrb[0].mxu0
        %v2102 = vadd.f32 0.0, %v2101
        %v2103 = vpop.f32.mrb[0].mxu0
        %v2104 = vadd.f32 0.0, %v2103
        %v2105 = vpop.f32.mrb[0].mxu0
        %v2106 = vadd.f32 0.0, %v2105
        %v2107 = vpop.f32.mrb[0].mxu0
        %v2108 = vadd.f32 0.0, %v2107
        %2109 = vmatprep.mubr.bf16.mxu0 0
        %2110 = vmatmul.mubr.bf16.gmra.mrb[0].mxu0 %v2047
        %v2111 = vpop.f32.mrb[0].mxu0
        %v2112 = vadd.f32 0.0, %v2111
        %v2113 = vpop.f32.mrb[0].mxu0
        %v2114 = vadd.f32 0.0, %v2113
        %v2115 = vpop.f32.mrb[0].mxu0
        %v2116 = vadd.f32 0.0, %v2115
        %v2117 = vpop.f32.mrb[0].mxu0
        %v2118 = vadd.f32 0.0, %v2117
        %2119 = vmatprep.mubr.bf16.mxu0 0
        %2120 = vmatmul.mubr.bf16.gmra.mrb[0].mxu0 %v2050
        %v2121 = vpop.f32.mrb[0].mxu0
        %v2122 = vadd.f32 0.0, %v2121
        %v2123 = vpop.f32.mrb[0].mxu0
        %v2124 = vadd.f32 0.0, %v2123
        %v2125 = vpop.f32.mrb[0].mxu0
        %v2126 = vadd.f32 0.0, %v2125
        %v2127 = vpop.f32.mrb[0].mxu0
        %v2128 = vadd.f32 0.0, %v2127
        %2129 = vmatprep.mubr.bf16.mxu0 0
        %2130 = vmatmul.mubr.bf16.gmra.mrb[0].mxu0 %v2053
        %v2131 = vpop.f32.mrb[0].mxu0
        %v2132 = vadd.f32 0.0, %v2131
        %v2133 = vpop.f32.mrb[0].mxu0
        %v2134 = vadd.f32 0.0, %v2133
        %v2135 = vpop.f32.mrb[0].mxu0
        %v2136 = vadd.f32 0.0, %v2135
        %v2137 = vpop.f32.mrb[0].mxu0
        %v2138 = vadd.f32 0.0, %v2137
        %2139 = vmatprep.mubr.bf16.mxu0 0
        %2140 = vmatmul.mubr.bf16.gmra.mrb[0].mxu0 %v2056
        %v2141 = vpop.f32.mrb[0].mxu0
        %v2142 = vadd.f32 0.0, %v2141
        %v2143 = vpop.f32.mrb[0].mxu0
        %v2144 = vadd.f32 0.0, %v2143
        %v2145 = vpop.f32.mrb[0].mxu0
        %v2146 = vadd.f32 0.0, %v2145
        %v2147 = vpop.f32.mrb[0].mxu0
        %v2148 = vadd.f32 0.0, %v2147
        %2149 = vmatprep.mubr.bf16.mxu0 0
        %2150 = vmatmul.mubr.bf16.gmra.mrb[0].mxu0 %v2059
        %v2151 = vpop.f32.mrb[0].mxu0
        %v2152 = vadd.f32 0.0, %v2151
        %v2153 = vpop.f32.mrb[0].mxu0
        %v2154 = vadd.f32 0.0, %v2153
        %v2155 = vpop.f32.mrb[0].mxu0
        %v2156 = vadd.f32 0.0, %v2155
        %v2157 = vpop.f32.mrb[0].mxu0
        %v2158 = vadd.f32 0.0, %v2157
        %2159 = vmatprep.mubr.bf16.mxu0 0
        %2160 = vmatmul.mubr.bf16.gmra.mrb[0].mxu0 %v2062
        %v2161 = vpop.f32.mrb[0].mxu0
        %v2162 = vadd.f32 0.0, %v2161
        %v2163 = vpop.f32.mrb[0].mxu0
        %v2164 = vadd.f32 0.0, %v2163
        %v2165 = vpop.f32.mrb[0].mxu0
        %v2166 = vadd.f32 0.0, %v2165
        %v2167 = vpop.f32.mrb[0].mxu0
        %v2168 = vadd.f32 0.0, %v2167
        %2169 = vmatprep.mubr.bf16.mxu0 0
        %2170 = vmatmul.mubr.bf16.gmra.mrb[0].mxu0 %v2065
        %v2171 = vpop.f32.mrb[0].mxu0
        %v2172 = vadd.f32 0.0, %v2171
        %v2173 = vpop.f32.mrb[0].mxu0
        %v2174 = vadd.f32 0.0, %v2173
        %v2175 = vpop.f32.mrb[0].mxu0
        %v2176 = vadd.f32 0.0, %v2175
        %v2177 = vpop.f32.mrb[0].mxu0
        %v2178 = vadd.f32 0.0, %v2177
        %2179 = vdwg.mxu0
        %v2180 = vadd.f32 %v1722, %v2102
        %v2181 = vadd.f32 %v1723, %v2104
        %v2182 = vadd.f32 %v1724, %v2106
        %v2183 = vadd.f32 %v1725, %v2108
        %v2184 = vadd.f32 %v1726, %v2112
        %v2185 = vadd.f32 %v1727, %v2114
        %v2186 = vadd.f32 %v1728, %v2116
        %v2187 = vadd.f32 %v1729, %v2118
        %v2188 = vadd.f32 %v1730, %v2122
        %v2189 = vadd.f32 %v1731, %v2124
        %v2190 = vadd.f32 %v1732, %v2126
        %v2191 = vadd.f32 %v1733, %v2128
        %v2192 = vadd.f32 %v1734, %v2132
        %v2193 = vadd.f32 %v1735, %v2134
        %v2194 = vadd.f32 %v1736, %v2136
        %v2195 = vadd.f32 %v1737, %v2138
        %v2196 = vadd.f32 %v1738, %v2142
        %v2197 = vadd.f32 %v1739, %v2144
        %v2198 = vadd.f32 %v1740, %v2146
        %v2199 = vadd.f32 %v1741, %v2148
        %v2200 = vadd.f32 %v1742, %v2152
        %v2201 = vadd.f32 %v1743, %v2154
        %v2202 = vadd.f32 %v1744, %v2156
        %v2203 = vadd.f32 %v1745, %v2158
        %v2204 = vadd.f32 %v1746, %v2162
        %v2205 = vadd.f32 %v1747, %v2164
        %v2206 = vadd.f32 %v1748, %v2166
        %v2207 = vadd.f32 %v1749, %v2168
        %v2208 = vadd.f32 %v1750, %v2172
        %v2209 = vadd.f32 %v1751, %v2174
        %v2210 = vadd.f32 %v1752, %v2176
        %v2211 = vadd.f32 %v1753, %v2178
        %v2212 = vld [vmem:[%s1479] sm:$0xe]
        %v2213 = vld [vmem:[%s1479 + $0xc] sm:$0xe]
        %v2214 = vld [vmem:[%s1479 + $0x18] sm:$0xe]
        %v2215 = vld [vmem:[%s1479 + $0x24] sm:$0xe]
        %v2216 = vld [vmem:[%s1479 + $0x30] sm:$0xe]
        %v2217 = vld [vmem:[%s1479 + $0x3c] sm:$0xe]
        %v2218 = vld [vmem:[%s1479 + $0x48] sm:$0xe]
        %v2219 = vld [vmem:[%s1479 + $0x54] sm:$0xe]
        %v2244 = vrot.slane %v2212, 5
        %v2245 = vrot.slane %v2244, 4
        %v2246 = vrot.slane %v1755, 5
        %v2247 = vsel %vm1180, %v2245, %v2246
        %v2248 = vrot.slane %v2246, 4
        %v2249 = vrot.slane %v1756, 5
        %v2250 = vsel %vm1180, %v2248, %v2249
        %v2251 = vrot.slane %v2213, 5
        %v2252 = vrot.slane %v2251, 4
        %v2253 = vrot.slane %v1758, 5
        %v2254 = vsel %vm1180, %v2252, %v2253
        %v2255 = vrot.slane %v2253, 4
        %v2256 = vrot.slane %v1759, 5
        %v2257 = vsel %vm1180, %v2255, %v2256
        %v2258 = vrot.slane %v2214, 5
        %v2259 = vrot.slane %v2258, 4
        %v2260 = vrot.slane %v1761, 5
        %v2261 = vsel %vm1180, %v2259, %v2260
        %v2262 = vrot.slane %v2260, 4
        %v2263 = vrot.slane %v1762, 5
        %v2264 = vsel %vm1180, %v2262, %v2263
        %v2265 = vrot.slane %v2215, 5
        %v2266 = vrot.slane %v2265, 4
        %v2267 = vrot.slane %v1764, 5
        %v2268 = vsel %vm1180, %v2266, %v2267
        %v2269 = vrot.slane %v2267, 4
        %v2270 = vrot.slane %v1765, 5
        %v2271 = vsel %vm1180, %v2269, %v2270
        %v2272 = vrot.slane %v2216, 5
        %v2273 = vrot.slane %v2272, 4
        %v2274 = vrot.slane %v1767, 5
        %v2275 = vsel %vm1180, %v2273, %v2274
        %v2276 = vrot.slane %v2274, 4
        %v2277 = vrot.slane %v1768, 5
        %v2278 = vsel %vm1180, %v2276, %v2277
        %v2279 = vrot.slane %v2217, 5
        %v2280 = vrot.slane %v2279, 4
        %v2281 = vrot.slane %v1770, 5
        %v2282 = vsel %vm1180, %v2280, %v2281
        %v2283 = vrot.slane %v2281, 4
        %v2284 = vrot.slane %v1771, 5
        %v2285 = vsel %vm1180, %v2283, %v2284
        %v2286 = vrot.slane %v2218, 5
        %v2287 = vrot.slane %v2286, 4
        %v2288 = vrot.slane %v1773, 5
        %v2289 = vsel %vm1180, %v2287, %v2288
        %v2290 = vrot.slane %v2288, 4
        %v2291 = vrot.slane %v1774, 5
        %v2292 = vsel %vm1180, %v2290, %v2291
        %v2293 = vrot.slane %v2219, 5
        %v2294 = vrot.slane %v2293, 4
        %v2295 = vrot.slane %v1776, 5
        %v2296 = vsel %vm1180, %v2294, %v2295
        %v2297 = vrot.slane %v2295, 4
        %v2298 = vrot.slane %v1777, 5
        %v2299 = vsel %vm1180, %v2297, %v2298
        %s2300 = scalar_lea.vmem %s3, 320
        %v2301 = vld [vmem:[%s2300] sm:$0xff]
        %v2302 = vld [vmem:[%s2300 + $0x8] sm:$0xff]
        %v2303 = vld [vmem:[%s2300 + $0x10] sm:$0xff]
        %v2304 = vld [vmem:[%s2300 + $0x18] sm:$0xff]
        %v2305 = vld [vmem:[%s2300 + $0x20] sm:$0xff]
        %v2306 = vld [vmem:[%s2300 + $0x28] sm:$0xff]
        %v2307 = vld [vmem:[%s2300 + $0x30] sm:$0xff]
        %v2308 = vld [vmem:[%s2300 + $0x38] sm:$0xff]
        %v2309 = vunpack.c.l.b16 %v2247
        %v2310 = vunpack.c.l.b16 %v2250
        %v2311 = vunpack.c.l.b16 %v2254
        %v2312 = vunpack.c.l.b16 %v2257
        %v2313 = vunpack.c.l.b16 %v2261
        %v2314 = vunpack.c.l.b16 %v2264
        %v2315 = vunpack.c.l.b16 %v2268
        %v2316 = vunpack.c.l.b16 %v2271
        %v2317 = vunpack.c.l.b16 %v2275
        %v2318 = vunpack.c.l.b16 %v2278
        %v2319 = vunpack.c.l.b16 %v2282
        %v2320 = vunpack.c.l.b16 %v2285
        %v2321 = vunpack.c.l.b16 %v2289
        %v2322 = vunpack.c.l.b16 %v2292
        %v2323 = vunpack.c.l.b16 %v2296
        %v2324 = vunpack.c.l.b16 %v2299
        %v2325 = vpack.c.b16 %v2310, %v2309
        %v2326 = vpack.c.b16 %v2312, %v2311
        %v2327 = vpack.c.b16 %v2314, %v2313
        %v2328 = vpack.c.b16 %v2316, %v2315
        %v2329 = vpack.c.b16 %v2318, %v2317
        %v2330 = vpack.c.b16 %v2320, %v2319
        %v2331 = vpack.c.b16 %v2322, %v2321
        %v2332 = vpack.c.b16 %v2324, %v2323
        %v2341 = vunpack.c.l.b16 %v2301
        %v2342 = vunpack.c.h.b16 %v2301
        %v2343 = vunpack.c.l.b16 %v2302
        %v2344 = vunpack.c.h.b16 %v2302
        %v2345 = vunpack.c.l.b16 %v2303
        %v2346 = vunpack.c.h.b16 %v2303
        %v2347 = vunpack.c.l.b16 %v2304
        %v2348 = vunpack.c.h.b16 %v2304
        %v2349 = vunpack.c.l.b16 %v2305
        %v2350 = vunpack.c.h.b16 %v2305
        %v2351 = vunpack.c.l.b16 %v2306
        %v2352 = vunpack.c.h.b16 %v2306
        %v2353 = vunpack.c.l.b16 %v2307
        %v2354 = vunpack.c.h.b16 %v2307
        %v2355 = vunpack.c.l.b16 %v2308
        %v2356 = vunpack.c.h.b16 %v2308
        %v2357 = vpack.c.b16 %v2343, %v2341
        %v2358 = vpack.c.b16 %v2344, %v2342
        %v2359 = vpack.c.b16 %v2347, %v2345
        %v2360 = vpack.c.b16 %v2348, %v2346
        %v2361 = vpack.c.b16 %v2351, %v2349
        %v2362 = vpack.c.b16 %v2352, %v2350
        %v2363 = vpack.c.b16 %v2355, %v2353
        %v2364 = vpack.c.b16 %v2356, %v2354
        %v2374 = vsel %vm799, %v2325, 0
        %v2377 = vsel %vm799, %v2326, 0
        %v2380 = vsel %vm799, %v2327, 0
        %v2383 = vsel %vm799, %v2328, 0
        %v2386 = vsel %vm799, %v2329, 0
        %v2389 = vsel %vm799, %v2330, 0
        %v2392 = vsel %vm799, %v2331, 0
        %v2395 = vsel %vm799, %v2332, 0
        %2397 = vmatprep.subr.bf16.mxu0 %v2358
        %2398 = vmatpush1.bf16.msra.mxu0 %v2357
        %2399 = vmatprep.subr.bf16.mxu0 %v2360
        %2400 = vmatpush1.bf16.msra.mxu0 %v2359
        %2401 = vmatprep.subr.bf16.mxu0 %v2362
        %2402 = vmatpush1.bf16.msra.mxu0 %v2361
        %2403 = vmatprep.subr.bf16.mxu0 %v2364
        %2404 = vmatpush1.bf16.msra.mxu0 %v2363
        %2405 = vmatprep.subr.bf16.mxu0 0
        %2406 = vmatpush1.bf16.msra.mxu0 0
        %2407 = vmatprep.subr.bf16.mxu0 0
        %2408 = vmatpush1.bf16.msra.mxu0 0
        %2409 = vmatprep.subr.bf16.mxu0 0
        %2410 = vmatpush1.bf16.msra.mxu0 0
        %2411 = vmatprep.subr.bf16.mxu0 0
        %2412 = vmatpush1.bf16.msra.mxu0 0
        %2413 = vmatprep.subr.bf16.mxu0 0
        %2414 = vmatpush1.bf16.msra.mxu0 0
        %2415 = vmatprep.subr.bf16.mxu0 0
        %2416 = vmatpush1.bf16.msra.mxu0 0
        %2417 = vmatprep.subr.bf16.mxu0 0
        %2418 = vmatpush1.bf16.msra.mxu0 0
        %2419 = vmatprep.subr.bf16.mxu0 0
        %2420 = vmatpush1.bf16.msra.mxu0 0
        %2421 = vmatprep.subr.bf16.mxu0 0
        %2422 = vmatpush1.bf16.msra.mxu0 0
        %2423 = vmatprep.subr.bf16.mxu0 0
        %2424 = vmatpush1.bf16.msra.mxu0 0
        %2425 = vmatprep.subr.bf16.mxu0 0
        %2426 = vmatpush1.bf16.msra.mxu0 0
        %2427 = vmatprep.subr.bf16.mxu0 0
        %2428 = vmatpush1.bf16.msra.mxu0 0
        %2429 = vmatprep.mubr.bf16.mxu0 0
        %2430 = vmatmul.mubr.bf16.gmra.mrb[0].mxu0 %v2374
        %v2431 = vpop.f32.mrb[0].mxu0
        %v2432 = vadd.f32 0.0, %v2431
        %v2433 = vpop.f32.mrb[0].mxu0
        %v2434 = vadd.f32 0.0, %v2433
        %v2435 = vpop.f32.mrb[0].mxu0
        %v2436 = vadd.f32 0.0, %v2435
        %v2437 = vpop.f32.mrb[0].mxu0
        %v2438 = vadd.f32 0.0, %v2437
        %2439 = vmatprep.mubr.bf16.mxu0 0
        %2440 = vmatmul.mubr.bf16.gmra.mrb[0].mxu0 %v2377
        %v2441 = vpop.f32.mrb[0].mxu0
        %v2442 = vadd.f32 0.0, %v2441
        %v2443 = vpop.f32.mrb[0].mxu0
        %v2444 = vadd.f32 0.0, %v2443
        %v2445 = vpop.f32.mrb[0].mxu0
        %v2446 = vadd.f32 0.0, %v2445
        %v2447 = vpop.f32.mrb[0].mxu0
        %v2448 = vadd.f32 0.0, %v2447
        %2449 = vmatprep.mubr.bf16.mxu0 0
        %2450 = vmatmul.mubr.bf16.gmra.mrb[0].mxu0 %v2380
        %v2451 = vpop.f32.mrb[0].mxu0
        %v2452 = vadd.f32 0.0, %v2451
        %v2453 = vpop.f32.mrb[0].mxu0
        %v2454 = vadd.f32 0.0, %v2453
        %v2455 = vpop.f32.mrb[0].mxu0
        %v2456 = vadd.f32 0.0, %v2455
        %v2457 = vpop.f32.mrb[0].mxu0
        %v2458 = vadd.f32 0.0, %v2457
        %2459 = vmatprep.mubr.bf16.mxu0 0
        %2460 = vmatmul.mubr.bf16.gmra.mrb[0].mxu0 %v2383
        %v2461 = vpop.f32.mrb[0].mxu0
        %v2462 = vadd.f32 0.0, %v2461
        %v2463 = vpop.f32.mrb[0].mxu0
        %v2464 = vadd.f32 0.0, %v2463
        %v2465 = vpop.f32.mrb[0].mxu0
        %v2466 = vadd.f32 0.0, %v2465
        %v2467 = vpop.f32.mrb[0].mxu0
        %v2468 = vadd.f32 0.0, %v2467
        %2469 = vmatprep.mubr.bf16.mxu0 0
        %2470 = vmatmul.mubr.bf16.gmra.mrb[0].mxu0 %v2386
        %v2471 = vpop.f32.mrb[0].mxu0
        %v2472 = vadd.f32 0.0, %v2471
        %v2473 = vpop.f32.mrb[0].mxu0
        %v2474 = vadd.f32 0.0, %v2473
        %v2475 = vpop.f32.mrb[0].mxu0
        %v2476 = vadd.f32 0.0, %v2475
        %v2477 = vpop.f32.mrb[0].mxu0
        %v2478 = vadd.f32 0.0, %v2477
        %2479 = vmatprep.mubr.bf16.mxu0 0
        %2480 = vmatmul.mubr.bf16.gmra.mrb[0].mxu0 %v2389
        %v2481 = vpop.f32.mrb[0].mxu0
        %v2482 = vadd.f32 0.0, %v2481
        %v2483 = vpop.f32.mrb[0].mxu0
        %v2484 = vadd.f32 0.0, %v2483
        %v2485 = vpop.f32.mrb[0].mxu0
        %v2486 = vadd.f32 0.0, %v2485
        %v2487 = vpop.f32.mrb[0].mxu0
        %v2488 = vadd.f32 0.0, %v2487
        %2489 = vmatprep.mubr.bf16.mxu0 0
        %2490 = vmatmul.mubr.bf16.gmra.mrb[0].mxu0 %v2392
        %v2491 = vpop.f32.mrb[0].mxu0
        %v2492 = vadd.f32 0.0, %v2491
        %v2493 = vpop.f32.mrb[0].mxu0
        %v2494 = vadd.f32 0.0, %v2493
        %v2495 = vpop.f32.mrb[0].mxu0
        %v2496 = vadd.f32 0.0, %v2495
        %v2497 = vpop.f32.mrb[0].mxu0
        %v2498 = vadd.f32 0.0, %v2497
        %2499 = vmatprep.mubr.bf16.mxu0 0
        %2500 = vmatmul.mubr.bf16.gmra.mrb[0].mxu0 %v2395
        %v2501 = vpop.f32.mrb[0].mxu0
        %v2502 = vadd.f32 0.0, %v2501
        %v2503 = vpop.f32.mrb[0].mxu0
        %v2504 = vadd.f32 0.0, %v2503
        %v2505 = vpop.f32.mrb[0].mxu0
        %v2506 = vadd.f32 0.0, %v2505
        %v2507 = vpop.f32.mrb[0].mxu0
        %v2508 = vadd.f32 0.0, %v2507
        %2509 = vdwg.mxu0
        %v2510 = vadd.f32 %v2180, %v2432
        %v2511 = vadd.f32 %v2181, %v2434
        %v2512 = vadd.f32 %v2182, %v2436
        %v2513 = vadd.f32 %v2183, %v2438
        %v2514 = vadd.f32 %v2184, %v2442
        %v2515 = vadd.f32 %v2185, %v2444
        %v2516 = vadd.f32 %v2186, %v2446
        %v2517 = vadd.f32 %v2187, %v2448
        %v2518 = vadd.f32 %v2188, %v2452
        %v2519 = vadd.f32 %v2189, %v2454
        %v2520 = vadd.f32 %v2190, %v2456
        %v2521 = vadd.f32 %v2191, %v2458
        %v2522 = vadd.f32 %v2192, %v2462
        %v2523 = vadd.f32 %v2193, %v2464
        %v2524 = vadd.f32 %v2194, %v2466
        %v2525 = vadd.f32 %v2195, %v2468
        %v2526 = vadd.f32 %v2196, %v2472
        %v2527 = vadd.f32 %v2197, %v2474
        %v2528 = vadd.f32 %v2198, %v2476
        %v2529 = vadd.f32 %v2199, %v2478
        %v2530 = vadd.f32 %v2200, %v2482
        %v2531 = vadd.f32 %v2201, %v2484
        %v2532 = vadd.f32 %v2202, %v2486
        %v2533 = vadd.f32 %v2203, %v2488
        %v2534 = vadd.f32 %v2204, %v2492
        %v2535 = vadd.f32 %v2205, %v2494
        %v2536 = vadd.f32 %v2206, %v2496
        %v2537 = vadd.f32 %v2207, %v2498
        %v2538 = vadd.f32 %v2208, %v2502
        %v2539 = vadd.f32 %v2209, %v2504
        %v2540 = vadd.f32 %v2210, %v2506
        %v2541 = vadd.f32 %v2211, %v2508
        %s2542 = scalar_lea.vmem [#allocation2], 24
        %v2543 = vld [vmem:[%s2542] sm:$0xf]
        %v2544 = vld [vmem:[%s2542 + $0x4] sm:$0xf]
        %v2545 = vld [vmem:[%s2542 + $0xc] sm:$0xf]
        %v2546 = vld [vmem:[%s2542 + $0x10] sm:$0xf]
        %v2547 = vld [vmem:[%s2542 + $0x18] sm:$0xf]
        %v2548 = vld [vmem:[%s2542 + $0x1c] sm:$0xf]
        %v2549 = vld [vmem:[%s2542 + $0x24] sm:$0xf]
        %v2550 = vld [vmem:[%s2542 + $0x28] sm:$0xf]
        %v2551 = vld [vmem:[%s2542 + $0x30] sm:$0xf]
        %v2552 = vld [vmem:[%s2542 + $0x34] sm:$0xf]
        %v2553 = vld [vmem:[%s2542 + $0x3c] sm:$0xf]
        %v2554 = vld [vmem:[%s2542 + $0x40] sm:$0xf]
        %v2555 = vld [vmem:[%s2542 + $0x48] sm:$0xf]
        %v2556 = vld [vmem:[%s2542 + $0x4c] sm:$0xf]
        %v2557 = vld [vmem:[%s2542 + $0x54] sm:$0xf]
        %v2558 = vld [vmem:[%s2542 + $0x58] sm:$0xf]
        %s2559 = scalar_lea.vmem %s3, 384
        %v2560 = vld [vmem:[%s2559] sm:$0xff]
        %v2561 = vld [vmem:[%s2559 + $0x8] sm:$0xff]
        %v2562 = vld [vmem:[%s2559 + $0x10] sm:$0xff]
        %v2563 = vld [vmem:[%s2559 + $0x18] sm:$0xff]
        %v2564 = vld [vmem:[%s2559 + $0x20] sm:$0xff]
        %v2565 = vld [vmem:[%s2559 + $0x28] sm:$0xff]
        %v2566 = vld [vmem:[%s2559 + $0x30] sm:$0xff]
        %v2567 = vld [vmem:[%s2559 + $0x38] sm:$0xff]
        %v2584 = vunpack.c.l.b16 %v2543
        %v2585 = vunpack.c.l.b16 %v2544
        %v2586 = vunpack.c.l.b16 %v2545
        %v2587 = vunpack.c.l.b16 %v2546
        %v2588 = vunpack.c.l.b16 %v2547
        %v2589 = vunpack.c.l.b16 %v2548
        %v2590 = vunpack.c.l.b16 %v2549
        %v2591 = vunpack.c.l.b16 %v2550
        %v2592 = vunpack.c.l.b16 %v2551
        %v2593 = vunpack.c.l.b16 %v2552
        %v2594 = vunpack.c.l.b16 %v2553
        %v2595 = vunpack.c.l.b16 %v2554
        %v2596 = vunpack.c.l.b16 %v2555
        %v2597 = vunpack.c.l.b16 %v2556
        %v2598 = vunpack.c.l.b16 %v2557
        %v2599 = vunpack.c.l.b16 %v2558
        %v2600 = vpack.c.b16 %v2585, %v2584
        %v2601 = vpack.c.b16 %v2587, %v2586
        %v2602 = vpack.c.b16 %v2589, %v2588
        %v2603 = vpack.c.b16 %v2591, %v2590
        %v2604 = vpack.c.b16 %v2593, %v2592
        %v2605 = vpack.c.b16 %v2595, %v2594
        %v2606 = vpack.c.b16 %v2597, %v2596
        %v2607 = vpack.c.b16 %v2599, %v2598
        %v2616 = vunpack.c.l.b16 %v2560
        %v2617 = vunpack.c.h.b16 %v2560
        %v2618 = vunpack.c.l.b16 %v2561
        %v2619 = vunpack.c.h.b16 %v2561
        %v2620 = vunpack.c.l.b16 %v2562
        %v2621 = vunpack.c.h.b16 %v2562
        %v2622 = vunpack.c.l.b16 %v2563
        %v2623 = vunpack.c.h.b16 %v2563
        %v2624 = vunpack.c.l.b16 %v2564
        %v2625 = vunpack.c.h.b16 %v2564
        %v2626 = vunpack.c.l.b16 %v2565
        %v2627 = vunpack.c.h.b16 %v2565
        %v2628 = vunpack.c.l.b16 %v2566
        %v2629 = vunpack.c.h.b16 %v2566
        %v2630 = vunpack.c.l.b16 %v2567
        %v2631 = vunpack.c.h.b16 %v2567
        %v2632 = vpack.c.b16 %v2618, %v2616
        %v2633 = vpack.c.b16 %v2619, %v2617
        %v2634 = vpack.c.b16 %v2622, %v2620
        %v2635 = vpack.c.b16 %v2623, %v2621
        %v2636 = vpack.c.b16 %v2626, %v2624
        %v2637 = vpack.c.b16 %v2627, %v2625
        %v2638 = vpack.c.b16 %v2630, %v2628
        %v2639 = vpack.c.b16 %v2631, %v2629
        %v2649 = vsel %vm799, %v2600, 0
        %v2652 = vsel %vm799, %v2601, 0
        %v2655 = vsel %vm799, %v2602, 0
        %v2658 = vsel %vm799, %v2603, 0
        %v2661 = vsel %vm799, %v2604, 0
        %v2664 = vsel %vm799, %v2605, 0
        %v2667 = vsel %vm799, %v2606, 0
        %v2670 = vsel %vm799, %v2607, 0
        %2672 = vmatprep.subr.bf16.mxu0 %v2633
        %2673 = vmatpush1.bf16.msra.mxu0 %v2632
        %2674 = vmatprep.subr.bf16.mxu0 %v2635
        %2675 = vmatpush1.bf16.msra.mxu0 %v2634
        %2676 = vmatprep.subr.bf16.mxu0 %v2637
        %2677 = vmatpush1.bf16.msra.mxu0 %v2636
        %2678 = vmatprep.subr.bf16.mxu0 %v2639
        %2679 = vmatpush1.bf16.msra.mxu0 %v2638
        %2680 = vmatprep.subr.bf16.mxu0 0
        %2681 = vmatpush1.bf16.msra.mxu0 0
        %2682 = vmatprep.subr.bf16.mxu0 0
        %2683 = vmatpush1.bf16.msra.mxu0 0
        %2684 = vmatprep.subr.bf16.mxu0 0
        %2685 = vmatpush1.bf16.msra.mxu0 0
        %2686 = vmatprep.subr.bf16.mxu0 0
        %2687 = vmatpush1.bf16.msra.mxu0 0
        %2688 = vmatprep.subr.bf16.mxu0 0
        %2689 = vmatpush1.bf16.msra.mxu0 0
        %2690 = vmatprep.subr.bf16.mxu0 0
        %2691 = vmatpush1.bf16.msra.mxu0 0
        %2692 = vmatprep.subr.bf16.mxu0 0
        %2693 = vmatpush1.bf16.msra.mxu0 0
        %2694 = vmatprep.subr.bf16.mxu0 0
        %2695 = vmatpush1.bf16.msra.mxu0 0
        %2696 = vmatprep.subr.bf16.mxu0 0
        %2697 = vmatpush1.bf16.msra.mxu0 0
        %2698 = vmatprep.subr.bf16.mxu0 0
        %2699 = vmatpush1.bf16.msra.mxu0 0
        %2700 = vmatprep.subr.bf16.mxu0 0
        %2701 = vmatpush1.bf16.msra.mxu0 0
        %2702 = vmatprep.subr.bf16.mxu0 0
        %2703 = vmatpush1.bf16.msra.mxu0 0
        %2704 = vmatprep.mubr.bf16.mxu0 0
        %2705 = vmatmul.mubr.bf16.gmra.mrb[0].mxu0 %v2649
        %v2706 = vpop.f32.mrb[0].mxu0
        %v2707 = vadd.f32 0.0, %v2706
        %v2708 = vpop.f32.mrb[0].mxu0
        %v2709 = vadd.f32 0.0, %v2708
        %v2710 = vpop.f32.mrb[0].mxu0
        %v2711 = vadd.f32 0.0, %v2710
        %v2712 = vpop.f32.mrb[0].mxu0
        %v2713 = vadd.f32 0.0, %v2712
        %2714 = vmatprep.mubr.bf16.mxu0 0
        %2715 = vmatmul.mubr.bf16.gmra.mrb[0].mxu0 %v2652
        %v2716 = vpop.f32.mrb[0].mxu0
        %v2717 = vadd.f32 0.0, %v2716
        %v2718 = vpop.f32.mrb[0].mxu0
        %v2719 = vadd.f32 0.0, %v2718
        %v2720 = vpop.f32.mrb[0].mxu0
        %v2721 = vadd.f32 0.0, %v2720
        %v2722 = vpop.f32.mrb[0].mxu0
        %v2723 = vadd.f32 0.0, %v2722
        %2724 = vmatprep.mubr.bf16.mxu0 0
        %2725 = vmatmul.mubr.bf16.gmra.mrb[0].mxu0 %v2655
        %v2726 = vpop.f32.mrb[0].mxu0
        %v2727 = vadd.f32 0.0, %v2726
        %v2728 = vpop.f32.mrb[0].mxu0
        %v2729 = vadd.f32 0.0, %v2728
        %v2730 = vpop.f32.mrb[0].mxu0
        %v2731 = vadd.f32 0.0, %v2730
        %v2732 = vpop.f32.mrb[0].mxu0
        %v2733 = vadd.f32 0.0, %v2732
        %2734 = vmatprep.mubr.bf16.mxu0 0
        %2735 = vmatmul.mubr.bf16.gmra.mrb[0].mxu0 %v2658
        %v2736 = vpop.f32.mrb[0].mxu0
        %v2737 = vadd.f32 0.0, %v2736
        %v2738 = vpop.f32.mrb[0].mxu0
        %v2739 = vadd.f32 0.0, %v2738
        %v2740 = vpop.f32.mrb[0].mxu0
        %v2741 = vadd.f32 0.0, %v2740
        %v2742 = vpop.f32.mrb[0].mxu0
        %v2743 = vadd.f32 0.0, %v2742
        %2744 = vmatprep.mubr.bf16.mxu0 0
        %2745 = vmatmul.mubr.bf16.gmra.mrb[0].mxu0 %v2661
        %v2746 = vpop.f32.mrb[0].mxu0
        %v2747 = vadd.f32 0.0, %v2746
        %v2748 = vpop.f32.mrb[0].mxu0
        %v2749 = vadd.f32 0.0, %v2748
        %v2750 = vpop.f32.mrb[0].mxu0
        %v2751 = vadd.f32 0.0, %v2750
        %v2752 = vpop.f32.mrb[0].mxu0
        %v2753 = vadd.f32 0.0, %v2752
        %2754 = vmatprep.mubr.bf16.mxu0 0
        %2755 = vmatmul.mubr.bf16.gmra.mrb[0].mxu0 %v2664
        %v2756 = vpop.f32.mrb[0].mxu0
        %v2757 = vadd.f32 0.0, %v2756
        %v2758 = vpop.f32.mrb[0].mxu0
        %v2759 = vadd.f32 0.0, %v2758
        %v2760 = vpop.f32.mrb[0].mxu0
        %v2761 = vadd.f32 0.0, %v2760
        %v2762 = vpop.f32.mrb[0].mxu0
        %v2763 = vadd.f32 0.0, %v2762
        %2764 = vmatprep.mubr.bf16.mxu0 0
        %2765 = vmatmul.mubr.bf16.gmra.mrb[0].mxu0 %v2667
        %v2766 = vpop.f32.mrb[0].mxu0
        %v2767 = vadd.f32 0.0, %v2766
        %v2768 = vpop.f32.mrb[0].mxu0
        %v2769 = vadd.f32 0.0, %v2768
        %v2770 = vpop.f32.mrb[0].mxu0
        %v2771 = vadd.f32 0.0, %v2770
        %v2772 = vpop.f32.mrb[0].mxu0
        %v2773 = vadd.f32 0.0, %v2772
        %2774 = vmatprep.mubr.bf16.mxu0 0
        %2775 = vmatmul.mubr.bf16.gmra.mrb[0].mxu0 %v2670
        %v2776 = vpop.f32.mrb[0].mxu0
        %v2777 = vadd.f32 0.0, %v2776
        %v2778 = vpop.f32.mrb[0].mxu0
        %v2779 = vadd.f32 0.0, %v2778
        %v2780 = vpop.f32.mrb[0].mxu0
        %v2781 = vadd.f32 0.0, %v2780
        %v2782 = vpop.f32.mrb[0].mxu0
        %v2783 = vadd.f32 0.0, %v2782
        %2784 = vdwg.mxu0
        %v2785 = vadd.f32 %v2510, %v2707
        %v2786 = vadd.f32 %v2511, %v2709
        %v2787 = vadd.f32 %v2512, %v2711
        %v2788 = vadd.f32 %v2513, %v2713
        %v2789 = vadd.f32 %v2514, %v2717
        %v2790 = vadd.f32 %v2515, %v2719
        %v2791 = vadd.f32 %v2516, %v2721
        %v2792 = vadd.f32 %v2517, %v2723
        %v2793 = vadd.f32 %v2518, %v2727
        %v2794 = vadd.f32 %v2519, %v2729
        %v2795 = vadd.f32 %v2520, %v2731
        %v2796 = vadd.f32 %v2521, %v2733
        %v2797 = vadd.f32 %v2522, %v2737
        %v2798 = vadd.f32 %v2523, %v2739
        %v2799 = vadd.f32 %v2524, %v2741
        %v2800 = vadd.f32 %v2525, %v2743
        %v2801 = vadd.f32 %v2526, %v2747
        %v2802 = vadd.f32 %v2527, %v2749
        %v2803 = vadd.f32 %v2528, %v2751
        %v2804 = vadd.f32 %v2529, %v2753
        %v2805 = vadd.f32 %v2530, %v2757
        %v2806 = vadd.f32 %v2531, %v2759
        %v2807 = vadd.f32 %v2532, %v2761
        %v2808 = vadd.f32 %v2533, %v2763
        %v2809 = vadd.f32 %v2534, %v2767
        %v2810 = vadd.f32 %v2535, %v2769
        %v2811 = vadd.f32 %v2536, %v2771
        %v2812 = vadd.f32 %v2537, %v2773
        %v2813 = vadd.f32 %v2538, %v2777
        %v2814 = vadd.f32 %v2539, %v2779
        %v2815 = vadd.f32 %v2540, %v2781
        %v2816 = vadd.f32 %v2541, %v2783
        %v2817 = vld [vmem:[%s2542] sm:$0xf]
        %v2818 = vld [vmem:[%s2542 + $0x4] sm:$0xf]
        %v2819 = vld [vmem:[%s2542 + $0x8] sm:$0x1]
        %v2820 = vld [vmem:[%s2542 + $0xc] sm:$0xf]
        %v2821 = vld [vmem:[%s2542 + $0x10] sm:$0xf]
        %v2822 = vld [vmem:[%s2542 + $0x14] sm:$0x1]
        %v2823 = vld [vmem:[%s2542 + $0x18] sm:$0xf]
        %v2824 = vld [vmem:[%s2542 + $0x1c] sm:$0xf]
        %v2825 = vld [vmem:[%s2542 + $0x20] sm:$0x1]
        %v2826 = vld [vmem:[%s2542 + $0x24] sm:$0xf]
        %v2827 = vld [vmem:[%s2542 + $0x28] sm:$0xf]
        %v2828 = vld [vmem:[%s2542 + $0x2c] sm:$0x1]
        %v2829 = vld [vmem:[%s2542 + $0x30] sm:$0xf]
        %v2830 = vld [vmem:[%s2542 + $0x34] sm:$0xf]
        %v2831 = vld [vmem:[%s2542 + $0x38] sm:$0x1]
        %v2832 = vld [vmem:[%s2542 + $0x3c] sm:$0xf]
        %v2833 = vld [vmem:[%s2542 + $0x40] sm:$0xf]
        %v2834 = vld [vmem:[%s2542 + $0x44] sm:$0x1]
        %v2835 = vld [vmem:[%s2542 + $0x48] sm:$0xf]
        %v2836 = vld [vmem:[%s2542 + $0x4c] sm:$0xf]
        %v2837 = vld [vmem:[%s2542 + $0x50] sm:$0x1]
        %v2838 = vld [vmem:[%s2542 + $0x54] sm:$0xf]
        %v2839 = vld [vmem:[%s2542 + $0x58] sm:$0xf]
        %v2840 = vld [vmem:[%s2542 + $0x5c] sm:$0x1]
        %v2842 = vshrl.u32 %v2817, 16
        %v2844 = vrot.slane %v2842, 4
        %v2845 = vshll.u32 %v2817, 16
        %v2847 = vrot.slane %v2845, 5
        %v2848 = vor.u32 %v2844, %v2847
        %v2849 = vrot.slane %v2848, 4
        %v2851 = vshll.u32 %v2818, 16
        %v2853 = vrot.slane %v2851, 5
        %v2854 = vsel %vm533, %v2849, %v2853
        %v2855 = vshrl.u32 %v2818, 16
        %v2857 = vrot.slane %v2855, 4
        %v2858 = vor.u32 %v2857, %v2853
        %v2859 = vrot.slane %v2858, 4
        %v2861 = vshll.u32 %v2819, 16
        %v2863 = vrot.slane %v2861, 5
        %v2864 = vsel %vm533, %v2859, %v2863
        %v2866 = vshrl.u32 %v2820, 16
        %v2868 = vrot.slane %v2866, 4
        %v2869 = vshll.u32 %v2820, 16
        %v2871 = vrot.slane %v2869, 5
        %v2872 = vor.u32 %v2868, %v2871
        %v2873 = vrot.slane %v2872, 4
        %v2875 = vshll.u32 %v2821, 16
        %v2877 = vrot.slane %v2875, 5
        %v2878 = vsel %vm533, %v2873, %v2877
        %v2879 = vshrl.u32 %v2821, 16
        %v2881 = vrot.slane %v2879, 4
        %v2882 = vor.u32 %v2881, %v2877
        %v2883 = vrot.slane %v2882, 4
        %v2885 = vshll.u32 %v2822, 16
        %v2887 = vrot.slane %v2885, 5
        %v2888 = vsel %vm533, %v2883, %v2887
        %v2890 = vshrl.u32 %v2823, 16
        %v2892 = vrot.slane %v2890, 4
        %v2893 = vshll.u32 %v2823, 16
        %v2895 = vrot.slane %v2893, 5
        %v2896 = vor.u32 %v2892, %v2895
        %v2897 = vrot.slane %v2896, 4
        %v2899 = vshll.u32 %v2824, 16
        %v2901 = vrot.slane %v2899, 5
        %v2902 = vsel %vm533, %v2897, %v2901
        %v2903 = vshrl.u32 %v2824, 16
        %v2905 = vrot.slane %v2903, 4
        %v2906 = vor.u32 %v2905, %v2901
        %v2907 = vrot.slane %v2906, 4
        %v2909 = vshll.u32 %v2825, 16
        %v2911 = vrot.slane %v2909, 5
        %v2912 = vsel %vm533, %v2907, %v2911
        %v2914 = vshrl.u32 %v2826, 16
        %v2916 = vrot.slane %v2914, 4
        %v2917 = vshll.u32 %v2826, 16
        %v2919 = vrot.slane %v2917, 5
        %v2920 = vor.u32 %v2916, %v2919
        %v2921 = vrot.slane %v2920, 4
        %v2923 = vshll.u32 %v2827, 16
        %v2925 = vrot.slane %v2923, 5
        %v2926 = vsel %vm533, %v2921, %v2925
        %v2927 = vshrl.u32 %v2827, 16
        %v2929 = vrot.slane %v2927, 4
        %v2930 = vor.u32 %v2929, %v2925
        %v2931 = vrot.slane %v2930, 4
        %v2933 = vshll.u32 %v2828, 16
        %v2935 = vrot.slane %v2933, 5
        %v2936 = vsel %vm533, %v2931, %v2935
        %v2938 = vshrl.u32 %v2829, 16
        %v2940 = vrot.slane %v2938, 4
        %v2941 = vshll.u32 %v2829, 16
        %v2943 = vrot.slane %v2941, 5
        %v2944 = vor.u32 %v2940, %v2943
        %v2945 = vrot.slane %v2944, 4
        %v2947 = vshll.u32 %v2830, 16
        %v2949 = vrot.slane %v2947, 5
        %v2950 = vsel %vm533, %v2945, %v2949
        %v2951 = vshrl.u32 %v2830, 16
        %v2953 = vrot.slane %v2951, 4
        %v2954 = vor.u32 %v2953, %v2949
        %v2955 = vrot.slane %v2954, 4
        %v2957 = vshll.u32 %v2831, 16
        %v2959 = vrot.slane %v2957, 5
        %v2960 = vsel %vm533, %v2955, %v2959
        %v2962 = vshrl.u32 %v2832, 16
        %v2964 = vrot.slane %v2962, 4
        %v2965 = vshll.u32 %v2832, 16
        %v2967 = vrot.slane %v2965, 5
        %v2968 = vor.u32 %v2964, %v2967
        %v2969 = vrot.slane %v2968, 4
        %v2971 = vshll.u32 %v2833, 16
        %v2973 = vrot.slane %v2971, 5
        %v2974 = vsel %vm533, %v2969, %v2973
        %v2975 = vshrl.u32 %v2833, 16
        %v2977 = vrot.slane %v2975, 4
        %v2978 = vor.u32 %v2977, %v2973
        %v2979 = vrot.slane %v2978, 4
        %v2981 = vshll.u32 %v2834, 16
        %v2983 = vrot.slane %v2981, 5
        %v2984 = vsel %vm533, %v2979, %v2983
        %v2986 = vshrl.u32 %v2835, 16
        %v2988 = vrot.slane %v2986, 4
        %v2989 = vshll.u32 %v2835, 16
        %v2991 = vrot.slane %v2989, 5
        %v2992 = vor.u32 %v2988, %v2991
        %v2993 = vrot.slane %v2992, 4
        %v2995 = vshll.u32 %v2836, 16
        %v2997 = vrot.slane %v2995, 5
        %v2998 = vsel %vm533, %v2993, %v2997
        %v2999 = vshrl.u32 %v2836, 16
        %v3001 = vrot.slane %v2999, 4
        %v3002 = vor.u32 %v3001, %v2997
        %v3003 = vrot.slane %v3002, 4
        %v3005 = vshll.u32 %v2837, 16
        %v3007 = vrot.slane %v3005, 5
        %v3008 = vsel %vm533, %v3003, %v3007
        %v3010 = vshrl.u32 %v2838, 16
        %v3012 = vrot.slane %v3010, 4
        %v3013 = vshll.u32 %v2838, 16
        %v3015 = vrot.slane %v3013, 5
        %v3016 = vor.u32 %v3012, %v3015
        %v3017 = vrot.slane %v3016, 4
        %v3019 = vshll.u32 %v2839, 16
        %v3021 = vrot.slane %v3019, 5
        %v3022 = vsel %vm533, %v3017, %v3021
        %v3023 = vshrl.u32 %v2839, 16
        %v3025 = vrot.slane %v3023, 4
        %v3026 = vor.u32 %v3025, %v3021
        %v3027 = vrot.slane %v3026, 4
        %v3029 = vshll.u32 %v2840, 16
        %v3031 = vrot.slane %v3029, 5
        %v3032 = vsel %vm533, %v3027, %v3031
        %s3033 = scalar_lea.vmem %s3, 448
        %v3034 = vld [vmem:[%s3033] sm:$0xff]
        %v3035 = vld [vmem:[%s3033 + $0x8] sm:$0xff]
        %v3036 = vld [vmem:[%s3033 + $0x10] sm:$0xff]
        %v3037 = vld [vmem:[%s3033 + $0x18] sm:$0xff]
        %v3038 = vld [vmem:[%s3033 + $0x20] sm:$0xff]
        %v3039 = vld [vmem:[%s3033 + $0x28] sm:$0xff]
        %v3040 = vld [vmem:[%s3033 + $0x30] sm:$0xff]
        %v3041 = vld [vmem:[%s3033 + $0x38] sm:$0xff]
        %v3042 = vunpack.c.l.b16 %v2854
        %v3043 = vunpack.c.l.b16 %v2864
        %v3044 = vunpack.c.l.b16 %v2878
        %v3045 = vunpack.c.l.b16 %v2888
        %v3046 = vunpack.c.l.b16 %v2902
        %v3047 = vunpack.c.l.b16 %v2912
        %v3048 = vunpack.c.l.b16 %v2926
        %v3049 = vunpack.c.l.b16 %v2936
        %v3050 = vunpack.c.l.b16 %v2950
        %v3051 = vunpack.c.l.b16 %v2960
        %v3052 = vunpack.c.l.b16 %v2974
        %v3053 = vunpack.c.l.b16 %v2984
        %v3054 = vunpack.c.l.b16 %v2998
        %v3055 = vunpack.c.l.b16 %v3008
        %v3056 = vunpack.c.l.b16 %v3022
        %v3057 = vunpack.c.l.b16 %v3032
        %v3058 = vpack.c.b16 %v3043, %v3042
        %v3059 = vpack.c.b16 %v3045, %v3044
        %v3060 = vpack.c.b16 %v3047, %v3046
        %v3061 = vpack.c.b16 %v3049, %v3048
        %v3062 = vpack.c.b16 %v3051, %v3050
        %v3063 = vpack.c.b16 %v3053, %v3052
        %v3064 = vpack.c.b16 %v3055, %v3054
        %v3065 = vpack.c.b16 %v3057, %v3056
        %v3074 = vunpack.c.l.b16 %v3034
        %v3075 = vunpack.c.h.b16 %v3034
        %v3076 = vunpack.c.l.b16 %v3035
        %v3077 = vunpack.c.h.b16 %v3035
        %v3078 = vunpack.c.l.b16 %v3036
        %v3079 = vunpack.c.h.b16 %v3036
        %v3080 = vunpack.c.l.b16 %v3037
        %v3081 = vunpack.c.h.b16 %v3037
        %v3082 = vunpack.c.l.b16 %v3038
        %v3083 = vunpack.c.h.b16 %v3038
        %v3084 = vunpack.c.l.b16 %v3039
        %v3085 = vunpack.c.h.b16 %v3039
        %v3086 = vunpack.c.l.b16 %v3040
        %v3087 = vunpack.c.h.b16 %v3040
        %v3088 = vunpack.c.l.b16 %v3041
        %v3089 = vunpack.c.h.b16 %v3041
        %v3090 = vpack.c.b16 %v3076, %v3074
        %v3091 = vpack.c.b16 %v3077, %v3075
        %v3092 = vpack.c.b16 %v3080, %v3078
        %v3093 = vpack.c.b16 %v3081, %v3079
        %v3094 = vpack.c.b16 %v3084, %v3082
        %v3095 = vpack.c.b16 %v3085, %v3083
        %v3096 = vpack.c.b16 %v3088, %v3086
        %v3097 = vpack.c.b16 %v3089, %v3087
        %v3107 = vsel %vm799, %v3058, 0
        %v3110 = vsel %vm799, %v3059, 0
        %v3113 = vsel %vm799, %v3060, 0
        %v3116 = vsel %vm799, %v3061, 0
        %v3119 = vsel %vm799, %v3062, 0
        %v3122 = vsel %vm799, %v3063, 0
        %v3125 = vsel %vm799, %v3064, 0
        %v3128 = vsel %vm799, %v3065, 0
        %3130 = vmatprep.subr.bf16.mxu0 %v3091
        %3131 = vmatpush1.bf16.msra.mxu0 %v3090
        %3132 = vmatprep.subr.bf16.mxu0 %v3093
        %3133 = vmatpush1.bf16.msra.mxu0 %v3092
        %3134 = vmatprep.subr.bf16.mxu0 %v3095
        %3135 = vmatpush1.bf16.msra.mxu0 %v3094
        %3136 = vmatprep.subr.bf16.mxu0 %v3097
        %3137 = vmatpush1.bf16.msra.mxu0 %v3096
        %3138 = vmatprep.subr.bf16.mxu0 0
        %3139 = vmatpush1.bf16.msra.mxu0 0
        %3140 = vmatprep.subr.bf16.mxu0 0
        %3141 = vmatpush1.bf16.msra.mxu0 0
        %3142 = vmatprep.subr.bf16.mxu0 0
        %3143 = vmatpush1.bf16.msra.mxu0 0
        %3144 = vmatprep.subr.bf16.mxu0 0
        %3145 = vmatpush1.bf16.msra.mxu0 0
        %3146 = vmatprep.subr.bf16.mxu0 0
        %3147 = vmatpush1.bf16.msra.mxu0 0
        %3148 = vmatprep.subr.bf16.mxu0 0
        %3149 = vmatpush1.bf16.msra.mxu0 0
        %3150 = vmatprep.subr.bf16.mxu0 0
        %3151 = vmatpush1.bf16.msra.mxu0 0
        %3152 = vmatprep.subr.bf16.mxu0 0
        %3153 = vmatpush1.bf16.msra.mxu0 0
        %3154 = vmatprep.subr.bf16.mxu0 0
        %3155 = vmatpush1.bf16.msra.mxu0 0
        %3156 = vmatprep.subr.bf16.mxu0 0
        %3157 = vmatpush1.bf16.msra.mxu0 0
        %3158 = vmatprep.subr.bf16.mxu0 0
        %3159 = vmatpush1.bf16.msra.mxu0 0
        %3160 = vmatprep.subr.bf16.mxu0 0
        %3161 = vmatpush1.bf16.msra.mxu0 0
        %3162 = vmatprep.mubr.bf16.mxu0 0
        %3163 = vmatmul.mubr.bf16.gmra.mrb[0].mxu0 %v3107
        %v3164 = vpop.f32.mrb[0].mxu0
        %v3165 = vadd.f32 0.0, %v3164
        %v3166 = vpop.f32.mrb[0].mxu0
        %v3167 = vadd.f32 0.0, %v3166
        %v3168 = vpop.f32.mrb[0].mxu0
        %v3169 = vadd.f32 0.0, %v3168
        %v3170 = vpop.f32.mrb[0].mxu0
        %v3171 = vadd.f32 0.0, %v3170
        %3172 = vmatprep.mubr.bf16.mxu0 0
        %3173 = vmatmul.mubr.bf16.gmra.mrb[0].mxu0 %v3110
        %v3174 = vpop.f32.mrb[0].mxu0
        %v3175 = vadd.f32 0.0, %v3174
        %v3176 = vpop.f32.mrb[0].mxu0
        %v3177 = vadd.f32 0.0, %v3176
        %v3178 = vpop.f32.mrb[0].mxu0
        %v3179 = vadd.f32 0.0, %v3178
        %v3180 = vpop.f32.mrb[0].mxu0
        %v3181 = vadd.f32 0.0, %v3180
        %3182 = vmatprep.mubr.bf16.mxu0 0
        %3183 = vmatmul.mubr.bf16.gmra.mrb[0].mxu0 %v3113
        %v3184 = vpop.f32.mrb[0].mxu0
        %v3185 = vadd.f32 0.0, %v3184
        %v3186 = vpop.f32.mrb[0].mxu0
        %v3187 = vadd.f32 0.0, %v3186
        %v3188 = vpop.f32.mrb[0].mxu0
        %v3189 = vadd.f32 0.0, %v3188
        %v3190 = vpop.f32.mrb[0].mxu0
        %v3191 = vadd.f32 0.0, %v3190
        %3192 = vmatprep.mubr.bf16.mxu0 0
        %3193 = vmatmul.mubr.bf16.gmra.mrb[0].mxu0 %v3116
        %v3194 = vpop.f32.mrb[0].mxu0
        %v3195 = vadd.f32 0.0, %v3194
        %v3196 = vpop.f32.mrb[0].mxu0
        %v3197 = vadd.f32 0.0, %v3196
        %v3198 = vpop.f32.mrb[0].mxu0
        %v3199 = vadd.f32 0.0, %v3198
        %v3200 = vpop.f32.mrb[0].mxu0
        %v3201 = vadd.f32 0.0, %v3200
        %3202 = vmatprep.mubr.bf16.mxu0 0
        %3203 = vmatmul.mubr.bf16.gmra.mrb[0].mxu0 %v3119
        %v3204 = vpop.f32.mrb[0].mxu0
        %v3205 = vadd.f32 0.0, %v3204
        %v3206 = vpop.f32.mrb[0].mxu0
        %v3207 = vadd.f32 0.0, %v3206
        %v3208 = vpop.f32.mrb[0].mxu0
        %v3209 = vadd.f32 0.0, %v3208
        %v3210 = vpop.f32.mrb[0].mxu0
        %v3211 = vadd.f32 0.0, %v3210
        %3212 = vmatprep.mubr.bf16.mxu0 0
        %3213 = vmatmul.mubr.bf16.gmra.mrb[0].mxu0 %v3122
        %v3214 = vpop.f32.mrb[0].mxu0
        %v3215 = vadd.f32 0.0, %v3214
        %v3216 = vpop.f32.mrb[0].mxu0
        %v3217 = vadd.f32 0.0, %v3216
        %v3218 = vpop.f32.mrb[0].mxu0
        %v3219 = vadd.f32 0.0, %v3218
        %v3220 = vpop.f32.mrb[0].mxu0
        %v3221 = vadd.f32 0.0, %v3220
        %3222 = vmatprep.mubr.bf16.mxu0 0
        %3223 = vmatmul.mubr.bf16.gmra.mrb[0].mxu0 %v3125
        %v3224 = vpop.f32.mrb[0].mxu0
        %v3225 = vadd.f32 0.0, %v3224
        %v3226 = vpop.f32.mrb[0].mxu0
        %v3227 = vadd.f32 0.0, %v3226
        %v3228 = vpop.f32.mrb[0].mxu0
        %v3229 = vadd.f32 0.0, %v3228
        %v3230 = vpop.f32.mrb[0].mxu0
        %v3231 = vadd.f32 0.0, %v3230
        %3232 = vmatprep.mubr.bf16.mxu0 0
        %3233 = vmatmul.mubr.bf16.gmra.mrb[0].mxu0 %v3128
        %v3234 = vpop.f32.mrb[0].mxu0
        %v3235 = vadd.f32 0.0, %v3234
        %v3236 = vpop.f32.mrb[0].mxu0
        %v3237 = vadd.f32 0.0, %v3236
        %v3238 = vpop.f32.mrb[0].mxu0
        %v3239 = vadd.f32 0.0, %v3238
        %v3240 = vpop.f32.mrb[0].mxu0
        %v3241 = vadd.f32 0.0, %v3240
        %3242 = vdwg.mxu0
        %v3243 = vadd.f32 %v2785, %v3165
        %v3244 = vadd.f32 %v2786, %v3167
        %v3245 = vadd.f32 %v2787, %v3169
        %v3246 = vadd.f32 %v2788, %v3171
        %v3247 = vadd.f32 %v2789, %v3175
        %v3248 = vadd.f32 %v2790, %v3177
        %v3249 = vadd.f32 %v2791, %v3179
        %v3250 = vadd.f32 %v2792, %v3181
        %v3251 = vadd.f32 %v2793, %v3185
        %v3252 = vadd.f32 %v2794, %v3187
        %v3253 = vadd.f32 %v2795, %v3189
        %v3254 = vadd.f32 %v2796, %v3191
        %v3255 = vadd.f32 %v2797, %v3195
        %v3256 = vadd.f32 %v2798, %v3197
        %v3257 = vadd.f32 %v2799, %v3199
        %v3258 = vadd.f32 %v2800, %v3201
        %v3259 = vadd.f32 %v2801, %v3205
        %v3260 = vadd.f32 %v2802, %v3207
        %v3261 = vadd.f32 %v2803, %v3209
        %v3262 = vadd.f32 %v2804, %v3211
        %v3263 = vadd.f32 %v2805, %v3215
        %v3264 = vadd.f32 %v2806, %v3217
        %v3265 = vadd.f32 %v2807, %v3219
        %v3266 = vadd.f32 %v2808, %v3221
        %v3267 = vadd.f32 %v2809, %v3225
        %v3268 = vadd.f32 %v2810, %v3227
        %v3269 = vadd.f32 %v2811, %v3229
        %v3270 = vadd.f32 %v2812, %v3231
        %v3271 = vadd.f32 %v2813, %v3235
        %v3272 = vadd.f32 %v2814, %v3237
        %v3273 = vadd.f32 %v2815, %v3239
        %v3274 = vadd.f32 %v2816, %v3241
        %v3275 = vld [vmem:[%s2542] sm:$0xe]
        %v3276 = vld [vmem:[%s2542 + $0xc] sm:$0xe]
        %v3277 = vld [vmem:[%s2542 + $0x18] sm:$0xe]
        %v3278 = vld [vmem:[%s2542 + $0x24] sm:$0xe]
        %v3279 = vld [vmem:[%s2542 + $0x30] sm:$0xe]
        %v3280 = vld [vmem:[%s2542 + $0x3c] sm:$0xe]
        %v3281 = vld [vmem:[%s2542 + $0x48] sm:$0xe]
        %v3282 = vld [vmem:[%s2542 + $0x54] sm:$0xe]
        %v3307 = vrot.slane %v3275, 5
        %v3308 = vrot.slane %v3307, 4
        %v3309 = vrot.slane %v2818, 5
        %v3310 = vsel %vm1180, %v3308, %v3309
        %v3311 = vrot.slane %v3309, 4
        %v3312 = vrot.slane %v2819, 5
        %v3313 = vsel %vm1180, %v3311, %v3312
        %v3314 = vrot.slane %v3276, 5
        %v3315 = vrot.slane %v3314, 4
        %v3316 = vrot.slane %v2821, 5
        %v3317 = vsel %vm1180, %v3315, %v3316
        %v3318 = vrot.slane %v3316, 4
        %v3319 = vrot.slane %v2822, 5
        %v3320 = vsel %vm1180, %v3318, %v3319
        %v3321 = vrot.slane %v3277, 5
        %v3322 = vrot.slane %v3321, 4
        %v3323 = vrot.slane %v2824, 5
        %v3324 = vsel %vm1180, %v3322, %v3323
        %v3325 = vrot.slane %v3323, 4
        %v3326 = vrot.slane %v2825, 5
        %v3327 = vsel %vm1180, %v3325, %v3326
        %v3328 = vrot.slane %v3278, 5
        %v3329 = vrot.slane %v3328, 4
        %v3330 = vrot.slane %v2827, 5
        %v3331 = vsel %vm1180, %v3329, %v3330
        %v3332 = vrot.slane %v3330, 4
        %v3333 = vrot.slane %v2828, 5
        %v3334 = vsel %vm1180, %v3332, %v3333
        %v3335 = vrot.slane %v3279, 5
        %v3336 = vrot.slane %v3335, 4
        %v3337 = vrot.slane %v2830, 5
        %v3338 = vsel %vm1180, %v3336, %v3337
        %v3339 = vrot.slane %v3337, 4
        %v3340 = vrot.slane %v2831, 5
        %v3341 = vsel %vm1180, %v3339, %v3340
        %v3342 = vrot.slane %v3280, 5
        %v3343 = vrot.slane %v3342, 4
        %v3344 = vrot.slane %v2833, 5
        %v3345 = vsel %vm1180, %v3343, %v3344
        %v3346 = vrot.slane %v3344, 4
        %v3347 = vrot.slane %v2834, 5
        %v3348 = vsel %vm1180, %v3346, %v3347
        %v3349 = vrot.slane %v3281, 5
        %v3350 = vrot.slane %v3349, 4
        %v3351 = vrot.slane %v2836, 5
        %v3352 = vsel %vm1180, %v3350, %v3351
        %v3353 = vrot.slane %v3351, 4
        %v3354 = vrot.slane %v2837, 5
        %v3355 = vsel %vm1180, %v3353, %v3354
        %v3356 = vrot.slane %v3282, 5
        %v3357 = vrot.slane %v3356, 4
        %v3358 = vrot.slane %v2839, 5
        %v3359 = vsel %vm1180, %v3357, %v3358
        %v3360 = vrot.slane %v3358, 4
        %v3361 = vrot.slane %v2840, 5
        %v3362 = vsel %vm1180, %v3360, %v3361
        %s3363 = scalar_lea.vmem %s3, 512
        %v3364 = vld [vmem:[%s3363] sm:$0xff]
        %v3365 = vld [vmem:[%s3363 + $0x8] sm:$0xff]
        %v3366 = vld [vmem:[%s3363 + $0x10] sm:$0xff]
        %v3367 = vld [vmem:[%s3363 + $0x18] sm:$0xff]
        %v3368 = vld [vmem:[%s3363 + $0x20] sm:$0xff]
        %v3369 = vld [vmem:[%s3363 + $0x28] sm:$0xff]
        %v3370 = vld [vmem:[%s3363 + $0x30] sm:$0xff]
        %v3371 = vld [vmem:[%s3363 + $0x38] sm:$0xff]
        %v3372 = vunpack.c.l.b16 %v3310
        %v3373 = vunpack.c.l.b16 %v3313
        %v3374 = vunpack.c.l.b16 %v3317
        %v3375 = vunpack.c.l.b16 %v3320
        %v3376 = vunpack.c.l.b16 %v3324
        %v3377 = vunpack.c.l.b16 %v3327
        %v3378 = vunpack.c.l.b16 %v3331
        %v3379 = vunpack.c.l.b16 %v3334
        %v3380 = vunpack.c.l.b16 %v3338
        %v3381 = vunpack.c.l.b16 %v3341
        %v3382 = vunpack.c.l.b16 %v3345
        %v3383 = vunpack.c.l.b16 %v3348
        %v3384 = vunpack.c.l.b16 %v3352
        %v3385 = vunpack.c.l.b16 %v3355
        %v3386 = vunpack.c.l.b16 %v3359
        %v3387 = vunpack.c.l.b16 %v3362
        %v3388 = vpack.c.b16 %v3373, %v3372
        %v3389 = vpack.c.b16 %v3375, %v3374
        %v3390 = vpack.c.b16 %v3377, %v3376
        %v3391 = vpack.c.b16 %v3379, %v3378
        %v3392 = vpack.c.b16 %v3381, %v3380
        %v3393 = vpack.c.b16 %v3383, %v3382
        %v3394 = vpack.c.b16 %v3385, %v3384
        %v3395 = vpack.c.b16 %v3387, %v3386
        %v3404 = vunpack.c.l.b16 %v3364
        %v3405 = vunpack.c.h.b16 %v3364
        %v3406 = vunpack.c.l.b16 %v3365
        %v3407 = vunpack.c.h.b16 %v3365
        %v3408 = vunpack.c.l.b16 %v3366
        %v3409 = vunpack.c.h.b16 %v3366
        %v3410 = vunpack.c.l.b16 %v3367
        %v3411 = vunpack.c.h.b16 %v3367
        %v3412 = vunpack.c.l.b16 %v3368
        %v3413 = vunpack.c.h.b16 %v3368
        %v3414 = vunpack.c.l.b16 %v3369
        %v3415 = vunpack.c.h.b16 %v3369
        %v3416 = vunpack.c.l.b16 %v3370
        %v3417 = vunpack.c.h.b16 %v3370
        %v3418 = vunpack.c.l.b16 %v3371
        %v3419 = vunpack.c.h.b16 %v3371
        %v3420 = vpack.c.b16 %v3406, %v3404
        %v3421 = vpack.c.b16 %v3407, %v3405
        %v3422 = vpack.c.b16 %v3410, %v3408
        %v3423 = vpack.c.b16 %v3411, %v3409
        %v3424 = vpack.c.b16 %v3414, %v3412
        %v3425 = vpack.c.b16 %v3415, %v3413
        %v3426 = vpack.c.b16 %v3418, %v3416
        %v3427 = vpack.c.b16 %v3419, %v3417
        %v3437 = vsel %vm799, %v3388, 0
        %v3440 = vsel %vm799, %v3389, 0
        %v3443 = vsel %vm799, %v3390, 0
        %v3446 = vsel %vm799, %v3391, 0
        %v3449 = vsel %vm799, %v3392, 0
        %v3452 = vsel %vm799, %v3393, 0
        %v3455 = vsel %vm799, %v3394, 0
        %v3458 = vsel %vm799, %v3395, 0
        %3460 = vmatprep.subr.bf16.mxu0 %v3421
        %3461 = vmatpush1.bf16.msra.mxu0 %v3420
        %3462 = vmatprep.subr.bf16.mxu0 %v3423
        %3463 = vmatpush1.bf16.msra.mxu0 %v3422
        %3464 = vmatprep.subr.bf16.mxu0 %v3425
        %3465 = vmatpush1.bf16.msra.mxu0 %v3424
        %3466 = vmatprep.subr.bf16.mxu0 %v3427
        %3467 = vmatpush1.bf16.msra.mxu0 %v3426
        %3468 = vmatprep.subr.bf16.mxu0 0
        %3469 = vmatpush1.bf16.msra.mxu0 0
        %3470 = vmatprep.subr.bf16.mxu0 0
        %3471 = vmatpush1.bf16.msra.mxu0 0
        %3472 = vmatprep.subr.bf16.mxu0 0
        %3473 = vmatpush1.bf16.msra.mxu0 0
        %3474 = vmatprep.subr.bf16.mxu0 0
        %3475 = vmatpush1.bf16.msra.mxu0 0
        %3476 = vmatprep.subr.bf16.mxu0 0
        %3477 = vmatpush1.bf16.msra.mxu0 0
        %3478 = vmatprep.subr.bf16.mxu0 0
        %3479 = vmatpush1.bf16.msra.mxu0 0
        %3480 = vmatprep.subr.bf16.mxu0 0
        %3481 = vmatpush1.bf16.msra.mxu0 0
        %3482 = vmatprep.subr.bf16.mxu0 0
        %3483 = vmatpush1.bf16.msra.mxu0 0
        %3484 = vmatprep.subr.bf16.mxu0 0
        %3485 = vmatpush1.bf16.msra.mxu0 0
        %3486 = vmatprep.subr.bf16.mxu0 0
        %3487 = vmatpush1.bf16.msra.mxu0 0
        %3488 = vmatprep.subr.bf16.mxu0 0
        %3489 = vmatpush1.bf16.msra.mxu0 0
        %3490 = vmatprep.subr.bf16.mxu0 0
        %3491 = vmatpush1.bf16.msra.mxu0 0
        %3492 = vmatprep.mubr.bf16.mxu0 0
        %3493 = vmatmul.mubr.bf16.gmra.mrb[0].mxu0 %v3437
        %v3494 = vpop.f32.mrb[0].mxu0
        %v3495 = vadd.f32 0.0, %v3494
        %v3496 = vpop.f32.mrb[0].mxu0
        %v3497 = vadd.f32 0.0, %v3496
        %v3498 = vpop.f32.mrb[0].mxu0
        %v3499 = vadd.f32 0.0, %v3498
        %v3500 = vpop.f32.mrb[0].mxu0
        %v3501 = vadd.f32 0.0, %v3500
        %3502 = vmatprep.mubr.bf16.mxu0 0
        %3503 = vmatmul.mubr.bf16.gmra.mrb[0].mxu0 %v3440
        %v3504 = vpop.f32.mrb[0].mxu0
        %v3505 = vadd.f32 0.0, %v3504
        %v3506 = vpop.f32.mrb[0].mxu0
        %v3507 = vadd.f32 0.0, %v3506
        %v3508 = vpop.f32.mrb[0].mxu0
        %v3509 = vadd.f32 0.0, %v3508
        %v3510 = vpop.f32.mrb[0].mxu0
        %v3511 = vadd.f32 0.0, %v3510
        %3512 = vmatprep.mubr.bf16.mxu0 0
        %3513 = vmatmul.mubr.bf16.gmra.mrb[0].mxu0 %v3443
        %v3514 = vpop.f32.mrb[0].mxu0
        %v3515 = vadd.f32 0.0, %v3514
        %v3516 = vpop.f32.mrb[0].mxu0
        %v3517 = vadd.f32 0.0, %v3516
        %v3518 = vpop.f32.mrb[0].mxu0
        %v3519 = vadd.f32 0.0, %v3518
        %v3520 = vpop.f32.mrb[0].mxu0
        %v3521 = vadd.f32 0.0, %v3520
        %3522 = vmatprep.mubr.bf16.mxu0 0
        %3523 = vmatmul.mubr.bf16.gmra.mrb[0].mxu0 %v3446
        %v3524 = vpop.f32.mrb[0].mxu0
        %v3525 = vadd.f32 0.0, %v3524
        %v3526 = vpop.f32.mrb[0].mxu0
        %v3527 = vadd.f32 0.0, %v3526
        %v3528 = vpop.f32.mrb[0].mxu0
        %v3529 = vadd.f32 0.0, %v3528
        %v3530 = vpop.f32.mrb[0].mxu0
        %v3531 = vadd.f32 0.0, %v3530
        %3532 = vmatprep.mubr.bf16.mxu0 0
        %3533 = vmatmul.mubr.bf16.gmra.mrb[0].mxu0 %v3449
        %v3534 = vpop.f32.mrb[0].mxu0
        %v3535 = vadd.f32 0.0, %v3534
        %v3536 = vpop.f32.mrb[0].mxu0
        %v3537 = vadd.f32 0.0, %v3536
        %v3538 = vpop.f32.mrb[0].mxu0
        %v3539 = vadd.f32 0.0, %v3538
        %v3540 = vpop.f32.mrb[0].mxu0
        %v3541 = vadd.f32 0.0, %v3540
        %3542 = vmatprep.mubr.bf16.mxu0 0
        %3543 = vmatmul.mubr.bf16.gmra.mrb[0].mxu0 %v3452
        %v3544 = vpop.f32.mrb[0].mxu0
        %v3545 = vadd.f32 0.0, %v3544
        %v3546 = vpop.f32.mrb[0].mxu0
        %v3547 = vadd.f32 0.0, %v3546
        %v3548 = vpop.f32.mrb[0].mxu0
        %v3549 = vadd.f32 0.0, %v3548
        %v3550 = vpop.f32.mrb[0].mxu0
        %v3551 = vadd.f32 0.0, %v3550
        %3552 = vmatprep.mubr.bf16.mxu0 0
        %3553 = vmatmul.mubr.bf16.gmra.mrb[0].mxu0 %v3455
        %v3554 = vpop.f32.mrb[0].mxu0
        %v3555 = vadd.f32 0.0, %v3554
        %v3556 = vpop.f32.mrb[0].mxu0
        %v3557 = vadd.f32 0.0, %v3556
        %v3558 = vpop.f32.mrb[0].mxu0
        %v3559 = vadd.f32 0.0, %v3558
        %v3560 = vpop.f32.mrb[0].mxu0
        %v3561 = vadd.f32 0.0, %v3560
        %3562 = vmatprep.mubr.bf16.mxu0 0
        %3563 = vmatmul.mubr.bf16.gmra.mrb[0].mxu0 %v3458
        %v3564 = vpop.f32.mrb[0].mxu0
        %v3565 = vadd.f32 0.0, %v3564
        %v3566 = vpop.f32.mrb[0].mxu0
        %v3567 = vadd.f32 0.0, %v3566
        %v3568 = vpop.f32.mrb[0].mxu0
        %v3569 = vadd.f32 0.0, %v3568
        %v3570 = vpop.f32.mrb[0].mxu0
        %v3571 = vadd.f32 0.0, %v3570
        %3572 = vdwg.mxu0
        %v3573 = vadd.f32 %v3243, %v3495
        %v3574 = vadd.f32 %v3244, %v3497
        %v3575 = vadd.f32 %v3245, %v3499
        %v3576 = vadd.f32 %v3246, %v3501
        %v3577 = vadd.f32 %v3247, %v3505
        %v3578 = vadd.f32 %v3248, %v3507
        %v3579 = vadd.f32 %v3249, %v3509
        %v3580 = vadd.f32 %v3250, %v3511
        %v3581 = vadd.f32 %v3251, %v3515
        %v3582 = vadd.f32 %v3252, %v3517
        %v3583 = vadd.f32 %v3253, %v3519
        %v3584 = vadd.f32 %v3254, %v3521
        %v3585 = vadd.f32 %v3255, %v3525
        %v3586 = vadd.f32 %v3256, %v3527
        %v3587 = vadd.f32 %v3257, %v3529
        %v3588 = vadd.f32 %v3258, %v3531
        %v3589 = vadd.f32 %v3259, %v3535
        %v3590 = vadd.f32 %v3260, %v3537
        %v3591 = vadd.f32 %v3261, %v3539
        %v3592 = vadd.f32 %v3262, %v3541
        %v3593 = vadd.f32 %v3263, %v3545
        %v3594 = vadd.f32 %v3264, %v3547
        %v3595 = vadd.f32 %v3265, %v3549
        %v3596 = vadd.f32 %v3266, %v3551
        %v3597 = vadd.f32 %v3267, %v3555
        %v3598 = vadd.f32 %v3268, %v3557
        %v3599 = vadd.f32 %v3269, %v3559
        %v3600 = vadd.f32 %v3270, %v3561
        %v3601 = vadd.f32 %v3271, %v3565
        %v3602 = vadd.f32 %v3272, %v3567
        %v3603 = vadd.f32 %v3273, %v3569
        %v3604 = vadd.f32 %v3274, %v3571
        %v3605 = vld [vmem:[%s4] sm:$0x3]
        %v3607 = vlaneseq
        %v3608 = vshrl.u32 %v3607, 7
        %v3609 = vsub.s32 0, %v3608
        %v3610 = vrot.slane %v3605, %v3609
        %v3611 = vlaneseq
        %v3612 = vshrl.u32 %v3611, 7
        %v3613 = vsub.s32 1, %v3612
        %v3614 = vrot.slane %v3605, %v3613
        %v3617 = vadd.f32 %v3573, %v3610
        %v3618 = vadd.f32 %v3574, %v3614
        %v3619 = vadd.f32 %v3575, %v3610
        %v3620 = vadd.f32 %v3576, %v3614
        %v3621 = vadd.f32 %v3577, %v3610
        %v3622 = vadd.f32 %v3578, %v3614
        %v3623 = vadd.f32 %v3579, %v3610
        %v3624 = vadd.f32 %v3580, %v3614
        %v3625 = vadd.f32 %v3581, %v3610
        %v3626 = vadd.f32 %v3582, %v3614
        %v3627 = vadd.f32 %v3583, %v3610
        %v3628 = vadd.f32 %v3584, %v3614
        %v3629 = vadd.f32 %v3585, %v3610
        %v3630 = vadd.f32 %v3586, %v3614
        %v3631 = vadd.f32 %v3587, %v3610
        %v3632 = vadd.f32 %v3588, %v3614
        %v3633 = vadd.f32 %v3589, %v3610
        %v3634 = vadd.f32 %v3590, %v3614
        %v3635 = vadd.f32 %v3591, %v3610
        %v3636 = vadd.f32 %v3592, %v3614
        %v3637 = vadd.f32 %v3593, %v3610
        %v3638 = vadd.f32 %v3594, %v3614
        %v3639 = vadd.f32 %v3595, %v3610
        %v3640 = vadd.f32 %v3596, %v3614
        %v3641 = vadd.f32 %v3597, %v3610
        %v3642 = vadd.f32 %v3598, %v3614
        %v3643 = vadd.f32 %v3599, %v3610
        %v3644 = vadd.f32 %v3600, %v3614
        %v3645 = vadd.f32 %v3601, %v3610
        %v3646 = vadd.f32 %v3602, %v3614
        %v3647 = vadd.f32 %v3603, %v3610
        %v3648 = vadd.f32 %v3604, %v3614
        %v3649 = vmax.f32 %v3617, 0.0
        %v3650 = vmax.f32 %v3618, 0.0
        %v3651 = vmax.f32 %v3619, 0.0
        %v3652 = vmax.f32 %v3620, 0.0
        %v3653 = vmax.f32 %v3621, 0.0
        %v3654 = vmax.f32 %v3622, 0.0
        %v3655 = vmax.f32 %v3623, 0.0
        %v3656 = vmax.f32 %v3624, 0.0
        %v3657 = vmax.f32 %v3625, 0.0
        %v3658 = vmax.f32 %v3626, 0.0
        %v3659 = vmax.f32 %v3627, 0.0
        %v3660 = vmax.f32 %v3628, 0.0
        %v3661 = vmax.f32 %v3629, 0.0
        %v3662 = vmax.f32 %v3630, 0.0
        %v3663 = vmax.f32 %v3631, 0.0
        %v3664 = vmax.f32 %v3632, 0.0
        %v3665 = vmax.f32 %v3633, 0.0
        %v3666 = vmax.f32 %v3634, 0.0
        %v3667 = vmax.f32 %v3635, 0.0
        %v3668 = vmax.f32 %v3636, 0.0
        %v3669 = vmax.f32 %v3637, 0.0
        %v3670 = vmax.f32 %v3638, 0.0
        %v3671 = vmax.f32 %v3639, 0.0
        %v3672 = vmax.f32 %v3640, 0.0
        %v3673 = vmax.f32 %v3641, 0.0
        %v3674 = vmax.f32 %v3642, 0.0
        %v3675 = vmax.f32 %v3643, 0.0
        %v3676 = vmax.f32 %v3644, 0.0
        %v3677 = vmax.f32 %v3645, 0.0
        %v3678 = vmax.f32 %v3646, 0.0
        %v3679 = vmax.f32 %v3647, 0.0
        %v3680 = vmax.f32 %v3648, 0.0
        %v3681 = vld [vmem:[%s5] sm:$0xff]
        %v3682 = vld [vmem:[%s5 + $0x8] sm:$0xff]
        %v3683 = vpack.c.bf16 %v3651, %v3649
        %v3684 = vpack.c.bf16 %v3652, %v3650
        %v3685 = vpack.c.bf16 %v3655, %v3653
        %v3686 = vpack.c.bf16 %v3656, %v3654
        %v3687 = vpack.c.bf16 %v3659, %v3657
        %v3688 = vpack.c.bf16 %v3660, %v3658
        %v3689 = vpack.c.bf16 %v3663, %v3661
        %v3690 = vpack.c.bf16 %v3664, %v3662
        %v3691 = vpack.c.bf16 %v3667, %v3665
        %v3692 = vpack.c.bf16 %v3668, %v3666
        %v3693 = vpack.c.bf16 %v3671, %v3669
        %v3694 = vpack.c.bf16 %v3672, %v3670
        %v3695 = vpack.c.bf16 %v3675, %v3673
        %v3696 = vpack.c.bf16 %v3676, %v3674
        %v3697 = vpack.c.bf16 %v3679, %v3677
        %v3698 = vpack.c.bf16 %v3680, %v3678
        %v3699 = vld [vmem:[%s6] sm:$0xff]
        %v3700 = vld [vmem:[%s6 + $0x8] sm:$0xff]
        %3702 = vset.pattern.permute.xlu0 0
        %3703 = vperm.xlu0 %3702, %v3699
        %v3704 = vpop.permute.xlu0 %3703
        %3707 = vset.pattern.permute.xlu0 0
        %3708 = vperm.xlu0 %3707, %v3700
        %v3709 = vpop.permute.xlu0 %3708
        %v3713 = vunpack.c.l.b16 %v3681
        %v3714 = vunpack.c.h.b16 %v3681
        %v3715 = vunpack.c.l.b16 %v3682
        %v3716 = vunpack.c.h.b16 %v3682
        %v3717 = vpack.c.b16 %v3715, %v3713
        %v3718 = vpack.c.b16 %v3716, %v3714
        %v3721 = vsel %vm799, %v3718, 0
        %v3724 = vsel %vm799, %v3684, 0
        %v3727 = vsel %vm799, %v3686, 0
        %v3730 = vsel %vm799, %v3688, 0
        %v3733 = vsel %vm799, %v3690, 0
        %v3736 = vsel %vm799, %v3692, 0
        %v3739 = vsel %vm799, %v3694, 0
        %v3742 = vsel %vm799, %v3696, 0
        %v3745 = vsel %vm799, %v3698, 0
        %3747 = vmatprep.subr.bf16.mxu0 %v3724
        %3748 = vmatpush1.bf16.xpose.msra.mxu0 %v3683
        %3749 = vmatprep.subr.bf16.mxu0 %v3727
        %3750 = vmatpush1.bf16.xpose.msra.mxu0 %v3685
        %3751 = vmatprep.subr.bf16.mxu0 %v3730
        %3752 = vmatpush1.bf16.xpose.msra.mxu0 %v3687
        %3753 = vmatprep.subr.bf16.mxu0 %v3733
        %3754 = vmatpush1.bf16.xpose.msra.mxu0 %v3689
        %3755 = vmatprep.subr.bf16.mxu0 %v3736
        %3756 = vmatpush1.bf16.xpose.msra.mxu0 %v3691
        %3757 = vmatprep.subr.bf16.mxu0 %v3739
        %3758 = vmatpush1.bf16.xpose.msra.mxu0 %v3693
        %3759 = vmatprep.subr.bf16.mxu0 %v3742
        %3760 = vmatpush1.bf16.xpose.msra.mxu0 %v3695
        %3761 = vmatprep.subr.bf16.mxu0 %v3745
        %3762 = vmatpush1.bf16.xpose.msra.mxu0 %v3697
        %3763 = vmatprep.subr.bf16.mxu0 0
        %3764 = vmatpush1.bf16.xpose.msra.mxu0 0
        %3765 = vmatprep.subr.bf16.mxu0 0
        %3766 = vmatpush1.bf16.xpose.msra.mxu0 0
        %3767 = vmatprep.subr.bf16.mxu0 0
        %3768 = vmatpush1.bf16.xpose.msra.mxu0 0
        %3769 = vmatprep.subr.bf16.mxu0 0
        %3770 = vmatpush1.bf16.xpose.msra.mxu0 0
        %3771 = vmatprep.subr.bf16.mxu0 0
        %3772 = vmatpush1.bf16.xpose.msra.mxu0 0
        %3773 = vmatprep.subr.bf16.mxu0 0
        %3774 = vmatpush1.bf16.xpose.msra.mxu0 0
        %3775 = vmatprep.subr.bf16.mxu0 0
        %3776 = vmatpush1.bf16.xpose.msra.mxu0 0
        %3777 = vmatprep.subr.bf16.mxu0 0
        %3778 = vmatpush1.bf16.xpose.msra.mxu0 0
        %3779 = vmatprep.mubr.bf16.mxu0 %v3721
        %3780 = vmatmul.mubr.bf16.gmra.mrb[0].mxu0 %v3717
        %v3781 = vpop.f32.mrb[0].mxu0
        %v3782 = vadd.f32 %v3704, %v3781
        %v3783 = vpop.f32.mrb[0].mxu0
        %v3784 = vpop.f32.mrb[0].mxu0
        %v3785 = vadd.f32 %v3709, %v3784
        %v3786 = vpop.f32.mrb[0].mxu0
        %3787 = vdwg.mxu0
        %3788 = vst [vmem:[%s384] sm:$0xff] %v3782
        %3789 = vst [vmem:[%s384 + $0x8] sm:$0xff] %v3785
        %s3790 = sand.u32 %s218, 1
        %s3791 = sand.u32 %s218, 1
        %s3792 = smul.addr %s3791, 16
        %s3793 = scalar_lea.vmem [#allocation3], %s3792
        // Predicated region
        $region49: #{centernet_head_forward.1} parent=47 // pred_check
          %p3794 = pneg %p228
        $region50: #{centernet_head_forward.1} parent=47 // pred_check_branch
          %3796 = sbr.rel (%p3794) target = $region52
        $region51: #{centernet_head_forward.1} parent=47 // pred_region
          %s3797 = smul.addr %s22, 4
          %s3798 = sadd.s32 %s23, %s3797
          %s3799 = smul.addr %s3798, 8
          %s3800 = scalar_lea.vmem %s7, %s3799
          // Predicated region
          $region53: #{centernet_head_forward.1} parent=51 // pred_check
            _
          $region54: #{centernet_head_forward.1} parent=51 // pred_check_branch
            %3802 = sbr.rel (0) target = $region56
          $region55: #{centernet_head_forward.1} parent=51 // pred_region
            // Predicated region
            $region57: #{centernet_head_forward.1} parent=55 // pred_check
              _
            $region58: #{centernet_head_forward.1} parent=55 // pred_check_branch
              %3804 = sbr.rel (0) target = $region60
            $region59: #{centernet_head_forward.1} parent=55 // pred_region
              // Predicated region
              $region72: #{centernet_head_forward.1} parent=59 // pred_check
                _
              $region73: #{centernet_head_forward.1} parent=59 // pred_check_branch
                %3821 = sbr.rel (0) target = $region75
              $region74: #{centernet_head_forward.1} parent=59 // pred_region
                loop: start=0, step=1, limit=1
                $region76: #{centernet_head_forward.1} parent=74 // loop_pre_header
                  _
                $region77: #{centernet_head_forward.1} parent=74 // loop_header
                  %s3823 = sphi 0, %s3827
                  %p3824 = scmp.ge.s32.totalorder %s3823, 1
                  %s3828 = sphi %s3793, %s3793
                  %s3829 = sphi %s3800, %s3800
                $region78: #{centernet_head_forward.1} parent=74 // loop_header_branch
                  %3826 = sbr.rel (%p3824) target = $region82
                $region79: #{centernet_head_forward.1} parent=74 // loop_body
                  %v3830 = vld [vmem:[%s3828] sm:$0xff]
                  %3831 = vst [vmem:[%s3829] sm:$0xff] %v3830
                  %v3832 = vld [vmem:[%s3828 + $0x8] sm:$0xff]
                  %3833 = vst [vmem:[%s3829 + $0x10] sm:$0xff] %v3832
                $region80: #{centernet_head_forward.1} parent=74 // loop_footer
                  %s3827 = sadd.s32 1, %s3823
                $region81: #{centernet_head_forward.1} parent=74 // loop_footer_branch
                  %3822 = sbr.rel target = $region77
                $region82: #{centernet_head_forward.1} parent=74 // loop_exit
                  _
              $region75: #{centernet_head_forward.1} parent=59 // pred_fallthru
                _
              // Predicated region
              $region83: #{centernet_head_forward.1} parent=59 // pred_check
                _
              $region84: #{centernet_head_forward.1} parent=59 // pred_check_branch
                %3835 = sbr.rel target = $region86
              $region85: #{centernet_head_forward.1} parent=59 // pred_region
                _
              $region86: #{centernet_head_forward.1} parent=59 // pred_fallthru
                _
            $region60: #{centernet_head_forward.1} parent=55 // pred_fallthru
              _
            // Predicated region
            $region61: #{centernet_head_forward.1} parent=55 // pred_check
              _
            $region62: #{centernet_head_forward.1} parent=55 // pred_check_branch
              %3806 = sbr.rel target = $region64
            $region63: #{centernet_head_forward.1} parent=55 // pred_region
              loop: start=0, step=1, limit=1
              $region65: #{centernet_head_forward.1} parent=63 // loop_pre_header
                _
              $region66: #{centernet_head_forward.1} parent=63 // loop_header
                %s3809 = sphi 0, %s3813
                %p3810 = scmp.ge.s32.totalorder %s3809, 1
                %s3814 = sphi %s3793, %s3793
                %s3815 = sphi %s3800, %s3800
              $region67: #{centernet_head_forward.1} parent=63 // loop_header_branch
                %3812 = sbr.rel (%p3810) target = $region71
              $region68: #{centernet_head_forward.1} parent=63 // loop_body
                %v3816 = vld [vmem:[%s3814] sm:$0xff]
                %3817 = vst [vmem:[%s3815] sm:$0xff] %v3816
                %v3818 = vld [vmem:[%s3814 + $0x8] sm:$0xff]
                %3819 = vst [vmem:[%s3815 + $0x10] sm:$0xff] %v3818
              $region69: #{centernet_head_forward.1} parent=63 // loop_footer
                %s3813 = sadd.s32 1, %s3809
              $region70: #{centernet_head_forward.1} parent=63 // loop_footer_branch
                %3808 = sbr.rel target = $region66
              $region71: #{centernet_head_forward.1} parent=63 // loop_exit
                _
            $region64: #{centernet_head_forward.1} parent=55 // pred_fallthru
              _
          $region56: #{centernet_head_forward.1} parent=51 // pred_fallthru
            _
          %3836 = vnop
        $region52: #{centernet_head_forward.1} parent=47 // pred_fallthru
          _
      $region48: #{centernet_head_forward.1} parent=5 // pred_fallthru
        _
      %p3837 = scmp.le.s32.totalorder 2, %s13
      // Predicated region
      $region87: #{centernet_head_forward.1} parent=5 // pred_check
        %p3838 = pneg %p3837
      $region88: #{centernet_head_forward.1} parent=5 // pred_check_branch
        %3840 = sbr.rel (%p3838) target = $region90
      $region89: #{centernet_head_forward.1} parent=5 // pred_region
        %s3841 = ssub.s32 %s13, 2
        // Predicated region
        $region91: #{centernet_head_forward.1} parent=89 // pred_check
          %p3842 = pneg %p234
        $region92: #{centernet_head_forward.1} parent=89 // pred_check_branch
          %3844 = sbr.rel (%p3842) target = $region94
        $region93: #{centernet_head_forward.1} parent=89 // pred_region
          %s3845 = sand.u32 %s219, 1
          %s3846 = sand.u32 %s219, 1
          %s3847 = smul.addr %s3846, 16
          %s3848 = scalar_lea.vmem [#allocation3], %s3847
        $region94: #{centernet_head_forward.1} parent=89 // pred_fallthru
          _
      $region90: #{centernet_head_forward.1} parent=5 // pred_fallthru
        _
    $region6: #{centernet_head_forward.1} parent=1 // loop_footer
      %s17 = sadd.s32 1, %s13
    $region7: #{centernet_head_forward.1} parent=1 // loop_footer_branch
      %12 = sbr.rel target = $region3
    $region8: #{centernet_head_forward.1} parent=1 // loop_exit
      _

</llo_original>
